<compile_context>
chip_gen: v5e
topology: v5e:2x2
jax: 0.10.0
libtpu: 0.0.40
codegen_flags: <defaults>
</compile_context>

<pallas_src>
import functools
import math

import jax
import jax.numpy as jnp
from jax import lax
from jax.experimental import pallas as pl
from jax.experimental.pallas import tpu as pltpu

_EPS = 1e-5  # nn.GroupNorm default eps


# ----------------------------- in-kernel helpers -----------------------------

def _wshift(xf, b, colw, W):
    """Circular shift along W only: out[c, h*W + w] = xf[c, h*W + (w+b) % W]."""
    if b == 0:
        return xf
    hw = xf.shape[-1]
    main = pltpu.roll(xf, (-b) % hw, axis=1)
    if b > 0:
        alt = pltpu.roll(xf, (W - b) % hw, axis=1)
        return jnp.where(colw < (W - b), main, alt)
    alt = pltpu.roll(xf, (-b - W) % hw, axis=1)
    return jnp.where(colw >= (-b), main, alt)


def _hshift(xf, a, W):
    """Circular shift along H: exact flat roll by a*W (rows are contiguous)."""
    if a == 0:
        return xf
    hw = xf.shape[-1]
    return pltpu.roll(xf, (-a * W) % hw, axis=1)


def _group_norm2(v, gamma_col, beta_col):
    """GroupNorm(2, C) on a lane-dense (C, HW) tile; affine via (C,1) columns."""
    c = v.shape[0]
    cg = c // 2
    rio = lax.broadcasted_iota(jnp.int32, (c, 1), 0)
    m0 = jnp.mean(v[:cg])
    m1 = jnp.mean(v[cg:])
    d = v - jnp.where(rio < cg, m0, m1)
    v0 = jnp.mean(jnp.square(d[:cg]))
    v1 = jnp.mean(jnp.square(d[cg:]))
    rstd = jnp.where(rio < cg, lax.rsqrt(v0 + _EPS), lax.rsqrt(v1 + _EPS))
    return d * rstd * gamma_col + beta_col


def _mish(v):
    # mish(x) = x * tanh(softplus(x)); stable softplus in f32 (exp/log/tanh on EUP).
    sp = jnp.maximum(v, 0.0) + jnp.log(1.0 + jnp.exp(-jnp.abs(v)))
    return v * jnp.tanh(sp)


def _arctan_f32(x):
    # Branch-free Cephes atanf (f32-accurate) — Mosaic has no atan primitive.
    t = jnp.abs(x)
    big = t > 2.414213562373095     # tan(3*pi/8)
    mid = t > 0.4142135623730950    # tan(pi/8)
    xr = jnp.where(big, -1.0 / jnp.maximum(t, 1e-30),
                   jnp.where(mid, (t - 1.0) / (t + 1.0), t))
    yc = jnp.where(big, 0.5 * math.pi, jnp.where(mid, 0.25 * math.pi, 0.0))
    z = xr * xr
    p = ((((8.05374449538e-2 * z - 1.38776856032e-1) * z + 1.99777106478e-1) * z
          - 3.33329491539e-1) * z * xr + xr)
    r = yc + p
    return jnp.where(x < 0.0, -r, r)


# --------------------------------- the kernel ---------------------------------

def _stable_hybrid_kernel(x_ref, colw_ref, vt_ref, ws_ref, wdw_ref,
                          wp1_ref, wp2_ref, wo_ref, o_ref, *, W, n_blocks):
    x = x_ref[...]                      # (Cin, HW) f32 — one sample, lane-dense
    colw = colw_ref[...]                # (1, HW) int32 column-within-row index
    vt = vt_ref[...]                    # (Cmax, n_cols) packed per-channel params
    ch = ws_ref.shape[0]                # hidden channels
    ch4 = wp1_ref.shape[1]              # 4 * hidden
    cout = wo_ref.shape[0]

    # ---- stem: circular 3x3 conv as ONE fused im2col matmul -> GN -> Mish ----
    wb = {b: _wshift(x, b, colw, W) for b in (-1, 0, 1)}
    m = jnp.concatenate(
        [_hshift(wb[b], a, W) for a in (-1, 0, 1) for b in (-1, 0, 1)], axis=0)
    h = jnp.dot(ws_ref[...], m, preferred_element_type=jnp.float32)   # (ch, HW)
    h = h + vt[:ch, 0:1]
    h = _group_norm2(h, vt[:ch, 1:2], vt[:ch, 2:3])
    h = _mish(h)

    # ---- ModernResBlocks ----
    for blk in range(n_blocks):
        p0 = 3 + blk * 6
        skip = h
        # depthwise circular 5x5: VPU MAC over 25 roll-shifted taps.
        wdw = wdw_ref[blk]                                   # (ch, 25)
        wb = {b: _wshift(h, b, colw, W) for b in (-2, -1, 0, 1, 2)}
        acc = None
        t = 0
        for a in (-2, -1, 0, 1, 2):
            for b in (-2, -1, 0, 1, 2):
                term = wdw[:, t:t + 1] * _hshift(wb[b], a, W)
                acc = term if acc is None else acc + term
                t += 1
        h = acc + vt[:ch, p0 + 0:p0 + 1]
        h = _group_norm2(h, vt[:ch, p0 + 1:p0 + 2], vt[:ch, p0 + 2:p0 + 3])
        h = jnp.dot(wp1_ref[blk], h, preferred_element_type=jnp.float32)  # (4ch, HW)
        h = _mish(h + vt[:ch4, p0 + 3:p0 + 4])
        h = jnp.dot(wp2_ref[blk], h, preferred_element_type=jnp.float32)  # (ch, HW)
        h = h + vt[:ch, p0 + 4:p0 + 5]
        h = skip + vt[:ch, p0 + 5:p0 + 6] * h

    # ---- ECA channel attention (1D conv over channel means, zero padded) ----
    ncol = 3 + 6 * n_blocks
    ecol = ncol + 1
    y = jnp.mean(h, axis=1, keepdims=True)                    # (ch, 1)
    zero = jnp.zeros((1, 1), jnp.float32)
    y_prev = jnp.concatenate([zero, y[:-1]], axis=0)
    y_next = jnp.concatenate([y[1:], zero], axis=0)
    gate = (vt[0:1, ecol:ecol + 1] * y_prev
            + vt[1:2, ecol:ecol + 1] * y
            + vt[2:3, ecol:ecol + 1] * y_next)
    h = h * jax.nn.sigmoid(gate)

    # ---- 1x1 output conv, arctan(x * T) / (2*pi) ----
    o = jnp.dot(wo_ref[...], h, preferred_element_type=jnp.float32)   # (cout, HW)
    o = o + vt[:cout, ncol:ncol + 1]
    temp = vt[0:1, ncol + 2:ncol + 3]
    o = _arctan_f32(o * temp) * (1.0 / (2.0 * math.pi))
    o_ref[...] = o.astype(o_ref.dtype)


# --------------------------------- the wrapper --------------------------------

def stable_hybrid_v5(plaq, rect, params, *, n_blocks=2, n_plaq=4):
    n, cp, H, W = plaq.shape
    cr = rect.shape[1]
    cin = cp + cr
    ch = params["stem_w"].shape[0]
    ch4 = 4 * ch
    cout = params["out_w"].shape[0]
    hw = H * W
    assert ch % 2 == 0, "GroupNorm(2, C) requires even channel count"

    f32 = jnp.float32
    # Lane-dense layout: (N, C, H*W); H*W = 256 is a multiple of 128.
    x = jnp.concatenate([plaq, rect], axis=1).reshape(n, cin, hw).astype(f32)
    colw = (jnp.arange(hw, dtype=jnp.int32) % W).reshape(1, hw)

    # Packed per-channel parameter table: channels on sublanes, params on lanes.
    cmax = max(ch4, cout, 3)

    def vcol(v):
        v = jnp.asarray(v, f32).reshape(-1)
        return jnp.zeros((cmax,), f32).at[:v.shape[0]].set(v)

    cols = [vcol(params["stem_b"]), vcol(params["stem_gn_w"]), vcol(params["stem_gn_b"])]
    for blk in range(n_blocks):
        cols += [vcol(params[f"dw_b{blk}"]), vcol(params[f"norm_w{blk}"]),
                 vcol(params[f"norm_b{blk}"]), vcol(params[f"pw1_b{blk}"]),
                 vcol(params[f"pw2_b{blk}"]), vcol(params[f"gamma{blk}"])]
    cols += [vcol(params["out_b"]), vcol(params["eca_w"]), vcol(params["temperature"])]
    vtab = jnp.stack(cols, axis=1)                                    # (cmax, 18)

    # Matmul-ready weights.
    ws = jnp.transpose(params["stem_w"], (0, 2, 3, 1)).reshape(ch, 9 * cin).astype(f32)
    wdw = jnp.stack([params[f"dw_w{b}"].reshape(ch, 25) for b in range(n_blocks)]).astype(f32)
    wp1 = jnp.stack([params[f"pw1_w{b}"].reshape(ch4, ch) for b in range(n_blocks)]).astype(f32)
    wp2 = jnp.stack([params[f"pw2_w{b}"].reshape(ch, ch4) for b in range(n_blocks)]).astype(f32)
    wo = params["out_w"].reshape(cout, ch).astype(f32)

    kernel = functools.partial(_stable_hybrid_kernel, W=W, n_blocks=n_blocks)

    flops = 2 * hw * (ch * 9 * cin + n_blocks * (ch * 25 + 2 * ch4 * ch) + cout * ch) * n
    transc = (3 * hw * (ch + n_blocks * ch4) + 4 * ch) * n
    bytes_acc = 4 * (x.size + n * cout * hw + vtab.size + ws.size + wdw.size
                     + wp1.size + wp2.size + wo.size + colw.size)

    out = pl.pallas_call(
        kernel,
        out_shape=jax.ShapeDtypeStruct((n, cout, hw), f32),
        grid=(n,),
        in_specs=[
            pl.BlockSpec((None, cin, hw), lambda i: (i, 0, 0)),
            pl.BlockSpec(colw.shape, lambda i: (0, 0)),
            pl.BlockSpec(vtab.shape, lambda i: (0, 0)),
            pl.BlockSpec(ws.shape, lambda i: (0, 0)),
            pl.BlockSpec(wdw.shape, lambda i: (0, 0, 0)),
            pl.BlockSpec(wp1.shape, lambda i: (0, 0, 0)),
            pl.BlockSpec(wp2.shape, lambda i: (0, 0, 0)),
            pl.BlockSpec(wo.shape, lambda i: (0, 0)),
        ],
        out_specs=pl.BlockSpec((None, cout, hw), lambda i: (i, 0, 0)),
        compiler_params=pltpu.CompilerParams(dimension_semantics=("parallel",)),
        cost_estimate=pl.CostEstimate(flops=flops, transcendentals=transc,
                                      bytes_accessed=bytes_acc),
    )(x, colw, vtab, ws, wdw, wp1, wp2, wo)

    out = out.reshape(n, cout, H, W)
    return out[:, :n_plaq], out[:, n_plaq:]


# ------------------------------ pure-JAX reference -----------------------------

def _reference(plaq, rect, params, n_blocks=2, n_plaq=4):
    x = jnp.concatenate([plaq, rect], axis=1)
    ch = params["stem_w"].shape[0]

    def gn(v, g, b):
        n_, c_, hh, ww = v.shape
        vg = v.reshape(n_, 2, -1)
        m = vg.mean(axis=2, keepdims=True)
        var = ((vg - m) ** 2).mean(axis=2, keepdims=True)
        vn = ((vg - m) / jnp.sqrt(var + _EPS)).reshape(n_, c_, hh, ww)
        return vn * g.reshape(1, -1, 1, 1) + b.reshape(1, -1, 1, 1)

    def mish(v):
        return v * jnp.tanh(jax.nn.softplus(v))

    def conv(v, w, b, pad=0, circular=False, groups=1):
        if circular and pad:
            v = jnp.pad(v, ((0, 0), (0, 0), (pad, pad), (pad, pad)), mode="wrap")
        o = lax.conv_general_dilated(
            v, w, (1, 1), "VALID", dimension_numbers=("NCHW", "OIHW", "NCHW"),
            feature_group_count=groups, precision=lax.Precision.HIGHEST)
        return o + b.reshape(1, -1, 1, 1)

    h = mish(gn(conv(x, params["stem_w"], params["stem_b"], 1, True),
                params["stem_gn_w"], params["stem_gn_b"]))
    for blk in range(n_blocks):
        skip = h
        h = conv(h, params[f"dw_w{blk}"], params[f"dw_b{blk}"], 2, True, groups=ch)
        h = gn(h, params[f"norm_w{blk}"], params[f"norm_b{blk}"])
        h = mish(conv(h, params[f"pw1_w{blk}"], params[f"pw1_b{blk}"]))
        h = conv(h, params[f"pw2_w{blk}"], params[f"pw2_b{blk}"])
        h = skip + params[f"gamma{blk}"].reshape(1, -1, 1, 1) * h
    # ECA: conv1d(k=3, zero pad) over per-channel spatial means.
    y = h.mean(axis=(2, 3))
    wv = params["eca_w"].reshape(3)
    yp = jnp.pad(y, ((0, 0), (1, 1)))
    gate = wv[0] * yp[:, :-2] + wv[1] * yp[:, 1:-1] + wv[2] * yp[:, 2:]
    h = h * jax.nn.sigmoid(gate)[:, :, None, None]
    o = conv(h, params["out_w"], params["out_b"])
    o = jnp.arctan(o * params["temperature"].reshape(())) / math.pi / 2.0
    return o[:, :n_plaq], o[:, n_plaq:]


if __name__ == "__main__":
    key = jax.random.PRNGKey(0)
    N, H, W = 2, 16, 16
    CP, CR, CH = 2, 4, 12          # plaq/rect input channels, hidden_channels
    NPL, NRE = 4, 8                # plaq/rect output channels
    COUT = NPL + NRE

    ks = iter(jax.random.split(key, 48))

    def rnd(shape, s=0.2):
        return s * jax.random.normal(next(ks), shape, jnp.float32)

    plaq = jax.random.normal(next(ks), (N, CP, H, W), jnp.float32)
    rect = jax.random.normal(next(ks), (N, CR, H, W), jnp.float32)

    params = {
        "stem_w": rnd((CH, CP + CR, 3, 3)), "stem_b": rnd((CH,), 0.1),
        "stem_gn_w": 1.0 + rnd((CH,), 0.1), "stem_gn_b": rnd((CH,), 0.1),
        "out_w": rnd((COUT, CH, 1, 1), 0.1), "out_b": rnd((COUT,), 0.05),
        "eca_w": rnd((1, 1, 3), 0.5),
        "temperature": jnp.full((1,), 0.1, jnp.float32),
    }
    for blk in range(2):
        params.update({
            f"dw_w{blk}": rnd((CH, 1, 5, 5)), f"dw_b{blk}": rnd((CH,), 0.1),
            f"norm_w{blk}": 1.0 + rnd((CH,), 0.1), f"norm_b{blk}": rnd((CH,), 0.1),
            f"pw1_w{blk}": rnd((4 * CH, CH, 1, 1)), f"pw1_b{blk}": rnd((4 * CH,), 0.1),
            f"pw2_w{blk}": rnd((CH, 4 * CH, 1, 1)), f"pw2_b{blk}": rnd((CH,), 0.1),
            f"gamma{blk}": jnp.full((CH,), 0.5, jnp.float32),
        })

    plaq_out, rect_out = jax.block_until_ready(
        stable_hybrid_v5(plaq, rect, params, n_plaq=NPL))
    ref_p, ref_r = _reference(plaq, rect, params, n_plaq=NPL)

    assert plaq_out.shape == (N, NPL, H, W) and rect_out.shape == (N, NRE, H, W)
    err = max(float(jnp.max(jnp.abs(plaq_out - ref_p))),
              float(jnp.max(jnp.abs(rect_out - ref_r))))
    assert err < 2e-4, err
    print("KERNEL_OK")
</pallas_src>

<mosaic_0001>
module attributes {stable_mosaic.version = 11 : i64} {
  func.func @_stable_hybrid_kernel(%arg0: i32, %arg1: memref<1x6x256xf32, #tpu.memory_space<vmem>>, %arg2: memref<1x256xi32, #tpu.memory_space<vmem>>, %arg3: memref<48x18xf32, #tpu.memory_space<vmem>>, %arg4: memref<12x54xf32, #tpu.memory_space<vmem>>, %arg5: memref<2x12x25xf32, #tpu.memory_space<vmem>>, %arg6: memref<2x48x12xf32, #tpu.memory_space<vmem>>, %arg7: memref<2x12x48xf32, #tpu.memory_space<vmem>>, %arg8: memref<12x12xf32, #tpu.memory_space<vmem>>, %arg9: memref<1x12x256xf32, #tpu.memory_space<vmem>>) attributes {dimension_semantics = [#tpu.dimension_semantics<parallel>], iteration_bounds = array<i64: 2>, scalar_prefetch = 0 : i64, scratch_operands = 0 : i64, tpu.core_type = #tpu.core_type<tc>, window_params = [{transform_indices = @transform_0, window_bounds = array<i64: 1, 6, 256>}, {pipeline_mode = #tpu.pipeline_mode<synchronous>, transform_indices = @transform_1, window_bounds = array<i64: 1, 256>}, {pipeline_mode = #tpu.pipeline_mode<synchronous>, transform_indices = @transform_2, window_bounds = array<i64: 48, 18>}, {pipeline_mode = #tpu.pipeline_mode<synchronous>, transform_indices = @transform_3, window_bounds = array<i64: 12, 54>}, {pipeline_mode = #tpu.pipeline_mode<synchronous>, transform_indices = @transform_4, window_bounds = array<i64: 2, 12, 25>}, {pipeline_mode = #tpu.pipeline_mode<synchronous>, transform_indices = @transform_5, window_bounds = array<i64: 2, 48, 12>}, {pipeline_mode = #tpu.pipeline_mode<synchronous>, transform_indices = @transform_6, window_bounds = array<i64: 2, 12, 48>}, {pipeline_mode = #tpu.pipeline_mode<synchronous>, transform_indices = @transform_7, window_bounds = array<i64: 12, 12>}, {transform_indices = @transform_8, window_bounds = array<i64: 1, 12, 256>}]} {
    %c0 = arith.constant 0 : index
    %c0_0 = arith.constant 0 : index
    %c0_1 = arith.constant 0 : index
    %0 = vector.load %arg1[%c0, %c0_0, %c0_1] : memref<1x6x256xf32, #tpu.memory_space<vmem>>, vector<1x6x256xf32>
    %1 = vector.shape_cast %0 : vector<1x6x256xf32> to vector<6x256xf32>
    %c0_2 = arith.constant 0 : index
    %c0_3 = arith.constant 0 : index
    %2 = vector.load %arg2[%c0_2, %c0_3] : memref<1x256xi32, #tpu.memory_space<vmem>>, vector<1x256xi32>
    %c0_4 = arith.constant 0 : index
    %c0_5 = arith.constant 0 : index
    %3 = vector.load %arg3[%c0_4, %c0_5] : memref<48x18xf32, #tpu.memory_space<vmem>>, vector<48x18xf32>
    %c1_i32 = arith.constant 1 : i32
    %4 = tpu.dynamic_rotate %1 by %c1_i32 dim 1 : vector<6x256xf32>, i32 -> vector<6x256xf32>
    %c241_i32 = arith.constant 241 : i32
    %5 = tpu.dynamic_rotate %1 by %c241_i32 dim 1 : vector<6x256xf32>, i32 -> vector<6x256xf32>
    %c1_i32_6 = arith.constant 1 : i32
    %6 = vector.broadcast %c1_i32_6 : i32 to vector<1x256xi32>
    %7 = arith.cmpi sge, %2, %6 : vector<1x256xi32>
    %8 = vector.shape_cast %7 : vector<1x256xi1> to vector<1x256xi1>
    %9 = vector.broadcast %8 : vector<1x256xi1> to vector<6x256xi1>
    %10 = arith.select %9, %4, %5 : vector<6x256xi1>, vector<6x256xf32>
    %c255_i32 = arith.constant 255 : i32
    %11 = tpu.dynamic_rotate %1 by %c255_i32 dim 1 : vector<6x256xf32>, i32 -> vector<6x256xf32>
    %c15_i32 = arith.constant 15 : i32
    %12 = tpu.dynamic_rotate %1 by %c15_i32 dim 1 : vector<6x256xf32>, i32 -> vector<6x256xf32>
    %c15_i32_7 = arith.constant 15 : i32
    %13 = vector.broadcast %c15_i32_7 : i32 to vector<1x256xi32>
    %14 = arith.cmpi slt, %2, %13 : vector<1x256xi32>
    %15 = vector.shape_cast %14 : vector<1x256xi1> to vector<1x256xi1>
    %16 = vector.broadcast %15 : vector<1x256xi1> to vector<6x256xi1>
    %17 = arith.select %16, %11, %12 : vector<6x256xi1>, vector<6x256xf32>
    %c16_i32 = arith.constant 16 : i32
    %18 = tpu.dynamic_rotate %10 by %c16_i32 dim 1 : vector<6x256xf32>, i32 -> vector<6x256xf32>
    %c16_i32_8 = arith.constant 16 : i32
    %19 = tpu.dynamic_rotate %1 by %c16_i32_8 dim 1 : vector<6x256xf32>, i32 -> vector<6x256xf32>
    %c16_i32_9 = arith.constant 16 : i32
    %20 = tpu.dynamic_rotate %17 by %c16_i32_9 dim 1 : vector<6x256xf32>, i32 -> vector<6x256xf32>
    %c240_i32 = arith.constant 240 : i32
    %21 = tpu.dynamic_rotate %10 by %c240_i32 dim 1 : vector<6x256xf32>, i32 -> vector<6x256xf32>
    %c240_i32_10 = arith.constant 240 : i32
    %22 = tpu.dynamic_rotate %1 by %c240_i32_10 dim 1 : vector<6x256xf32>, i32 -> vector<6x256xf32>
    %c240_i32_11 = arith.constant 240 : i32
    %23 = tpu.dynamic_rotate %17 by %c240_i32_11 dim 1 : vector<6x256xf32>, i32 -> vector<6x256xf32>
    %24 = tpu.concatenate %18, %19, %20, %10, %1, %17, %21, %22, %23 in 0 : vector<6x256xf32>, vector<6x256xf32>, vector<6x256xf32>, vector<6x256xf32>, vector<6x256xf32>, vector<6x256xf32>, vector<6x256xf32>, vector<6x256xf32>, vector<6x256xf32> -> vector<54x256xf32>
    %c0_12 = arith.constant 0 : index
    %c0_13 = arith.constant 0 : index
    %25 = vector.load %arg4[%c0_12, %c0_13] : memref<12x54xf32, #tpu.memory_space<vmem>>, vector<12x54xf32>
    %cst = arith.constant dense<0.000000e+00> : vector<12x256xf32>
    %26 = tpu.matmul %25, %24, %cst {dimension_numbers = #tpu.dot_dimension_numbers<[1], [0], [0], [1], [0, 0, 1, 1], [], []>} : vector<12x54xf32>, vector<54x256xf32>, vector<12x256xf32> -> vector<12x256xf32>
    %27 = vector.extract_strided_slice %3 {offsets = [0, 0], sizes = [12, 1], strides = [1, 1]} : vector<48x18xf32> to vector<12x1xf32>
    %28 = vector.broadcast %27 : vector<12x1xf32> to vector<12x256xf32>
    %29 = arith.addf %26, %28 : vector<12x256xf32>
    %30 = vector.extract_strided_slice %3 {offsets = [0, 1], sizes = [12, 1], strides = [1, 1]} : vector<48x18xf32> to vector<12x1xf32>
    %31 = vector.extract_strided_slice %3 {offsets = [0, 2], sizes = [12, 1], strides = [1, 1]} : vector<48x18xf32> to vector<12x1xf32>
    %32 = tpu.iota {dimensions = array<i32: 0>} : vector<12x1xi32>
    %33 = vector.extract_strided_slice %29 {offsets = [0, 0], sizes = [6, 256], strides = [1, 1]} : vector<12x256xf32> to vector<6x256xf32>
    %34 = vector.shape_cast %33 : vector<6x256xf32> to vector<1x6x256xf32>
    %cst_14 = arith.constant dense<0.000000e+00> : vector<1xf32>
    %35 = vector.multi_reduction <add>, %34, %cst_14 [1, 2] : vector<1x6x256xf32> to vector<1xf32>
    %36 = vector.shape_cast %35 : vector<1xf32> to vector<1x1x1xf32>
    %37 = vector.extract %36[0, 0, 0] : f32 from vector<1x1x1xf32>
    %cst_15 = arith.constant 1.536000e+03 : f32
    %38 = arith.divf %37, %cst_15 : f32
    %39 = vector.extract_strided_slice %29 {offsets = [6, 0], sizes = [6, 256], strides = [1, 1]} : vector<12x256xf32> to vector<6x256xf32>
    %40 = vector.shape_cast %39 : vector<6x256xf32> to vector<1x6x256xf32>
    %cst_16 = arith.constant dense<0.000000e+00> : vector<1xf32>
    %41 = vector.multi_reduction <add>, %40, %cst_16 [1, 2] : vector<1x6x256xf32> to vector<1xf32>
    %42 = vector.shape_cast %41 : vector<1xf32> to vector<1x1x1xf32>
    %43 = vector.extract %42[0, 0, 0] : f32 from vector<1x1x1xf32>
    %cst_17 = arith.constant 1.536000e+03 : f32
    %44 = arith.divf %43, %cst_17 : f32
    %c6_i32 = arith.constant 6 : i32
    %45 = vector.broadcast %c6_i32 : i32 to vector<12x1xi32>
    %46 = arith.cmpi slt, %32, %45 : vector<12x1xi32>
    %47 = vector.broadcast %38 : f32 to vector<12x1xf32>
    %48 = vector.broadcast %44 : f32 to vector<12x1xf32>
    %49 = arith.select %46, %47, %48 : vector<12x1xi1>, vector<12x1xf32>
    %50 = vector.broadcast %49 : vector<12x1xf32> to vector<12x256xf32>
    %51 = arith.subf %29, %50 : vector<12x256xf32>
    %52 = vector.extract_strided_slice %51 {offsets = [0, 0], sizes = [6, 256], strides = [1, 1]} : vector<12x256xf32> to vector<6x256xf32>
    %53 = arith.mulf %52, %52 : vector<6x256xf32>
    %54 = vector.shape_cast %53 : vector<6x256xf32> to vector<1x6x256xf32>
    %cst_18 = arith.constant dense<0.000000e+00> : vector<1xf32>
    %55 = vector.multi_reduction <add>, %54, %cst_18 [1, 2] : vector<1x6x256xf32> to vector<1xf32>
    %56 = vector.shape_cast %55 : vector<1xf32> to vector<1x1x1xf32>
    %57 = vector.extract %56[0, 0, 0] : f32 from vector<1x1x1xf32>
    %cst_19 = arith.constant 1.536000e+03 : f32
    %58 = arith.divf %57, %cst_19 : f32
    %59 = vector.extract_strided_slice %51 {offsets = [6, 0], sizes = [6, 256], strides = [1, 1]} : vector<12x256xf32> to vector<6x256xf32>
    %60 = arith.mulf %59, %59 : vector<6x256xf32>
    %61 = vector.shape_cast %60 : vector<6x256xf32> to vector<1x6x256xf32>
    %cst_20 = arith.constant dense<0.000000e+00> : vector<1xf32>
    %62 = vector.multi_reduction <add>, %61, %cst_20 [1, 2] : vector<1x6x256xf32> to vector<1xf32>
    %63 = vector.shape_cast %62 : vector<1xf32> to vector<1x1x1xf32>
    %64 = vector.extract %63[0, 0, 0] : f32 from vector<1x1x1xf32>
    %cst_21 = arith.constant 1.536000e+03 : f32
    %65 = arith.divf %64, %cst_21 : f32
    %c6_i32_22 = arith.constant 6 : i32
    %66 = vector.broadcast %c6_i32_22 : i32 to vector<12x1xi32>
    %67 = arith.cmpi slt, %32, %66 : vector<12x1xi32>
    %cst_23 = arith.constant 9.99999974E-6 : f32
    %68 = arith.addf %58, %cst_23 : f32
    %69 = math.rsqrt %68 : f32
    %cst_24 = arith.constant 9.99999974E-6 : f32
    %70 = arith.addf %65, %cst_24 : f32
    %71 = math.rsqrt %70 : f32
    %72 = vector.broadcast %69 : f32 to vector<12x1xf32>
    %73 = vector.broadcast %71 : f32 to vector<12x1xf32>
    %74 = arith.select %67, %72, %73 : vector<12x1xi1>, vector<12x1xf32>
    %75 = vector.broadcast %74 : vector<12x1xf32> to vector<12x256xf32>
    %76 = arith.mulf %51, %75 : vector<12x256xf32>
    %77 = vector.broadcast %30 : vector<12x1xf32> to vector<12x256xf32>
    %78 = arith.mulf %76, %77 : vector<12x256xf32>
    %79 = vector.broadcast %31 : vector<12x1xf32> to vector<12x256xf32>
    %80 = arith.addf %78, %79 : vector<12x256xf32>
    %cst_25 = arith.constant 0.000000e+00 : f32
    %81 = vector.broadcast %cst_25 : f32 to vector<12x256xf32>
    %82 = arith.maximumf %80, %81 : vector<12x256xf32>
    %83 = math.absf %80 : vector<12x256xf32>
    %cst_26 = arith.constant 0.000000e+00 : f32
    %84 = vector.broadcast %cst_26 : f32 to vector<12x256xf32>
    %85 = arith.subf %84, %83 : vector<12x256xf32>
    %86 = math.exp %85 : vector<12x256xf32>
    %cst_27 = arith.constant 1.000000e+00 : f32
    %87 = vector.broadcast %cst_27 : f32 to vector<12x256xf32>
    %88 = arith.addf %87, %86 : vector<12x256xf32>
    %89 = math.log %88 : vector<12x256xf32>
    %90 = arith.addf %82, %89 : vector<12x256xf32>
    %91 = math.tanh %90 : vector<12x256xf32>
    %92 = arith.mulf %80, %91 : vector<12x256xf32>
    %c0_28 = arith.constant 0 : index
    %c0_29 = arith.constant 0 : index
    %c0_30 = arith.constant 0 : index
    %93 = vector.load %arg5[%c0_28, %c0_29, %c0_30] : memref<2x12x25xf32, #tpu.memory_space<vmem>>, vector<1x12x25xf32>
    %94 = vector.shape_cast %93 : vector<1x12x25xf32> to vector<12x25xf32>
    %c2_i32 = arith.constant 2 : i32
    %95 = tpu.dynamic_rotate %92 by %c2_i32 dim 1 : vector<12x256xf32>, i32 -> vector<12x256xf32>
    %c242_i32 = arith.constant 242 : i32
    %96 = tpu.dynamic_rotate %92 by %c242_i32 dim 1 : vector<12x256xf32>, i32 -> vector<12x256xf32>
    %c2_i32_31 = arith.constant 2 : i32
    %97 = vector.broadcast %c2_i32_31 : i32 to vector<1x256xi32>
    %98 = arith.cmpi sge, %2, %97 : vector<1x256xi32>
    %99 = vector.shape_cast %98 : vector<1x256xi1> to vector<1x256xi1>
    %100 = vector.broadcast %99 : vector<1x256xi1> to vector<12x256xi1>
    %101 = arith.select %100, %95, %96 : vector<12x256xi1>, vector<12x256xf32>
    %c1_i32_32 = arith.constant 1 : i32
    %102 = tpu.dynamic_rotate %92 by %c1_i32_32 dim 1 : vector<12x256xf32>, i32 -> vector<12x256xf32>
    %c241_i32_33 = arith.constant 241 : i32
    %103 = tpu.dynamic_rotate %92 by %c241_i32_33 dim 1 : vector<12x256xf32>, i32 -> vector<12x256xf32>
    %c1_i32_34 = arith.constant 1 : i32
    %104 = vector.broadcast %c1_i32_34 : i32 to vector<1x256xi32>
    %105 = arith.cmpi sge, %2, %104 : vector<1x256xi32>
    %106 = vector.shape_cast %105 : vector<1x256xi1> to vector<1x256xi1>
    %107 = vector.broadcast %106 : vector<1x256xi1> to vector<12x256xi1>
    %108 = arith.select %107, %102, %103 : vector<12x256xi1>, vector<12x256xf32>
    %c255_i32_35 = arith.constant 255 : i32
    %109 = tpu.dynamic_rotate %92 by %c255_i32_35 dim 1 : vector<12x256xf32>, i32 -> vector<12x256xf32>
    %c15_i32_36 = arith.constant 15 : i32
    %110 = tpu.dynamic_rotate %92 by %c15_i32_36 dim 1 : vector<12x256xf32>, i32 -> vector<12x256xf32>
    %c15_i32_37 = arith.constant 15 : i32
    %111 = vector.broadcast %c15_i32_37 : i32 to vector<1x256xi32>
    %112 = arith.cmpi slt, %2, %111 : vector<1x256xi32>
    %113 = vector.shape_cast %112 : vector<1x256xi1> to vector<1x256xi1>
    %114 = vector.broadcast %113 : vector<1x256xi1> to vector<12x256xi1>
    %115 = arith.select %114, %109, %110 : vector<12x256xi1>, vector<12x256xf32>
    %c254_i32 = arith.constant 254 : i32
    %116 = tpu.dynamic_rotate %92 by %c254_i32 dim 1 : vector<12x256xf32>, i32 -> vector<12x256xf32>
    %c14_i32 = arith.constant 14 : i32
    %117 = tpu.dynamic_rotate %92 by %c14_i32 dim 1 : vector<12x256xf32>, i32 -> vector<12x256xf32>
    %c14_i32_38 = arith.constant 14 : i32
    %118 = vector.broadcast %c14_i32_38 : i32 to vector<1x256xi32>
    %119 = arith.cmpi slt, %2, %118 : vector<1x256xi32>
    %120 = vector.shape_cast %119 : vector<1x256xi1> to vector<1x256xi1>
    %121 = vector.broadcast %120 : vector<1x256xi1> to vector<12x256xi1>
    %122 = arith.select %121, %116, %117 : vector<12x256xi1>, vector<12x256xf32>
    %123 = vector.extract_strided_slice %94 {offsets = [0, 0], sizes = [12, 1], strides = [1, 1]} : vector<12x25xf32> to vector<12x1xf32>
    %c32_i32 = arith.constant 32 : i32
    %124 = tpu.dynamic_rotate %101 by %c32_i32 dim 1 : vector<12x256xf32>, i32 -> vector<12x256xf32>
    %125 = vector.broadcast %123 : vector<12x1xf32> to vector<12x256xf32>
    %126 = arith.mulf %125, %124 : vector<12x256xf32>
    %127 = vector.extract_strided_slice %94 {offsets = [0, 1], sizes = [12, 1], strides = [1, 1]} : vector<12x25xf32> to vector<12x1xf32>
    %c32_i32_39 = arith.constant 32 : i32
    %128 = tpu.dynamic_rotate %108 by %c32_i32_39 dim 1 : vector<12x256xf32>, i32 -> vector<12x256xf32>
    %129 = vector.broadcast %127 : vector<12x1xf32> to vector<12x256xf32>
    %130 = arith.mulf %129, %128 : vector<12x256xf32>
    %131 = arith.addf %126, %130 : vector<12x256xf32>
    %132 = vector.extract_strided_slice %94 {offsets = [0, 2], sizes = [12, 1], strides = [1, 1]} : vector<12x25xf32> to vector<12x1xf32>
    %c32_i32_40 = arith.constant 32 : i32
    %133 = tpu.dynamic_rotate %92 by %c32_i32_40 dim 1 : vector<12x256xf32>, i32 -> vector<12x256xf32>
    %134 = vector.broadcast %132 : vector<12x1xf32> to vector<12x256xf32>
    %135 = arith.mulf %134, %133 : vector<12x256xf32>
    %136 = arith.addf %131, %135 : vector<12x256xf32>
    %137 = vector.extract_strided_slice %94 {offsets = [0, 3], sizes = [12, 1], strides = [1, 1]} : vector<12x25xf32> to vector<12x1xf32>
    %c32_i32_41 = arith.constant 32 : i32
    %138 = tpu.dynamic_rotate %115 by %c32_i32_41 dim 1 : vector<12x256xf32>, i32 -> vector<12x256xf32>
    %139 = vector.broadcast %137 : vector<12x1xf32> to vector<12x256xf32>
    %140 = arith.mulf %139, %138 : vector<12x256xf32>
    %141 = arith.addf %136, %140 : vector<12x256xf32>
    %142 = vector.extract_strided_slice %94 {offsets = [0, 4], sizes = [12, 1], strides = [1, 1]} : vector<12x25xf32> to vector<12x1xf32>
    %c32_i32_42 = arith.constant 32 : i32
    %143 = tpu.dynamic_rotate %122 by %c32_i32_42 dim 1 : vector<12x256xf32>, i32 -> vector<12x256xf32>
    %144 = vector.broadcast %142 : vector<12x1xf32> to vector<12x256xf32>
    %145 = arith.mulf %144, %143 : vector<12x256xf32>
    %146 = arith.addf %141, %145 : vector<12x256xf32>
    %147 = vector.extract_strided_slice %94 {offsets = [0, 5], sizes = [12, 1], strides = [1, 1]} : vector<12x25xf32> to vector<12x1xf32>
    %c16_i32_43 = arith.constant 16 : i32
    %148 = tpu.dynamic_rotate %101 by %c16_i32_43 dim 1 : vector<12x256xf32>, i32 -> vector<12x256xf32>
    %149 = vector.broadcast %147 : vector<12x1xf32> to vector<12x256xf32>
    %150 = arith.mulf %149, %148 : vector<12x256xf32>
    %151 = arith.addf %146, %150 : vector<12x256xf32>
    %152 = vector.extract_strided_slice %94 {offsets = [0, 6], sizes = [12, 1], strides = [1, 1]} : vector<12x25xf32> to vector<12x1xf32>
    %c16_i32_44 = arith.constant 16 : i32
    %153 = tpu.dynamic_rotate %108 by %c16_i32_44 dim 1 : vector<12x256xf32>, i32 -> vector<12x256xf32>
    %154 = vector.broadcast %152 : vector<12x1xf32> to vector<12x256xf32>
    %155 = arith.mulf %154, %153 : vector<12x256xf32>
    %156 = arith.addf %151, %155 : vector<12x256xf32>
    %157 = vector.extract_strided_slice %94 {offsets = [0, 7], sizes = [12, 1], strides = [1, 1]} : vector<12x25xf32> to vector<12x1xf32>
    %c16_i32_45 = arith.constant 16 : i32
    %158 = tpu.dynamic_rotate %92 by %c16_i32_45 dim 1 : vector<12x256xf32>, i32 -> vector<12x256xf32>
    %159 = vector.broadcast %157 : vector<12x1xf32> to vector<12x256xf32>
    %160 = arith.mulf %159, %158 : vector<12x256xf32>
    %161 = arith.addf %156, %160 : vector<12x256xf32>
    %162 = vector.extract_strided_slice %94 {offsets = [0, 8], sizes = [12, 1], strides = [1, 1]} : vector<12x25xf32> to vector<12x1xf32>
    %c16_i32_46 = arith.constant 16 : i32
    %163 = tpu.dynamic_rotate %115 by %c16_i32_46 dim 1 : vector<12x256xf32>, i32 -> vector<12x256xf32>
    %164 = vector.broadcast %162 : vector<12x1xf32> to vector<12x256xf32>
    %165 = arith.mulf %164, %163 : vector<12x256xf32>
    %166 = arith.addf %161, %165 : vector<12x256xf32>
    %167 = vector.extract_strided_slice %94 {offsets = [0, 9], sizes = [12, 1], strides = [1, 1]} : vector<12x25xf32> to vector<12x1xf32>
    %c16_i32_47 = arith.constant 16 : i32
    %168 = tpu.dynamic_rotate %122 by %c16_i32_47 dim 1 : vector<12x256xf32>, i32 -> vector<12x256xf32>
    %169 = vector.broadcast %167 : vector<12x1xf32> to vector<12x256xf32>
    %170 = arith.mulf %169, %168 : vector<12x256xf32>
    %171 = arith.addf %166, %170 : vector<12x256xf32>
    %172 = vector.extract_strided_slice %94 {offsets = [0, 10], sizes = [12, 1], strides = [1, 1]} : vector<12x25xf32> to vector<12x1xf32>
    %173 = vector.broadcast %172 : vector<12x1xf32> to vector<12x256xf32>
    %174 = arith.mulf %173, %101 : vector<12x256xf32>
    %175 = arith.addf %171, %174 : vector<12x256xf32>
    %176 = vector.extract_strided_slice %94 {offsets = [0, 11], sizes = [12, 1], strides = [1, 1]} : vector<12x25xf32> to vector<12x1xf32>
    %177 = vector.broadcast %176 : vector<12x1xf32> to vector<12x256xf32>
    %178 = arith.mulf %177, %108 : vector<12x256xf32>
    %179 = arith.addf %175, %178 : vector<12x256xf32>
    %180 = vector.extract_strided_slice %94 {offsets = [0, 12], sizes = [12, 1], strides = [1, 1]} : vector<12x25xf32> to vector<12x1xf32>
    %181 = vector.broadcast %180 : vector<12x1xf32> to vector<12x256xf32>
    %182 = arith.mulf %181, %92 : vector<12x256xf32>
    %183 = arith.addf %179, %182 : vector<12x256xf32>
    %184 = vector.extract_strided_slice %94 {offsets = [0, 13], sizes = [12, 1], strides = [1, 1]} : vector<12x25xf32> to vector<12x1xf32>
    %185 = vector.broadcast %184 : vector<12x1xf32> to vector<12x256xf32>
    %186 = arith.mulf %185, %115 : vector<12x256xf32>
    %187 = arith.addf %183, %186 : vector<12x256xf32>
    %188 = vector.extract_strided_slice %94 {offsets = [0, 14], sizes = [12, 1], strides = [1, 1]} : vector<12x25xf32> to vector<12x1xf32>
    %189 = vector.broadcast %188 : vector<12x1xf32> to vector<12x256xf32>
    %190 = arith.mulf %189, %122 : vector<12x256xf32>
    %191 = arith.addf %187, %190 : vector<12x256xf32>
    %192 = vector.extract_strided_slice %94 {offsets = [0, 15], sizes = [12, 1], strides = [1, 1]} : vector<12x25xf32> to vector<12x1xf32>
    %c240_i32_48 = arith.constant 240 : i32
    %193 = tpu.dynamic_rotate %101 by %c240_i32_48 dim 1 : vector<12x256xf32>, i32 -> vector<12x256xf32>
    %194 = vector.broadcast %192 : vector<12x1xf32> to vector<12x256xf32>
    %195 = arith.mulf %194, %193 : vector<12x256xf32>
    %196 = arith.addf %191, %195 : vector<12x256xf32>
    %197 = vector.extract_strided_slice %94 {offsets = [0, 16], sizes = [12, 1], strides = [1, 1]} : vector<12x25xf32> to vector<12x1xf32>
    %c240_i32_49 = arith.constant 240 : i32
    %198 = tpu.dynamic_rotate %108 by %c240_i32_49 dim 1 : vector<12x256xf32>, i32 -> vector<12x256xf32>
    %199 = vector.broadcast %197 : vector<12x1xf32> to vector<12x256xf32>
    %200 = arith.mulf %199, %198 : vector<12x256xf32>
    %201 = arith.addf %196, %200 : vector<12x256xf32>
    %202 = vector.extract_strided_slice %94 {offsets = [0, 17], sizes = [12, 1], strides = [1, 1]} : vector<12x25xf32> to vector<12x1xf32>
    %c240_i32_50 = arith.constant 240 : i32
    %203 = tpu.dynamic_rotate %92 by %c240_i32_50 dim 1 : vector<12x256xf32>, i32 -> vector<12x256xf32>
    %204 = vector.broadcast %202 : vector<12x1xf32> to vector<12x256xf32>
    %205 = arith.mulf %204, %203 : vector<12x256xf32>
    %206 = arith.addf %201, %205 : vector<12x256xf32>
    %207 = vector.extract_strided_slice %94 {offsets = [0, 18], sizes = [12, 1], strides = [1, 1]} : vector<12x25xf32> to vector<12x1xf32>
    %c240_i32_51 = arith.constant 240 : i32
    %208 = tpu.dynamic_rotate %115 by %c240_i32_51 dim 1 : vector<12x256xf32>, i32 -> vector<12x256xf32>
    %209 = vector.broadcast %207 : vector<12x1xf32> to vector<12x256xf32>
    %210 = arith.mulf %209, %208 : vector<12x256xf32>
    %211 = arith.addf %206, %210 : vector<12x256xf32>
    %212 = vector.extract_strided_slice %94 {offsets = [0, 19], sizes = [12, 1], strides = [1, 1]} : vector<12x25xf32> to vector<12x1xf32>
    %c240_i32_52 = arith.constant 240 : i32
    %213 = tpu.dynamic_rotate %122 by %c240_i32_52 dim 1 : vector<12x256xf32>, i32 -> vector<12x256xf32>
    %214 = vector.broadcast %212 : vector<12x1xf32> to vector<12x256xf32>
    %215 = arith.mulf %214, %213 : vector<12x256xf32>
    %216 = arith.addf %211, %215 : vector<12x256xf32>
    %217 = vector.extract_strided_slice %94 {offsets = [0, 20], sizes = [12, 1], strides = [1, 1]} : vector<12x25xf32> to vector<12x1xf32>
    %c224_i32 = arith.constant 224 : i32
    %218 = tpu.dynamic_rotate %101 by %c224_i32 dim 1 : vector<12x256xf32>, i32 -> vector<12x256xf32>
    %219 = vector.broadcast %217 : vector<12x1xf32> to vector<12x256xf32>
    %220 = arith.mulf %219, %218 : vector<12x256xf32>
    %221 = arith.addf %216, %220 : vector<12x256xf32>
    %222 = vector.extract_strided_slice %94 {offsets = [0, 21], sizes = [12, 1], strides = [1, 1]} : vector<12x25xf32> to vector<12x1xf32>
    %c224_i32_53 = arith.constant 224 : i32
    %223 = tpu.dynamic_rotate %108 by %c224_i32_53 dim 1 : vector<12x256xf32>, i32 -> vector<12x256xf32>
    %224 = vector.broadcast %222 : vector<12x1xf32> to vector<12x256xf32>
    %225 = arith.mulf %224, %223 : vector<12x256xf32>
    %226 = arith.addf %221, %225 : vector<12x256xf32>
    %227 = vector.extract_strided_slice %94 {offsets = [0, 22], sizes = [12, 1], strides = [1, 1]} : vector<12x25xf32> to vector<12x1xf32>
    %c224_i32_54 = arith.constant 224 : i32
    %228 = tpu.dynamic_rotate %92 by %c224_i32_54 dim 1 : vector<12x256xf32>, i32 -> vector<12x256xf32>
    %229 = vector.broadcast %227 : vector<12x1xf32> to vector<12x256xf32>
    %230 = arith.mulf %229, %228 : vector<12x256xf32>
    %231 = arith.addf %226, %230 : vector<12x256xf32>
    %232 = vector.extract_strided_slice %94 {offsets = [0, 23], sizes = [12, 1], strides = [1, 1]} : vector<12x25xf32> to vector<12x1xf32>
    %c224_i32_55 = arith.constant 224 : i32
    %233 = tpu.dynamic_rotate %115 by %c224_i32_55 dim 1 : vector<12x256xf32>, i32 -> vector<12x256xf32>
    %234 = vector.broadcast %232 : vector<12x1xf32> to vector<12x256xf32>
    %235 = arith.mulf %234, %233 : vector<12x256xf32>
    %236 = arith.addf %231, %235 : vector<12x256xf32>
    %237 = vector.extract_strided_slice %94 {offsets = [0, 24], sizes = [12, 1], strides = [1, 1]} : vector<12x25xf32> to vector<12x1xf32>
    %c224_i32_56 = arith.constant 224 : i32
    %238 = tpu.dynamic_rotate %122 by %c224_i32_56 dim 1 : vector<12x256xf32>, i32 -> vector<12x256xf32>
    %239 = vector.broadcast %237 : vector<12x1xf32> to vector<12x256xf32>
    %240 = arith.mulf %239, %238 : vector<12x256xf32>
    %241 = arith.addf %236, %240 : vector<12x256xf32>
    %242 = vector.extract_strided_slice %3 {offsets = [0, 3], sizes = [12, 1], strides = [1, 1]} : vector<48x18xf32> to vector<12x1xf32>
    %243 = vector.broadcast %242 : vector<12x1xf32> to vector<12x256xf32>
    %244 = arith.addf %241, %243 : vector<12x256xf32>
    %245 = vector.extract_strided_slice %3 {offsets = [0, 4], sizes = [12, 1], strides = [1, 1]} : vector<48x18xf32> to vector<12x1xf32>
    %246 = vector.extract_strided_slice %3 {offsets = [0, 5], sizes = [12, 1], strides = [1, 1]} : vector<48x18xf32> to vector<12x1xf32>
    %247 = tpu.iota {dimensions = array<i32: 0>} : vector<12x1xi32>
    %248 = vector.extract_strided_slice %244 {offsets = [0, 0], sizes = [6, 256], strides = [1, 1]} : vector<12x256xf32> to vector<6x256xf32>
    %249 = vector.shape_cast %248 : vector<6x256xf32> to vector<1x6x256xf32>
    %cst_57 = arith.constant dense<0.000000e+00> : vector<1xf32>
    %250 = vector.multi_reduction <add>, %249, %cst_57 [1, 2] : vector<1x6x256xf32> to vector<1xf32>
    %251 = vector.shape_cast %250 : vector<1xf32> to vector<1x1x1xf32>
    %252 = vector.extract %251[0, 0, 0] : f32 from vector<1x1x1xf32>
    %cst_58 = arith.constant 1.536000e+03 : f32
    %253 = arith.divf %252, %cst_58 : f32
    %254 = vector.extract_strided_slice %244 {offsets = [6, 0], sizes = [6, 256], strides = [1, 1]} : vector<12x256xf32> to vector<6x256xf32>
    %255 = vector.shape_cast %254 : vector<6x256xf32> to vector<1x6x256xf32>
    %cst_59 = arith.constant dense<0.000000e+00> : vector<1xf32>
    %256 = vector.multi_reduction <add>, %255, %cst_59 [1, 2] : vector<1x6x256xf32> to vector<1xf32>
    %257 = vector.shape_cast %256 : vector<1xf32> to vector<1x1x1xf32>
    %258 = vector.extract %257[0, 0, 0] : f32 from vector<1x1x1xf32>
    %cst_60 = arith.constant 1.536000e+03 : f32
    %259 = arith.divf %258, %cst_60 : f32
    %c6_i32_61 = arith.constant 6 : i32
    %260 = vector.broadcast %c6_i32_61 : i32 to vector<12x1xi32>
    %261 = arith.cmpi slt, %247, %260 : vector<12x1xi32>
    %262 = vector.broadcast %253 : f32 to vector<12x1xf32>
    %263 = vector.broadcast %259 : f32 to vector<12x1xf32>
    %264 = arith.select %261, %262, %263 : vector<12x1xi1>, vector<12x1xf32>
    %265 = vector.broadcast %264 : vector<12x1xf32> to vector<12x256xf32>
    %266 = arith.subf %244, %265 : vector<12x256xf32>
    %267 = vector.extract_strided_slice %266 {offsets = [0, 0], sizes = [6, 256], strides = [1, 1]} : vector<12x256xf32> to vector<6x256xf32>
    %268 = arith.mulf %267, %267 : vector<6x256xf32>
    %269 = vector.shape_cast %268 : vector<6x256xf32> to vector<1x6x256xf32>
    %cst_62 = arith.constant dense<0.000000e+00> : vector<1xf32>
    %270 = vector.multi_reduction <add>, %269, %cst_62 [1, 2] : vector<1x6x256xf32> to vector<1xf32>
    %271 = vector.shape_cast %270 : vector<1xf32> to vector<1x1x1xf32>
    %272 = vector.extract %271[0, 0, 0] : f32 from vector<1x1x1xf32>
    %cst_63 = arith.constant 1.536000e+03 : f32
    %273 = arith.divf %272, %cst_63 : f32
    %274 = vector.extract_strided_slice %266 {offsets = [6, 0], sizes = [6, 256], strides = [1, 1]} : vector<12x256xf32> to vector<6x256xf32>
    %275 = arith.mulf %274, %274 : vector<6x256xf32>
    %276 = vector.shape_cast %275 : vector<6x256xf32> to vector<1x6x256xf32>
    %cst_64 = arith.constant dense<0.000000e+00> : vector<1xf32>
    %277 = vector.multi_reduction <add>, %276, %cst_64 [1, 2] : vector<1x6x256xf32> to vector<1xf32>
    %278 = vector.shape_cast %277 : vector<1xf32> to vector<1x1x1xf32>
    %279 = vector.extract %278[0, 0, 0] : f32 from vector<1x1x1xf32>
    %cst_65 = arith.constant 1.536000e+03 : f32
    %280 = arith.divf %279, %cst_65 : f32
    %c6_i32_66 = arith.constant 6 : i32
    %281 = vector.broadcast %c6_i32_66 : i32 to vector<12x1xi32>
    %282 = arith.cmpi slt, %247, %281 : vector<12x1xi32>
    %cst_67 = arith.constant 9.99999974E-6 : f32
    %283 = arith.addf %273, %cst_67 : f32
    %284 = math.rsqrt %283 : f32
    %cst_68 = arith.constant 9.99999974E-6 : f32
    %285 = arith.addf %280, %cst_68 : f32
    %286 = math.rsqrt %285 : f32
    %287 = vector.broadcast %284 : f32 to vector<12x1xf32>
    %288 = vector.broadcast %286 : f32 to vector<12x1xf32>
    %289 = arith.select %282, %287, %288 : vector<12x1xi1>, vector<12x1xf32>
    %290 = vector.broadcast %289 : vector<12x1xf32> to vector<12x256xf32>
    %291 = arith.mulf %266, %290 : vector<12x256xf32>
    %292 = vector.broadcast %245 : vector<12x1xf32> to vector<12x256xf32>
    %293 = arith.mulf %291, %292 : vector<12x256xf32>
    %294 = vector.broadcast %246 : vector<12x1xf32> to vector<12x256xf32>
    %295 = arith.addf %293, %294 : vector<12x256xf32>
    %c0_69 = arith.constant 0 : index
    %c0_70 = arith.constant 0 : index
    %c0_71 = arith.constant 0 : index
    %296 = vector.load %arg6[%c0_69, %c0_70, %c0_71] : memref<2x48x12xf32, #tpu.memory_space<vmem>>, vector<1x48x12xf32>
    %297 = vector.shape_cast %296 : vector<1x48x12xf32> to vector<48x12xf32>
    %cst_72 = arith.constant dense<0.000000e+00> : vector<48x256xf32>
    %298 = tpu.matmul %297, %295, %cst_72 {dimension_numbers = #tpu.dot_dimension_numbers<[1], [0], [0], [1], [0, 0, 1, 1], [], []>} : vector<48x12xf32>, vector<12x256xf32>, vector<48x256xf32> -> vector<48x256xf32>
    %299 = vector.extract_strided_slice %3 {offsets = [0, 6], sizes = [48, 1], strides = [1, 1]} : vector<48x18xf32> to vector<48x1xf32>
    %300 = vector.broadcast %299 : vector<48x1xf32> to vector<48x256xf32>
    %301 = arith.addf %298, %300 : vector<48x256xf32>
    %cst_73 = arith.constant 0.000000e+00 : f32
    %302 = vector.broadcast %cst_73 : f32 to vector<48x256xf32>
    %303 = arith.maximumf %301, %302 : vector<48x256xf32>
    %304 = math.absf %301 : vector<48x256xf32>
    %cst_74 = arith.constant 0.000000e+00 : f32
    %305 = vector.broadcast %cst_74 : f32 to vector<48x256xf32>
    %306 = arith.subf %305, %304 : vector<48x256xf32>
    %307 = math.exp %306 : vector<48x256xf32>
    %cst_75 = arith.constant 1.000000e+00 : f32
    %308 = vector.broadcast %cst_75 : f32 to vector<48x256xf32>
    %309 = arith.addf %308, %307 : vector<48x256xf32>
    %310 = math.log %309 : vector<48x256xf32>
    %311 = arith.addf %303, %310 : vector<48x256xf32>
    %312 = math.tanh %311 : vector<48x256xf32>
    %313 = arith.mulf %301, %312 : vector<48x256xf32>
    %c0_76 = arith.constant 0 : index
    %c0_77 = arith.constant 0 : index
    %c0_78 = arith.constant 0 : index
    %314 = vector.load %arg7[%c0_76, %c0_77, %c0_78] : memref<2x12x48xf32, #tpu.memory_space<vmem>>, vector<1x12x48xf32>
    %315 = vector.shape_cast %314 : vector<1x12x48xf32> to vector<12x48xf32>
    %cst_79 = arith.constant dense<0.000000e+00> : vector<12x256xf32>
    %316 = tpu.matmul %315, %313, %cst_79 {dimension_numbers = #tpu.dot_dimension_numbers<[1], [0], [0], [1], [0, 0, 1, 1], [], []>} : vector<12x48xf32>, vector<48x256xf32>, vector<12x256xf32> -> vector<12x256xf32>
    %317 = vector.extract_strided_slice %3 {offsets = [0, 7], sizes = [12, 1], strides = [1, 1]} : vector<48x18xf32> to vector<12x1xf32>
    %318 = vector.broadcast %317 : vector<12x1xf32> to vector<12x256xf32>
    %319 = arith.addf %316, %318 : vector<12x256xf32>
    %320 = vector.extract_strided_slice %3 {offsets = [0, 8], sizes = [12, 1], strides = [1, 1]} : vector<48x18xf32> to vector<12x1xf32>
    %321 = vector.broadcast %320 : vector<12x1xf32> to vector<12x256xf32>
    %322 = arith.mulf %321, %319 : vector<12x256xf32>
    %323 = arith.addf %92, %322 : vector<12x256xf32>
    %c1 = arith.constant 1 : index
    %c0_80 = arith.constant 0 : index
    %c0_81 = arith.constant 0 : index
    %324 = vector.load %arg5[%c1, %c0_80, %c0_81] : memref<2x12x25xf32, #tpu.memory_space<vmem>>, vector<1x12x25xf32>
    %325 = vector.shape_cast %324 : vector<1x12x25xf32> to vector<12x25xf32>
    %c2_i32_82 = arith.constant 2 : i32
    %326 = tpu.dynamic_rotate %323 by %c2_i32_82 dim 1 : vector<12x256xf32>, i32 -> vector<12x256xf32>
    %c242_i32_83 = arith.constant 242 : i32
    %327 = tpu.dynamic_rotate %323 by %c242_i32_83 dim 1 : vector<12x256xf32>, i32 -> vector<12x256xf32>
    %c2_i32_84 = arith.constant 2 : i32
    %328 = vector.broadcast %c2_i32_84 : i32 to vector<1x256xi32>
    %329 = arith.cmpi sge, %2, %328 : vector<1x256xi32>
    %330 = vector.shape_cast %329 : vector<1x256xi1> to vector<1x256xi1>
    %331 = vector.broadcast %330 : vector<1x256xi1> to vector<12x256xi1>
    %332 = arith.select %331, %326, %327 : vector<12x256xi1>, vector<12x256xf32>
    %c1_i32_85 = arith.constant 1 : i32
    %333 = tpu.dynamic_rotate %323 by %c1_i32_85 dim 1 : vector<12x256xf32>, i32 -> vector<12x256xf32>
    %c241_i32_86 = arith.constant 241 : i32
    %334 = tpu.dynamic_rotate %323 by %c241_i32_86 dim 1 : vector<12x256xf32>, i32 -> vector<12x256xf32>
    %c1_i32_87 = arith.constant 1 : i32
    %335 = vector.broadcast %c1_i32_87 : i32 to vector<1x256xi32>
    %336 = arith.cmpi sge, %2, %335 : vector<1x256xi32>
    %337 = vector.shape_cast %336 : vector<1x256xi1> to vector<1x256xi1>
    %338 = vector.broadcast %337 : vector<1x256xi1> to vector<12x256xi1>
    %339 = arith.select %338, %333, %334 : vector<12x256xi1>, vector<12x256xf32>
    %c255_i32_88 = arith.constant 255 : i32
    %340 = tpu.dynamic_rotate %323 by %c255_i32_88 dim 1 : vector<12x256xf32>, i32 -> vector<12x256xf32>
    %c15_i32_89 = arith.constant 15 : i32
    %341 = tpu.dynamic_rotate %323 by %c15_i32_89 dim 1 : vector<12x256xf32>, i32 -> vector<12x256xf32>
    %c15_i32_90 = arith.constant 15 : i32
    %342 = vector.broadcast %c15_i32_90 : i32 to vector<1x256xi32>
    %343 = arith.cmpi slt, %2, %342 : vector<1x256xi32>
    %344 = vector.shape_cast %343 : vector<1x256xi1> to vector<1x256xi1>
    %345 = vector.broadcast %344 : vector<1x256xi1> to vector<12x256xi1>
    %346 = arith.select %345, %340, %341 : vector<12x256xi1>, vector<12x256xf32>
    %c254_i32_91 = arith.constant 254 : i32
    %347 = tpu.dynamic_rotate %323 by %c254_i32_91 dim 1 : vector<12x256xf32>, i32 -> vector<12x256xf32>
    %c14_i32_92 = arith.constant 14 : i32
    %348 = tpu.dynamic_rotate %323 by %c14_i32_92 dim 1 : vector<12x256xf32>, i32 -> vector<12x256xf32>
    %c14_i32_93 = arith.constant 14 : i32
    %349 = vector.broadcast %c14_i32_93 : i32 to vector<1x256xi32>
    %350 = arith.cmpi slt, %2, %349 : vector<1x256xi32>
    %351 = vector.shape_cast %350 : vector<1x256xi1> to vector<1x256xi1>
    %352 = vector.broadcast %351 : vector<1x256xi1> to vector<12x256xi1>
    %353 = arith.select %352, %347, %348 : vector<12x256xi1>, vector<12x256xf32>
    %354 = vector.extract_strided_slice %325 {offsets = [0, 0], sizes = [12, 1], strides = [1, 1]} : vector<12x25xf32> to vector<12x1xf32>
    %c32_i32_94 = arith.constant 32 : i32
    %355 = tpu.dynamic_rotate %332 by %c32_i32_94 dim 1 : vector<12x256xf32>, i32 -> vector<12x256xf32>
    %356 = vector.broadcast %354 : vector<12x1xf32> to vector<12x256xf32>
    %357 = arith.mulf %356, %355 : vector<12x256xf32>
    %358 = vector.extract_strided_slice %325 {offsets = [0, 1], sizes = [12, 1], strides = [1, 1]} : vector<12x25xf32> to vector<12x1xf32>
    %c32_i32_95 = arith.constant 32 : i32
    %359 = tpu.dynamic_rotate %339 by %c32_i32_95 dim 1 : vector<12x256xf32>, i32 -> vector<12x256xf32>
    %360 = vector.broadcast %358 : vector<12x1xf32> to vector<12x256xf32>
    %361 = arith.mulf %360, %359 : vector<12x256xf32>
    %362 = arith.addf %357, %361 : vector<12x256xf32>
    %363 = vector.extract_strided_slice %325 {offsets = [0, 2], sizes = [12, 1], strides = [1, 1]} : vector<12x25xf32> to vector<12x1xf32>
    %c32_i32_96 = arith.constant 32 : i32
    %364 = tpu.dynamic_rotate %323 by %c32_i32_96 dim 1 : vector<12x256xf32>, i32 -> vector<12x256xf32>
    %365 = vector.broadcast %363 : vector<12x1xf32> to vector<12x256xf32>
    %366 = arith.mulf %365, %364 : vector<12x256xf32>
    %367 = arith.addf %362, %366 : vector<12x256xf32>
    %368 = vector.extract_strided_slice %325 {offsets = [0, 3], sizes = [12, 1], strides = [1, 1]} : vector<12x25xf32> to vector<12x1xf32>
    %c32_i32_97 = arith.constant 32 : i32
    %369 = tpu.dynamic_rotate %346 by %c32_i32_97 dim 1 : vector<12x256xf32>, i32 -> vector<12x256xf32>
    %370 = vector.broadcast %368 : vector<12x1xf32> to vector<12x256xf32>
    %371 = arith.mulf %370, %369 : vector<12x256xf32>
    %372 = arith.addf %367, %371 : vector<12x256xf32>
    %373 = vector.extract_strided_slice %325 {offsets = [0, 4], sizes = [12, 1], strides = [1, 1]} : vector<12x25xf32> to vector<12x1xf32>
    %c32_i32_98 = arith.constant 32 : i32
    %374 = tpu.dynamic_rotate %353 by %c32_i32_98 dim 1 : vector<12x256xf32>, i32 -> vector<12x256xf32>
    %375 = vector.broadcast %373 : vector<12x1xf32> to vector<12x256xf32>
    %376 = arith.mulf %375, %374 : vector<12x256xf32>
    %377 = arith.addf %372, %376 : vector<12x256xf32>
    %378 = vector.extract_strided_slice %325 {offsets = [0, 5], sizes = [12, 1], strides = [1, 1]} : vector<12x25xf32> to vector<12x1xf32>
    %c16_i32_99 = arith.constant 16 : i32
    %379 = tpu.dynamic_rotate %332 by %c16_i32_99 dim 1 : vector<12x256xf32>, i32 -> vector<12x256xf32>
    %380 = vector.broadcast %378 : vector<12x1xf32> to vector<12x256xf32>
    %381 = arith.mulf %380, %379 : vector<12x256xf32>
    %382 = arith.addf %377, %381 : vector<12x256xf32>
    %383 = vector.extract_strided_slice %325 {offsets = [0, 6], sizes = [12, 1], strides = [1, 1]} : vector<12x25xf32> to vector<12x1xf32>
    %c16_i32_100 = arith.constant 16 : i32
    %384 = tpu.dynamic_rotate %339 by %c16_i32_100 dim 1 : vector<12x256xf32>, i32 -> vector<12x256xf32>
    %385 = vector.broadcast %383 : vector<12x1xf32> to vector<12x256xf32>
    %386 = arith.mulf %385, %384 : vector<12x256xf32>
    %387 = arith.addf %382, %386 : vector<12x256xf32>
    %388 = vector.extract_strided_slice %325 {offsets = [0, 7], sizes = [12, 1], strides = [1, 1]} : vector<12x25xf32> to vector<12x1xf32>
    %c16_i32_101 = arith.constant 16 : i32
    %389 = tpu.dynamic_rotate %323 by %c16_i32_101 dim 1 : vector<12x256xf32>, i32 -> vector<12x256xf32>
    %390 = vector.broadcast %388 : vector<12x1xf32> to vector<12x256xf32>
    %391 = arith.mulf %390, %389 : vector<12x256xf32>
    %392 = arith.addf %387, %391 : vector<12x256xf32>
    %393 = vector.extract_strided_slice %325 {offsets = [0, 8], sizes = [12, 1], strides = [1, 1]} : vector<12x25xf32> to vector<12x1xf32>
    %c16_i32_102 = arith.constant 16 : i32
    %394 = tpu.dynamic_rotate %346 by %c16_i32_102 dim 1 : vector<12x256xf32>, i32 -> vector<12x256xf32>
    %395 = vector.broadcast %393 : vector<12x1xf32> to vector<12x256xf32>
    %396 = arith.mulf %395, %394 : vector<12x256xf32>
    %397 = arith.addf %392, %396 : vector<12x256xf32>
    %398 = vector.extract_strided_slice %325 {offsets = [0, 9], sizes = [12, 1], strides = [1, 1]} : vector<12x25xf32> to vector<12x1xf32>
    %c16_i32_103 = arith.constant 16 : i32
    %399 = tpu.dynamic_rotate %353 by %c16_i32_103 dim 1 : vector<12x256xf32>, i32 -> vector<12x256xf32>
    %400 = vector.broadcast %398 : vector<12x1xf32> to vector<12x256xf32>
    %401 = arith.mulf %400, %399 : vector<12x256xf32>
    %402 = arith.addf %397, %401 : vector<12x256xf32>
    %403 = vector.extract_strided_slice %325 {offsets = [0, 10], sizes = [12, 1], strides = [1, 1]} : vector<12x25xf32> to vector<12x1xf32>
    %404 = vector.broadcast %403 : vector<12x1xf32> to vector<12x256xf32>
    %405 = arith.mulf %404, %332 : vector<12x256xf32>
    %406 = arith.addf %402, %405 : vector<12x256xf32>
    %407 = vector.extract_strided_slice %325 {offsets = [0, 11], sizes = [12, 1], strides = [1, 1]} : vector<12x25xf32> to vector<12x1xf32>
    %408 = vector.broadcast %407 : vector<12x1xf32> to vector<12x256xf32>
    %409 = arith.mulf %408, %339 : vector<12x256xf32>
    %410 = arith.addf %406, %409 : vector<12x256xf32>
    %411 = vector.extract_strided_slice %325 {offsets = [0, 12], sizes = [12, 1], strides = [1, 1]} : vector<12x25xf32> to vector<12x1xf32>
    %412 = vector.broadcast %411 : vector<12x1xf32> to vector<12x256xf32>
    %413 = arith.mulf %412, %323 : vector<12x256xf32>
    %414 = arith.addf %410, %413 : vector<12x256xf32>
    %415 = vector.extract_strided_slice %325 {offsets = [0, 13], sizes = [12, 1], strides = [1, 1]} : vector<12x25xf32> to vector<12x1xf32>
    %416 = vector.broadcast %415 : vector<12x1xf32> to vector<12x256xf32>
    %417 = arith.mulf %416, %346 : vector<12x256xf32>
    %418 = arith.addf %414, %417 : vector<12x256xf32>
    %419 = vector.extract_strided_slice %325 {offsets = [0, 14], sizes = [12, 1], strides = [1, 1]} : vector<12x25xf32> to vector<12x1xf32>
    %420 = vector.broadcast %419 : vector<12x1xf32> to vector<12x256xf32>
    %421 = arith.mulf %420, %353 : vector<12x256xf32>
    %422 = arith.addf %418, %421 : vector<12x256xf32>
    %423 = vector.extract_strided_slice %325 {offsets = [0, 15], sizes = [12, 1], strides = [1, 1]} : vector<12x25xf32> to vector<12x1xf32>
    %c240_i32_104 = arith.constant 240 : i32
    %424 = tpu.dynamic_rotate %332 by %c240_i32_104 dim 1 : vector<12x256xf32>, i32 -> vector<12x256xf32>
    %425 = vector.broadcast %423 : vector<12x1xf32> to vector<12x256xf32>
    %426 = arith.mulf %425, %424 : vector<12x256xf32>
    %427 = arith.addf %422, %426 : vector<12x256xf32>
    %428 = vector.extract_strided_slice %325 {offsets = [0, 16], sizes = [12, 1], strides = [1, 1]} : vector<12x25xf32> to vector<12x1xf32>
    %c240_i32_105 = arith.constant 240 : i32
    %429 = tpu.dynamic_rotate %339 by %c240_i32_105 dim 1 : vector<12x256xf32>, i32 -> vector<12x256xf32>
    %430 = vector.broadcast %428 : vector<12x1xf32> to vector<12x256xf32>
    %431 = arith.mulf %430, %429 : vector<12x256xf32>
    %432 = arith.addf %427, %431 : vector<12x256xf32>
    %433 = vector.extract_strided_slice %325 {offsets = [0, 17], sizes = [12, 1], strides = [1, 1]} : vector<12x25xf32> to vector<12x1xf32>
    %c240_i32_106 = arith.constant 240 : i32
    %434 = tpu.dynamic_rotate %323 by %c240_i32_106 dim 1 : vector<12x256xf32>, i32 -> vector<12x256xf32>
    %435 = vector.broadcast %433 : vector<12x1xf32> to vector<12x256xf32>
    %436 = arith.mulf %435, %434 : vector<12x256xf32>
    %437 = arith.addf %432, %436 : vector<12x256xf32>
    %438 = vector.extract_strided_slice %325 {offsets = [0, 18], sizes = [12, 1], strides = [1, 1]} : vector<12x25xf32> to vector<12x1xf32>
    %c240_i32_107 = arith.constant 240 : i32
    %439 = tpu.dynamic_rotate %346 by %c240_i32_107 dim 1 : vector<12x256xf32>, i32 -> vector<12x256xf32>
    %440 = vector.broadcast %438 : vector<12x1xf32> to vector<12x256xf32>
    %441 = arith.mulf %440, %439 : vector<12x256xf32>
    %442 = arith.addf %437, %441 : vector<12x256xf32>
    %443 = vector.extract_strided_slice %325 {offsets = [0, 19], sizes = [12, 1], strides = [1, 1]} : vector<12x25xf32> to vector<12x1xf32>
    %c240_i32_108 = arith.constant 240 : i32
    %444 = tpu.dynamic_rotate %353 by %c240_i32_108 dim 1 : vector<12x256xf32>, i32 -> vector<12x256xf32>
    %445 = vector.broadcast %443 : vector<12x1xf32> to vector<12x256xf32>
    %446 = arith.mulf %445, %444 : vector<12x256xf32>
    %447 = arith.addf %442, %446 : vector<12x256xf32>
    %448 = vector.extract_strided_slice %325 {offsets = [0, 20], sizes = [12, 1], strides = [1, 1]} : vector<12x25xf32> to vector<12x1xf32>
    %c224_i32_109 = arith.constant 224 : i32
    %449 = tpu.dynamic_rotate %332 by %c224_i32_109 dim 1 : vector<12x256xf32>, i32 -> vector<12x256xf32>
    %450 = vector.broadcast %448 : vector<12x1xf32> to vector<12x256xf32>
    %451 = arith.mulf %450, %449 : vector<12x256xf32>
    %452 = arith.addf %447, %451 : vector<12x256xf32>
    %453 = vector.extract_strided_slice %325 {offsets = [0, 21], sizes = [12, 1], strides = [1, 1]} : vector<12x25xf32> to vector<12x1xf32>
    %c224_i32_110 = arith.constant 224 : i32
    %454 = tpu.dynamic_rotate %339 by %c224_i32_110 dim 1 : vector<12x256xf32>, i32 -> vector<12x256xf32>
    %455 = vector.broadcast %453 : vector<12x1xf32> to vector<12x256xf32>
    %456 = arith.mulf %455, %454 : vector<12x256xf32>
    %457 = arith.addf %452, %456 : vector<12x256xf32>
    %458 = vector.extract_strided_slice %325 {offsets = [0, 22], sizes = [12, 1], strides = [1, 1]} : vector<12x25xf32> to vector<12x1xf32>
    %c224_i32_111 = arith.constant 224 : i32
    %459 = tpu.dynamic_rotate %323 by %c224_i32_111 dim 1 : vector<12x256xf32>, i32 -> vector<12x256xf32>
    %460 = vector.broadcast %458 : vector<12x1xf32> to vector<12x256xf32>
    %461 = arith.mulf %460, %459 : vector<12x256xf32>
    %462 = arith.addf %457, %461 : vector<12x256xf32>
    %463 = vector.extract_strided_slice %325 {offsets = [0, 23], sizes = [12, 1], strides = [1, 1]} : vector<12x25xf32> to vector<12x1xf32>
    %c224_i32_112 = arith.constant 224 : i32
    %464 = tpu.dynamic_rotate %346 by %c224_i32_112 dim 1 : vector<12x256xf32>, i32 -> vector<12x256xf32>
    %465 = vector.broadcast %463 : vector<12x1xf32> to vector<12x256xf32>
    %466 = arith.mulf %465, %464 : vector<12x256xf32>
    %467 = arith.addf %462, %466 : vector<12x256xf32>
    %468 = vector.extract_strided_slice %325 {offsets = [0, 24], sizes = [12, 1], strides = [1, 1]} : vector<12x25xf32> to vector<12x1xf32>
    %c224_i32_113 = arith.constant 224 : i32
    %469 = tpu.dynamic_rotate %353 by %c224_i32_113 dim 1 : vector<12x256xf32>, i32 -> vector<12x256xf32>
    %470 = vector.broadcast %468 : vector<12x1xf32> to vector<12x256xf32>
    %471 = arith.mulf %470, %469 : vector<12x256xf32>
    %472 = arith.addf %467, %471 : vector<12x256xf32>
    %473 = vector.extract_strided_slice %3 {offsets = [0, 9], sizes = [12, 1], strides = [1, 1]} : vector<48x18xf32> to vector<12x1xf32>
    %474 = vector.broadcast %473 : vector<12x1xf32> to vector<12x256xf32>
    %475 = arith.addf %472, %474 : vector<12x256xf32>
    %476 = vector.extract_strided_slice %3 {offsets = [0, 10], sizes = [12, 1], strides = [1, 1]} : vector<48x18xf32> to vector<12x1xf32>
    %477 = vector.extract_strided_slice %3 {offsets = [0, 11], sizes = [12, 1], strides = [1, 1]} : vector<48x18xf32> to vector<12x1xf32>
    %478 = tpu.iota {dimensions = array<i32: 0>} : vector<12x1xi32>
    %479 = vector.extract_strided_slice %475 {offsets = [0, 0], sizes = [6, 256], strides = [1, 1]} : vector<12x256xf32> to vector<6x256xf32>
    %480 = vector.shape_cast %479 : vector<6x256xf32> to vector<1x6x256xf32>
    %cst_114 = arith.constant dense<0.000000e+00> : vector<1xf32>
    %481 = vector.multi_reduction <add>, %480, %cst_114 [1, 2] : vector<1x6x256xf32> to vector<1xf32>
    %482 = vector.shape_cast %481 : vector<1xf32> to vector<1x1x1xf32>
    %483 = vector.extract %482[0, 0, 0] : f32 from vector<1x1x1xf32>
    %cst_115 = arith.constant 1.536000e+03 : f32
    %484 = arith.divf %483, %cst_115 : f32
    %485 = vector.extract_strided_slice %475 {offsets = [6, 0], sizes = [6, 256], strides = [1, 1]} : vector<12x256xf32> to vector<6x256xf32>
    %486 = vector.shape_cast %485 : vector<6x256xf32> to vector<1x6x256xf32>
    %cst_116 = arith.constant dense<0.000000e+00> : vector<1xf32>
    %487 = vector.multi_reduction <add>, %486, %cst_116 [1, 2] : vector<1x6x256xf32> to vector<1xf32>
    %488 = vector.shape_cast %487 : vector<1xf32> to vector<1x1x1xf32>
    %489 = vector.extract %488[0, 0, 0] : f32 from vector<1x1x1xf32>
    %cst_117 = arith.constant 1.536000e+03 : f32
    %490 = arith.divf %489, %cst_117 : f32
    %c6_i32_118 = arith.constant 6 : i32
    %491 = vector.broadcast %c6_i32_118 : i32 to vector<12x1xi32>
    %492 = arith.cmpi slt, %478, %491 : vector<12x1xi32>
    %493 = vector.broadcast %484 : f32 to vector<12x1xf32>
    %494 = vector.broadcast %490 : f32 to vector<12x1xf32>
    %495 = arith.select %492, %493, %494 : vector<12x1xi1>, vector<12x1xf32>
    %496 = vector.broadcast %495 : vector<12x1xf32> to vector<12x256xf32>
    %497 = arith.subf %475, %496 : vector<12x256xf32>
    %498 = vector.extract_strided_slice %497 {offsets = [0, 0], sizes = [6, 256], strides = [1, 1]} : vector<12x256xf32> to vector<6x256xf32>
    %499 = arith.mulf %498, %498 : vector<6x256xf32>
    %500 = vector.shape_cast %499 : vector<6x256xf32> to vector<1x6x256xf32>
    %cst_119 = arith.constant dense<0.000000e+00> : vector<1xf32>
    %501 = vector.multi_reduction <add>, %500, %cst_119 [1, 2] : vector<1x6x256xf32> to vector<1xf32>
    %502 = vector.shape_cast %501 : vector<1xf32> to vector<1x1x1xf32>
    %503 = vector.extract %502[0, 0, 0] : f32 from vector<1x1x1xf32>
    %cst_120 = arith.constant 1.536000e+03 : f32
    %504 = arith.divf %503, %cst_120 : f32
    %505 = vector.extract_strided_slice %497 {offsets = [6, 0], sizes = [6, 256], strides = [1, 1]} : vector<12x256xf32> to vector<6x256xf32>
    %506 = arith.mulf %505, %505 : vector<6x256xf32>
    %507 = vector.shape_cast %506 : vector<6x256xf32> to vector<1x6x256xf32>
    %cst_121 = arith.constant dense<0.000000e+00> : vector<1xf32>
    %508 = vector.multi_reduction <add>, %507, %cst_121 [1, 2] : vector<1x6x256xf32> to vector<1xf32>
    %509 = vector.shape_cast %508 : vector<1xf32> to vector<1x1x1xf32>
    %510 = vector.extract %509[0, 0, 0] : f32 from vector<1x1x1xf32>
    %cst_122 = arith.constant 1.536000e+03 : f32
    %511 = arith.divf %510, %cst_122 : f32
    %c6_i32_123 = arith.constant 6 : i32
    %512 = vector.broadcast %c6_i32_123 : i32 to vector<12x1xi32>
    %513 = arith.cmpi slt, %478, %512 : vector<12x1xi32>
    %cst_124 = arith.constant 9.99999974E-6 : f32
    %514 = arith.addf %504, %cst_124 : f32
    %515 = math.rsqrt %514 : f32
    %cst_125 = arith.constant 9.99999974E-6 : f32
    %516 = arith.addf %511, %cst_125 : f32
    %517 = math.rsqrt %516 : f32
    %518 = vector.broadcast %515 : f32 to vector<12x1xf32>
    %519 = vector.broadcast %517 : f32 to vector<12x1xf32>
    %520 = arith.select %513, %518, %519 : vector<12x1xi1>, vector<12x1xf32>
    %521 = vector.broadcast %520 : vector<12x1xf32> to vector<12x256xf32>
    %522 = arith.mulf %497, %521 : vector<12x256xf32>
    %523 = vector.broadcast %476 : vector<12x1xf32> to vector<12x256xf32>
    %524 = arith.mulf %522, %523 : vector<12x256xf32>
    %525 = vector.broadcast %477 : vector<12x1xf32> to vector<12x256xf32>
    %526 = arith.addf %524, %525 : vector<12x256xf32>
    %c1_126 = arith.constant 1 : index
    %c0_127 = arith.constant 0 : index
    %c0_128 = arith.constant 0 : index
    %527 = vector.load %arg6[%c1_126, %c0_127, %c0_128] : memref<2x48x12xf32, #tpu.memory_space<vmem>>, vector<1x48x12xf32>
    %528 = vector.shape_cast %527 : vector<1x48x12xf32> to vector<48x12xf32>
    %cst_129 = arith.constant dense<0.000000e+00> : vector<48x256xf32>
    %529 = tpu.matmul %528, %526, %cst_129 {dimension_numbers = #tpu.dot_dimension_numbers<[1], [0], [0], [1], [0, 0, 1, 1], [], []>} : vector<48x12xf32>, vector<12x256xf32>, vector<48x256xf32> -> vector<48x256xf32>
    %530 = vector.extract_strided_slice %3 {offsets = [0, 12], sizes = [48, 1], strides = [1, 1]} : vector<48x18xf32> to vector<48x1xf32>
    %531 = vector.broadcast %530 : vector<48x1xf32> to vector<48x256xf32>
    %532 = arith.addf %529, %531 : vector<48x256xf32>
    %cst_130 = arith.constant 0.000000e+00 : f32
    %533 = vector.broadcast %cst_130 : f32 to vector<48x256xf32>
    %534 = arith.maximumf %532, %533 : vector<48x256xf32>
    %535 = math.absf %532 : vector<48x256xf32>
    %cst_131 = arith.constant 0.000000e+00 : f32
    %536 = vector.broadcast %cst_131 : f32 to vector<48x256xf32>
    %537 = arith.subf %536, %535 : vector<48x256xf32>
    %538 = math.exp %537 : vector<48x256xf32>
    %cst_132 = arith.constant 1.000000e+00 : f32
    %539 = vector.broadcast %cst_132 : f32 to vector<48x256xf32>
    %540 = arith.addf %539, %538 : vector<48x256xf32>
    %541 = math.log %540 : vector<48x256xf32>
    %542 = arith.addf %534, %541 : vector<48x256xf32>
    %543 = math.tanh %542 : vector<48x256xf32>
    %544 = arith.mulf %532, %543 : vector<48x256xf32>
    %c1_133 = arith.constant 1 : index
    %c0_134 = arith.constant 0 : index
    %c0_135 = arith.constant 0 : index
    %545 = vector.load %arg7[%c1_133, %c0_134, %c0_135] : memref<2x12x48xf32, #tpu.memory_space<vmem>>, vector<1x12x48xf32>
    %546 = vector.shape_cast %545 : vector<1x12x48xf32> to vector<12x48xf32>
    %cst_136 = arith.constant dense<0.000000e+00> : vector<12x256xf32>
    %547 = tpu.matmul %546, %544, %cst_136 {dimension_numbers = #tpu.dot_dimension_numbers<[1], [0], [0], [1], [0, 0, 1, 1], [], []>} : vector<12x48xf32>, vector<48x256xf32>, vector<12x256xf32> -> vector<12x256xf32>
    %548 = vector.extract_strided_slice %3 {offsets = [0, 13], sizes = [12, 1], strides = [1, 1]} : vector<48x18xf32> to vector<12x1xf32>
    %549 = vector.broadcast %548 : vector<12x1xf32> to vector<12x256xf32>
    %550 = arith.addf %547, %549 : vector<12x256xf32>
    %551 = vector.extract_strided_slice %3 {offsets = [0, 14], sizes = [12, 1], strides = [1, 1]} : vector<48x18xf32> to vector<12x1xf32>
    %552 = vector.broadcast %551 : vector<12x1xf32> to vector<12x256xf32>
    %553 = arith.mulf %552, %550 : vector<12x256xf32>
    %554 = arith.addf %323, %553 : vector<12x256xf32>
    %cst_137 = arith.constant dense<0.000000e+00> : vector<12xf32>
    %555 = vector.multi_reduction <add>, %554, %cst_137 [1] : vector<12x256xf32> to vector<12xf32>
    %556 = vector.shape_cast %555 : vector<12xf32> to vector<12x1xf32>
    %cst_138 = arith.constant 2.560000e+02 : f32
    %557 = vector.broadcast %cst_138 : f32 to vector<12x1xf32>
    %558 = arith.divf %556, %557 : vector<12x1xf32>
    %cst_139 = arith.constant 0.000000e+00 : f32
    %559 = vector.broadcast %cst_139 : f32 to vector<1x1xf32>
    %560 = vector.extract_strided_slice %558 {offsets = [0, 0], sizes = [11, 1], strides = [1, 1]} : vector<12x1xf32> to vector<11x1xf32>
    %561 = tpu.concatenate %559, %560 in 0 : vector<1x1xf32>, vector<11x1xf32> -> vector<12x1xf32>
    %562 = vector.extract_strided_slice %558 {offsets = [1, 0], sizes = [11, 1], strides = [1, 1]} : vector<12x1xf32> to vector<11x1xf32>
    %563 = tpu.concatenate %562, %559 in 0 : vector<11x1xf32>, vector<1x1xf32> -> vector<12x1xf32>
    %564 = vector.extract_strided_slice %3 {offsets = [0, 16], sizes = [1, 1], strides = [1, 1]} : vector<48x18xf32> to vector<1x1xf32>
    %565 = vector.broadcast %564 : vector<1x1xf32> to vector<12x1xf32>
    %566 = arith.mulf %565, %561 : vector<12x1xf32>
    %567 = vector.extract_strided_slice %3 {offsets = [1, 16], sizes = [1, 1], strides = [1, 1]} : vector<48x18xf32> to vector<1x1xf32>
    %568 = vector.broadcast %567 : vector<1x1xf32> to vector<12x1xf32>
    %569 = arith.mulf %568, %558 : vector<12x1xf32>
    %570 = arith.addf %566, %569 : vector<12x1xf32>
    %571 = vector.extract_strided_slice %3 {offsets = [2, 16], sizes = [1, 1], strides = [1, 1]} : vector<48x18xf32> to vector<1x1xf32>
    %572 = vector.broadcast %571 : vector<1x1xf32> to vector<12x1xf32>
    %573 = arith.mulf %572, %563 : vector<12x1xf32>
    %574 = arith.addf %570, %573 : vector<12x1xf32>
    %575 = arith.negf %574 : vector<12x1xf32>
    %576 = math.exp %575 : vector<12x1xf32>
    %cst_140 = arith.constant 1.000000e+00 : f32
    %577 = vector.broadcast %cst_140 : f32 to vector<12x1xf32>
    %578 = arith.addf %577, %576 : vector<12x1xf32>
    %579 = arith.divf %577, %578 : vector<12x1xf32>
    %580 = vector.broadcast %579 : vector<12x1xf32> to vector<12x256xf32>
    %581 = arith.mulf %554, %580 : vector<12x256xf32>
    %c0_141 = arith.constant 0 : index
    %c0_142 = arith.constant 0 : index
    %582 = vector.load %arg8[%c0_141, %c0_142] : memref<12x12xf32, #tpu.memory_space<vmem>>, vector<12x12xf32>
    %cst_143 = arith.constant dense<0.000000e+00> : vector<12x256xf32>
    %583 = tpu.matmul %582, %581, %cst_143 {dimension_numbers = #tpu.dot_dimension_numbers<[1], [0], [0], [1], [0, 0, 1, 1], [], []>} : vector<12x12xf32>, vector<12x256xf32>, vector<12x256xf32> -> vector<12x256xf32>
    %584 = vector.extract_strided_slice %3 {offsets = [0, 15], sizes = [12, 1], strides = [1, 1]} : vector<48x18xf32> to vector<12x1xf32>
    %585 = vector.broadcast %584 : vector<12x1xf32> to vector<12x256xf32>
    %586 = arith.addf %583, %585 : vector<12x256xf32>
    %587 = vector.extract_strided_slice %3 {offsets = [0, 17], sizes = [1, 1], strides = [1, 1]} : vector<48x18xf32> to vector<1x1xf32>
    %588 = vector.broadcast %587 : vector<1x1xf32> to vector<12x256xf32>
    %589 = arith.mulf %586, %588 : vector<12x256xf32>
    %590 = math.absf %589 : vector<12x256xf32>
    %cst_144 = arith.constant 2.41421366 : f32
    %591 = vector.broadcast %cst_144 : f32 to vector<12x256xf32>
    %592 = arith.cmpf ogt, %590, %591 : vector<12x256xf32>
    %cst_145 = arith.constant 0.414213568 : f32
    %593 = vector.broadcast %cst_145 : f32 to vector<12x256xf32>
    %594 = arith.cmpf ogt, %590, %593 : vector<12x256xf32>
    %cst_146 = arith.constant 1.000000e-30 : f32
    %595 = vector.broadcast %cst_146 : f32 to vector<12x256xf32>
    %596 = arith.maximumf %590, %595 : vector<12x256xf32>
    %cst_147 = arith.constant -1.000000e+00 : f32
    %597 = vector.broadcast %cst_147 : f32 to vector<12x256xf32>
    %598 = arith.divf %597, %596 : vector<12x256xf32>
    %cst_148 = arith.constant 1.000000e+00 : f32
    %599 = vector.broadcast %cst_148 : f32 to vector<12x256xf32>
    %600 = arith.subf %590, %599 : vector<12x256xf32>
    %cst_149 = arith.constant 1.000000e+00 : f32
    %601 = vector.broadcast %cst_149 : f32 to vector<12x256xf32>
    %602 = arith.addf %590, %601 : vector<12x256xf32>
    %603 = arith.divf %600, %602 : vector<12x256xf32>
    %604 = arith.select %594, %603, %590 : vector<12x256xi1>, vector<12x256xf32>
    %605 = arith.select %592, %598, %604 : vector<12x256xi1>, vector<12x256xf32>
    %cst_150 = arith.constant 0.785398185 : f32
    %cst_151 = arith.constant 0.000000e+00 : f32
    %606 = vector.broadcast %cst_150 : f32 to vector<12x256xf32>
    %607 = vector.broadcast %cst_151 : f32 to vector<12x256xf32>
    %608 = arith.select %594, %606, %607 : vector<12x256xi1>, vector<12x256xf32>
    %cst_152 = arith.constant 1.57079637 : f32
    %609 = vector.broadcast %cst_152 : f32 to vector<12x256xf32>
    %610 = arith.select %592, %609, %608 : vector<12x256xi1>, vector<12x256xf32>
    %611 = arith.mulf %605, %605 : vector<12x256xf32>
    %cst_153 = arith.constant 0.0805374458 : f32
    %612 = vector.broadcast %cst_153 : f32 to vector<12x256xf32>
    %613 = arith.mulf %612, %611 : vector<12x256xf32>
    %cst_154 = arith.constant 0.138776854 : f32
    %614 = vector.broadcast %cst_154 : f32 to vector<12x256xf32>
    %615 = arith.subf %613, %614 : vector<12x256xf32>
    %616 = arith.mulf %615, %611 : vector<12x256xf32>
    %cst_155 = arith.constant 0.199777111 : f32
    %617 = vector.broadcast %cst_155 : f32 to vector<12x256xf32>
    %618 = arith.addf %616, %617 : vector<12x256xf32>
    %619 = arith.mulf %618, %611 : vector<12x256xf32>
    %cst_156 = arith.constant 0.333329499 : f32
    %620 = vector.broadcast %cst_156 : f32 to vector<12x256xf32>
    %621 = arith.subf %619, %620 : vector<12x256xf32>
    %622 = arith.mulf %621, %611 : vector<12x256xf32>
    %623 = arith.mulf %622, %605 : vector<12x256xf32>
    %624 = arith.addf %623, %605 : vector<12x256xf32>
    %625 = arith.addf %610, %624 : vector<12x256xf32>
    %cst_157 = arith.constant 0.000000e+00 : f32
    %626 = vector.broadcast %cst_157 : f32 to vector<12x256xf32>
    %627 = arith.cmpf olt, %589, %626 : vector<12x256xf32>
    %cst_158 = arith.constant 0.000000e+00 : f32
    %628 = vector.broadcast %cst_158 : f32 to vector<12x256xf32>
    %629 = arith.subf %628, %625 : vector<12x256xf32>
    %630 = arith.select %627, %629, %625 : vector<12x256xi1>, vector<12x256xf32>
    %cst_159 = arith.constant 0.159154937 : f32
    %631 = vector.broadcast %cst_159 : f32 to vector<12x256xf32>
    %632 = arith.mulf %630, %631 : vector<12x256xf32>
    %c0_160 = arith.constant 0 : index
    %c0_161 = arith.constant 0 : index
    %c0_162 = arith.constant 0 : index
    %633 = vector.load %arg9[%c0_160, %c0_161, %c0_162] : memref<1x12x256xf32, #tpu.memory_space<vmem>>, vector<1x12x256xf32>
    %634 = vector.shape_cast %633 : vector<1x12x256xf32> to vector<12x256xf32>
    %635 = vector.shape_cast %632 : vector<12x256xf32> to vector<1x12x256xf32>
    tpu.vector_store %arg9[%c0_160, %c0_161, %c0_162], %635 {strides = array<i32>} : memref<1x12x256xf32, #tpu.memory_space<vmem>>, vector<1x12x256xf32>,
    return
  }
  func.func @transform_0(%arg0: i32) -> (i32, i32, i32) {
    %c0_i32 = arith.constant 0 : i32
    %c0_i32_0 = arith.constant 0 : i32
    %c0_i32_1 = arith.constant 0 : i32
    return %arg0, %c0_i32, %c0_i32_0 : i32, i32, i32
  }
  func.func @transform_1(%arg0: i32) -> (i32, i32) {
    %c0_i32 = arith.constant 0 : i32
    %c0_i32_0 = arith.constant 0 : i32
    %c0_i32_1 = arith.constant 0 : i32
    return %c0_i32, %c0_i32_0 : i32, i32
  }
  func.func @transform_2(%arg0: i32) -> (i32, i32) {
    %c0_i32 = arith.constant 0 : i32
    %c0_i32_0 = arith.constant 0 : i32
    %c0_i32_1 = arith.constant 0 : i32
    return %c0_i32, %c0_i32_0 : i32, i32
  }
  func.func @transform_3(%arg0: i32) -> (i32, i32) {
    %c0_i32 = arith.constant 0 : i32
    %c0_i32_0 = arith.constant 0 : i32
    %c0_i32_1 = arith.constant 0 : i32
    return %c0_i32, %c0_i32_0 : i32, i32
  }
  func.func @transform_4(%arg0: i32) -> (i32, i32, i32) {
    %c0_i32 = arith.constant 0 : i32
    %c0_i32_0 = arith.constant 0 : i32
    %c0_i32_1 = arith.constant 0 : i32
    %c0_i32_2 = arith.constant 0 : i32
    return %c0_i32, %c0_i32_0, %c0_i32_1 : i32, i32, i32
  }
  func.func @transform_5(%arg0: i32) -> (i32, i32, i32) {
    %c0_i32 = arith.constant 0 : i32
    %c0_i32_0 = arith.constant 0 : i32
    %c0_i32_1 = arith.constant 0 : i32
    %c0_i32_2 = arith.constant 0 : i32
    return %c0_i32, %c0_i32_0, %c0_i32_1 : i32, i32, i32
  }
  func.func @transform_6(%arg0: i32) -> (i32, i32, i32) {
    %c0_i32 = arith.constant 0 : i32
    %c0_i32_0 = arith.constant 0 : i32
    %c0_i32_1 = arith.constant 0 : i32
    %c0_i32_2 = arith.constant 0 : i32
    return %c0_i32, %c0_i32_0, %c0_i32_1 : i32, i32, i32
  }
  func.func @transform_7(%arg0: i32) -> (i32, i32) {
    %c0_i32 = arith.constant 0 : i32
    %c0_i32_0 = arith.constant 0 : i32
    %c0_i32_1 = arith.constant 0 : i32
    return %c0_i32, %c0_i32_0 : i32, i32
  }
  func.func @transform_8(%arg0: i32) -> (i32, i32, i32) {
    %c0_i32 = arith.constant 0 : i32
    %c0_i32_0 = arith.constant 0 : i32
    %c0_i32_1 = arith.constant 0 : i32
    return %arg0, %c0_i32, %c0_i32_0 : i32, i32, i32
  }
}

</mosaic_0001>

<llo_original>
// kernel: tpu_custom_call.1
$region0: #{tpu_custom_call.1}
  #allocation0 [shape = 'u32[]', space=smem, size = 0x4, offset = 0x4, fixed_abs, tag = 'smem constant byte address 0x4 - core index']
  #allocation1 [shape = 'u32[72,128]{1,0:T(1,128)}', space=vmem, size = 0x9000, scoped, tag = 'internal scratch']
  %s0 = inlined_call_operand.vmem [shape: f32[2,6,256], index: 0, kind: input, shape index: {}]
  %s1 = inlined_call_operand.vmem [shape: s32[1,256], index: 1, kind: input, shape index: {}]
  %s2 = inlined_call_operand.vmem [shape: f32[48,18], index: 2, kind: input, shape index: {}]
  %s3 = inlined_call_operand.vmem [shape: f32[12,54], index: 3, kind: input, shape index: {}]
  %s4 = inlined_call_operand.vmem [shape: f32[2,12,25], index: 4, kind: input, shape index: {}]
  %s5 = inlined_call_operand.vmem [shape: f32[2,48,12], index: 5, kind: input, shape index: {}]
  %s6 = inlined_call_operand.vmem [shape: f32[2,12,48], index: 6, kind: input, shape index: {}]
  %s7 = inlined_call_operand.vmem [shape: f32[12,12], index: 7, kind: input, shape index: {}]
  %s8 = inlined_call_operand.vmem [shape: f32[2,12,256], index: 8, kind: output, shape index: {}]
  %s9 = sld [smem:[#allocation0]]
  $region65: #{tpu_custom_call.1} parent=0
    _
  %s11 = ssub.s32 1, %s9
  %s12 = scalar_select 0, %s11, %s9
  loop: start=0, step=1, limit=4
  $region2: #{tpu_custom_call.1} parent=0 // loop_pre_header
    _
  $region3: #{tpu_custom_call.1} parent=0 // loop_header
    %s14 = sphi 0, %s18
    %p15 = scmp.ge.s32.totalorder %s14, 4
    %s24 = sphi 0, %s26
    %s27 = sphi 0, %s24
    %s28 = sphi 0, %s27
    %s44 = sphi 0, %s28
    %s48 = sphi 0, %s48
    %s50 = sphi 0, %s48
    %s51 = sphi 0, %s50
    %s65 = sphi 0, %s51
    %s69 = sphi 0, %s69
    %s71 = sphi 0, %s69
    %s72 = sphi 0, %s71
    %s86 = sphi 0, %s72
    %s90 = sphi 0, %s90
    %s92 = sphi 0, %s90
    %s93 = sphi 0, %s92
    %s107 = sphi 0, %s93
    %s111 = sphi 0, %s111
    %s113 = sphi 0, %s111
    %s114 = sphi 0, %s113
    %s128 = sphi 0, %s114
    %s132 = sphi 0, %s132
    %s134 = sphi 0, %s132
    %s135 = sphi 0, %s134
    %s149 = sphi 0, %s135
    %s153 = sphi 0, %s153
    %s155 = sphi 0, %s153
    %s156 = sphi 0, %s155
    %s170 = sphi 0, %s156
    %s174 = sphi 0, %s174
    %s176 = sphi 0, %s174
    %s177 = sphi 0, %s176
    %s191 = sphi 0, %s177
    %s197 = sphi 0, %s199
    %s200 = sphi 0, %s197
    %s201 = sphi 0, %s200
    %s217 = sphi 0, %s201
  $region4: #{tpu_custom_call.1} parent=0 // loop_header_branch
    %17 = sbr.rel (%p15) target = $region8
  $region5: #{tpu_custom_call.1} parent=0 // loop_body
    %s19 = ssub.s32 %s14, 1
    %s20 = ssub.s32 %s14, 2
    %s21 = sadd.s32 %s14, 1
    %s22 = ssub.s32 %s14, %s21
    %p23 = scmp.eq.s32.totalorder %s22, 0
    %s25 = sadd.s32 %s24, 1
    %s26 = scalar_select %p23, %s24, %s25
    %p29 = pneg %p23
    %p30 = scmp.eq.s32.totalorder %s14, 1
    %p31 = por %p29, %p30
    %p32 = scmp.ne.s32.totalorder %s24, %s27
    %p33 = scmp.eq.s32.totalorder %s14, 0
    %p34 = por %p32, %p33
    %p35 = scmp.ne.s32.totalorder %s24, %s27
    %p36 = scmp.eq.s32.totalorder %s19, 1
    %p37 = por %p35, %p36
    %p38 = scmp.ne.s32.totalorder %s27, %s28
    %p39 = scmp.eq.s32.totalorder %s19, 0
    %p40 = por %p38, %p39
    %p41 = scmp.ne.s32.totalorder %s27, %s28
    %p42 = scmp.eq.s32.totalorder %s20, 1
    %p43 = por %p41, %p42
    %p45 = scmp.ne.s32.totalorder %s28, %s44
    %p46 = scmp.eq.s32.totalorder %s20, 0
    %p47 = por %p45, %p46
    %s49 = sadd.s32 %s48, 1
    %p52 = scmp.eq.s32.totalorder %s14, 1
    %p53 = scmp.ne.s32.totalorder %s48, %s50
    %p54 = scmp.eq.s32.totalorder %s14, 0
    %p55 = por %p53, %p54
    %p56 = scmp.ne.s32.totalorder %s48, %s50
    %p57 = scmp.eq.s32.totalorder %s19, 1
    %p58 = por %p56, %p57
    %p59 = scmp.ne.s32.totalorder %s50, %s51
    %p60 = scmp.eq.s32.totalorder %s19, 0
    %p61 = por %p59, %p60
    %p62 = scmp.ne.s32.totalorder %s50, %s51
    %p63 = scmp.eq.s32.totalorder %s20, 1
    %p64 = por %p62, %p63
    %p66 = scmp.ne.s32.totalorder %s51, %s65
    %p67 = scmp.eq.s32.totalorder %s20, 0
    %p68 = por %p66, %p67
    %s70 = sadd.s32 %s69, 1
    %p73 = scmp.eq.s32.totalorder %s14, 1
    %p74 = scmp.ne.s32.totalorder %s69, %s71
    %p75 = scmp.eq.s32.totalorder %s14, 0
    %p76 = por %p74, %p75
    %p77 = scmp.ne.s32.totalorder %s69, %s71
    %p78 = scmp.eq.s32.totalorder %s19, 1
    %p79 = por %p77, %p78
    %p80 = scmp.ne.s32.totalorder %s71, %s72
    %p81 = scmp.eq.s32.totalorder %s19, 0
    %p82 = por %p80, %p81
    %p83 = scmp.ne.s32.totalorder %s71, %s72
    %p84 = scmp.eq.s32.totalorder %s20, 1
    %p85 = por %p83, %p84
    %p87 = scmp.ne.s32.totalorder %s72, %s86
    %p88 = scmp.eq.s32.totalorder %s20, 0
    %p89 = por %p87, %p88
    %s91 = sadd.s32 %s90, 1
    %p94 = scmp.eq.s32.totalorder %s14, 1
    %p95 = scmp.ne.s32.totalorder %s90, %s92
    %p96 = scmp.eq.s32.totalorder %s14, 0
    %p97 = por %p95, %p96
    %p98 = scmp.ne.s32.totalorder %s90, %s92
    %p99 = scmp.eq.s32.totalorder %s19, 1
    %p100 = por %p98, %p99
    %p101 = scmp.ne.s32.totalorder %s92, %s93
    %p102 = scmp.eq.s32.totalorder %s19, 0
    %p103 = por %p101, %p102
    %p104 = scmp.ne.s32.totalorder %s92, %s93
    %p105 = scmp.eq.s32.totalorder %s20, 1
    %p106 = por %p104, %p105
    %p108 = scmp.ne.s32.totalorder %s93, %s107
    %p109 = scmp.eq.s32.totalorder %s20, 0
    %p110 = por %p108, %p109
    %s112 = sadd.s32 %s111, 1
    %p115 = scmp.eq.s32.totalorder %s14, 1
    %p116 = scmp.ne.s32.totalorder %s111, %s113
    %p117 = scmp.eq.s32.totalorder %s14, 0
    %p118 = por %p116, %p117
    %p119 = scmp.ne.s32.totalorder %s111, %s113
    %p120 = scmp.eq.s32.totalorder %s19, 1
    %p121 = por %p119, %p120
    %p122 = scmp.ne.s32.totalorder %s113, %s114
    %p123 = scmp.eq.s32.totalorder %s19, 0
    %p124 = por %p122, %p123
    %p125 = scmp.ne.s32.totalorder %s113, %s114
    %p126 = scmp.eq.s32.totalorder %s20, 1
    %p127 = por %p125, %p126
    %p129 = scmp.ne.s32.totalorder %s114, %s128
    %p130 = scmp.eq.s32.totalorder %s20, 0
    %p131 = por %p129, %p130
    %s133 = sadd.s32 %s132, 1
    %p136 = scmp.eq.s32.totalorder %s14, 1
    %p137 = scmp.ne.s32.totalorder %s132, %s134
    %p138 = scmp.eq.s32.totalorder %s14, 0
    %p139 = por %p137, %p138
    %p140 = scmp.ne.s32.totalorder %s132, %s134
    %p141 = scmp.eq.s32.totalorder %s19, 1
    %p142 = por %p140, %p141
    %p143 = scmp.ne.s32.totalorder %s134, %s135
    %p144 = scmp.eq.s32.totalorder %s19, 0
    %p145 = por %p143, %p144
    %p146 = scmp.ne.s32.totalorder %s134, %s135
    %p147 = scmp.eq.s32.totalorder %s20, 1
    %p148 = por %p146, %p147
    %p150 = scmp.ne.s32.totalorder %s135, %s149
    %p151 = scmp.eq.s32.totalorder %s20, 0
    %p152 = por %p150, %p151
    %s154 = sadd.s32 %s153, 1
    %p157 = scmp.eq.s32.totalorder %s14, 1
    %p158 = scmp.ne.s32.totalorder %s153, %s155
    %p159 = scmp.eq.s32.totalorder %s14, 0
    %p160 = por %p158, %p159
    %p161 = scmp.ne.s32.totalorder %s153, %s155
    %p162 = scmp.eq.s32.totalorder %s19, 1
    %p163 = por %p161, %p162
    %p164 = scmp.ne.s32.totalorder %s155, %s156
    %p165 = scmp.eq.s32.totalorder %s19, 0
    %p166 = por %p164, %p165
    %p167 = scmp.ne.s32.totalorder %s155, %s156
    %p168 = scmp.eq.s32.totalorder %s20, 1
    %p169 = por %p167, %p168
    %p171 = scmp.ne.s32.totalorder %s156, %s170
    %p172 = scmp.eq.s32.totalorder %s20, 0
    %p173 = por %p171, %p172
    %s175 = sadd.s32 %s174, 1
    %p178 = scmp.eq.s32.totalorder %s14, 1
    %p179 = scmp.ne.s32.totalorder %s174, %s176
    %p180 = scmp.eq.s32.totalorder %s14, 0
    %p181 = por %p179, %p180
    %p182 = scmp.ne.s32.totalorder %s174, %s176
    %p183 = scmp.eq.s32.totalorder %s19, 1
    %p184 = por %p182, %p183
    %p185 = scmp.ne.s32.totalorder %s176, %s177
    %p186 = scmp.eq.s32.totalorder %s19, 0
    %p187 = por %p185, %p186
    %p188 = scmp.ne.s32.totalorder %s176, %s177
    %p189 = scmp.eq.s32.totalorder %s20, 1
    %p190 = por %p188, %p189
    %p192 = scmp.ne.s32.totalorder %s177, %s191
    %p193 = scmp.eq.s32.totalorder %s20, 0
    %p194 = por %p192, %p193
    %s195 = ssub.s32 %s14, %s21
    %p196 = scmp.eq.s32.totalorder %s195, 0
    %s198 = sadd.s32 %s197, 1
    %s199 = scalar_select %p196, %s197, %s198
    %p202 = pneg %p196
    %p203 = scmp.eq.s32.totalorder %s14, 1
    %p204 = por %p202, %p203
    %p205 = scmp.ne.s32.totalorder %s197, %s200
    %p206 = scmp.eq.s32.totalorder %s14, 0
    %p207 = por %p205, %p206
    %p208 = scmp.ne.s32.totalorder %s197, %s200
    %p209 = scmp.eq.s32.totalorder %s19, 1
    %p210 = por %p208, %p209
    %p211 = scmp.ne.s32.totalorder %s200, %s201
    %p212 = scmp.eq.s32.totalorder %s19, 0
    %p213 = por %p211, %p212
    %p214 = scmp.ne.s32.totalorder %s200, %s201
    %p215 = scmp.eq.s32.totalorder %s20, 1
    %p216 = por %p214, %p215
    %p218 = scmp.ne.s32.totalorder %s201, %s217
    %p219 = scmp.eq.s32.totalorder %s20, 0
    %p220 = por %p218, %p219
    %p221 = scmp.le.s32.totalorder 1, %s14
    %p222 = scmp.lt.s32.totalorder %s14, 3
    %p223 = pnand %p221, %p222
    %p224 = pneg %p223
    // Predicated region
    $region9: #{tpu_custom_call.1} parent=5 // pred_check
      _
    $region10: #{tpu_custom_call.1} parent=5 // pred_check_branch
      %226 = sbr.rel (%p223) target = $region12
    $region11: #{tpu_custom_call.1} parent=5 // pred_region
      %s227 = ssub.s32 %s14, 1
      // Predicated region
      $region13: #{tpu_custom_call.1} parent=11 // pred_check
        %p228 = pneg %p61
      $region14: #{tpu_custom_call.1} parent=11 // pred_check_branch
        %230 = sbr.rel (%p228) target = $region16
      $region15: #{tpu_custom_call.1} parent=11 // pred_region
        _
      $region16: #{tpu_custom_call.1} parent=11 // pred_fallthru
        _
      // Predicated region
      $region17: #{tpu_custom_call.1} parent=11 // pred_check
        %p231 = pneg %p82
      $region18: #{tpu_custom_call.1} parent=11 // pred_check_branch
        %233 = sbr.rel (%p231) target = $region20
      $region19: #{tpu_custom_call.1} parent=11 // pred_region
        _
      $region20: #{tpu_custom_call.1} parent=11 // pred_fallthru
        _
      // Predicated region
      $region21: #{tpu_custom_call.1} parent=11 // pred_check
        %p234 = pneg %p103
      $region22: #{tpu_custom_call.1} parent=11 // pred_check_branch
        %236 = sbr.rel (%p234) target = $region24
      $region23: #{tpu_custom_call.1} parent=11 // pred_region
        _
      $region24: #{tpu_custom_call.1} parent=11 // pred_fallthru
        _
      // Predicated region
      $region25: #{tpu_custom_call.1} parent=11 // pred_check
        %p237 = pneg %p124
      $region26: #{tpu_custom_call.1} parent=11 // pred_check_branch
        %239 = sbr.rel (%p237) target = $region28
      $region27: #{tpu_custom_call.1} parent=11 // pred_region
        _
      $region28: #{tpu_custom_call.1} parent=11 // pred_fallthru
        _
      // Predicated region
      $region29: #{tpu_custom_call.1} parent=11 // pred_check
        %p240 = pneg %p145
      $region30: #{tpu_custom_call.1} parent=11 // pred_check_branch
        %242 = sbr.rel (%p240) target = $region32
      $region31: #{tpu_custom_call.1} parent=11 // pred_region
        _
      $region32: #{tpu_custom_call.1} parent=11 // pred_fallthru
        _
      // Predicated region
      $region33: #{tpu_custom_call.1} parent=11 // pred_check
        %p243 = pneg %p166
      $region34: #{tpu_custom_call.1} parent=11 // pred_check_branch
        %245 = sbr.rel (%p243) target = $region36
      $region35: #{tpu_custom_call.1} parent=11 // pred_region
        _
      $region36: #{tpu_custom_call.1} parent=11 // pred_fallthru
        _
      // Predicated region
      $region37: #{tpu_custom_call.1} parent=11 // pred_check
        %p246 = pneg %p187
      $region38: #{tpu_custom_call.1} parent=11 // pred_check_branch
        %248 = sbr.rel (%p246) target = $region40
      $region39: #{tpu_custom_call.1} parent=11 // pred_region
        _
      $region40: #{tpu_custom_call.1} parent=11 // pred_fallthru
        _
    $region12: #{tpu_custom_call.1} parent=5 // pred_fallthru
      _
    %p249 = scmp.lt.s32.totalorder %s14, 2
    // Predicated region
    $region41: #{tpu_custom_call.1} parent=5 // pred_check
      %p250 = pneg %p249
    $region42: #{tpu_custom_call.1} parent=5 // pred_check_branch
      %252 = sbr.rel (%p250) target = $region44
    $region43: #{tpu_custom_call.1} parent=5 // pred_region
      // Predicated region
      $region45: #{tpu_custom_call.1} parent=43 // pred_check
        %p253 = pneg %p34
      $region46: #{tpu_custom_call.1} parent=43 // pred_check_branch
        %255 = sbr.rel (%p253) target = $region48
      $region47: #{tpu_custom_call.1} parent=43 // pred_region
        %p256 = scmp.lt.s32.totalorder %s14, 1
        %s257 = scalar_select %p256, %s14, 1
        %s258 = smul.addr %s257, 2
        %s259 = smul.addr %s258, 8
        %s260 = scalar_lea.vmem %s0, %s259
      $region48: #{tpu_custom_call.1} parent=43 // pred_fallthru
        _
    $region44: #{tpu_custom_call.1} parent=5 // pred_fallthru
      _
    %p261 = scmp.le.s32.totalorder 1, %s14
    %p262 = scmp.lt.s32.totalorder %s14, 3
    %p263 = pnand %p261, %p262
    %p264 = pneg %p263
    // Predicated region
    $region49: #{tpu_custom_call.1} parent=5 // pred_check
      _
    $region50: #{tpu_custom_call.1} parent=5 // pred_check_branch
      %266 = sbr.rel (%p263) target = $region52
    $region51: #{tpu_custom_call.1} parent=5 // pred_region
      %s267 = ssub.s32 %s14, 1
      %p268 = scmp.lt.s32.totalorder %s19, 1
      %s269 = scalar_select %p268, %s19, 1
      %s270 = smul.addr %s269, 2
      %s271 = smul.addr %s270, 8
      %s272 = scalar_lea.vmem %s0, %s271
      %p273 = pneg %p40
      %p274 = pneg %p37
      %p275 = pneg %p61
      %p276 = pneg %p58
      %p277 = pneg %p82
      %p278 = pneg %p79
      %p279 = pneg %p103
      %p280 = pneg %p100
      %p281 = pneg %p124
      %p282 = pneg %p121
      %p283 = pneg %p145
      %p284 = pneg %p142
      %p285 = pneg %p166
      %p286 = pneg %p163
      %p287 = pneg %p187
      %p288 = pneg %p184
      %p289 = pneg %p213
      %p290 = pneg %p210
      %p291 = scmp.lt.s32.totalorder %s19, 1
      %s292 = scalar_select %p291, %s19, 1
      %s293 = smul.addr %s292, 4
      %s294 = smul.addr %s293, 8
      %s295 = scalar_lea.vmem %s8, %s294
      %p296 = scmp.lt.s32.totalorder %s19, 1
      %s297 = scalar_select %p296, %s19, 1
      %s298 = smul.addr %s297, 2
      %s299 = smul.addr %s298, 8
      %s300 = scalar_lea.vmem %s0, %s299
      %p301 = scmp.lt.s32.totalorder %s19, 1
      %s302 = scalar_select %p301, %s19, 1
      %s303 = smul.addr %s302, 4
      %s304 = smul.addr %s303, 8
      %s305 = scalar_lea.vmem %s8, %s304
      %v306 = vld [vmem:[%s300] sm:$0x3f]
      %v307 = vld [vmem:[%s300 + $0x8] sm:$0x3f]
      %v308 = vld [vmem:[%s1] sm:$0x3]
      %v309 = vld [vmem:[%s2] sm:$0xff]
      %v310 = vld [vmem:[%s2 + $0x8] sm:$0xff]
      %v311 = vld [vmem:[%s2 + $0x10] sm:$0xff]
      %v312 = vld [vmem:[%s2 + $0x18] sm:$0xff]
      %v313 = vld [vmem:[%s2 + $0x20] sm:$0xff]
      %v314 = vld [vmem:[%s2 + $0x28] sm:$0xff]
      %315 = vrot.lane.b32.xlu0 %v306, 1
      %v316 = vpop.permute.xlu0 %315
      %317 = vrot.lane.b32.xlu0 %v307, 1
      %v318 = vpop.permute.xlu0 %317
      %v319 = vlaneseq
      %v320 = vand.u32 %v319, 127
      %vm321 = vcmp.lt.s32.totalorder %v320, 1
      %v322 = vsel %vm321, %v316, %v318
      %v323 = vsel %vm321, %v318, %v316
      %324 = vrot.lane.b32.xlu0 %v306, 113
      %v325 = vpop.permute.xlu0 %324
      %326 = vrot.lane.b32.xlu0 %v307, 113
      %v327 = vpop.permute.xlu0 %326
      %vm328 = vcmp.lt.s32.totalorder %v320, 113
      %v329 = vsel %vm328, %v325, %v327
      %v330 = vsel %vm328, %v327, %v325
      %vm331 = vcmp.ge.s32.totalorder %v308, 1
      %v332 = vsel %vm331, 1, 0
      %v333 = vperm.slane %v332, 0
      %v334 = vperm.slane %v332, 1
      %vm335 = vcmp.eq.s32.totalorder %v333, 1
      %vm336 = vcmp.eq.s32.totalorder %v334, 1
      %v337 = vsel %vm335, %v323, %v329
      %v338 = vsel %vm336, %v322, %v330
      %339 = vrot.lane.b32.xlu0 %v306, 127
      %v340 = vpop.permute.xlu0 %339
      %341 = vrot.lane.b32.xlu0 %v307, 127
      %v342 = vpop.permute.xlu0 %341
      %vm343 = vcmp.lt.s32.totalorder %v320, 127
      %v344 = vsel %vm343, %v340, %v342
      %v345 = vsel %vm343, %v342, %v340
      %346 = vrot.lane.b32.xlu0 %v306, 15
      %v347 = vpop.permute.xlu0 %346
      %348 = vrot.lane.b32.xlu0 %v307, 15
      %v349 = vpop.permute.xlu0 %348
      %vm350 = vcmp.lt.s32.totalorder %v320, 15
      %v351 = vsel %vm350, %v347, %v349
      %v352 = vsel %vm350, %v349, %v347
      %vm353 = vcmp.lt.s32.totalorder %v308, 15
      %v354 = vsel %vm353, 1, 0
      %v355 = vperm.slane %v354, 0
      %v356 = vperm.slane %v354, 1
      %vm357 = vcmp.eq.s32.totalorder %v355, 1
      %vm358 = vcmp.eq.s32.totalorder %v356, 1
      %v359 = vsel %vm357, %v344, %v352
      %v360 = vsel %vm358, %v345, %v351
      %361 = vrot.lane.b32.xlu0 %v337, 16
      %v362 = vpop.permute.xlu0 %361
      %363 = vrot.lane.b32.xlu0 %v338, 16
      %v364 = vpop.permute.xlu0 %363
      %vm365 = vcmp.lt.s32.totalorder %v320, 16
      %v366 = vsel %vm365, %v362, %v364
      %v367 = vsel %vm365, %v364, %v362
      %368 = vrot.lane.b32.xlu0 %v306, 16
      %v369 = vpop.permute.xlu0 %368
      %370 = vrot.lane.b32.xlu0 %v307, 16
      %v371 = vpop.permute.xlu0 %370
      %v372 = vsel %vm365, %v369, %v371
      %v373 = vsel %vm365, %v371, %v369
      %374 = vrot.lane.b32.xlu0 %v359, 16
      %v375 = vpop.permute.xlu0 %374
      %376 = vrot.lane.b32.xlu0 %v360, 16
      %v377 = vpop.permute.xlu0 %376
      %v378 = vsel %vm365, %v375, %v377
      %v379 = vsel %vm365, %v377, %v375
      %380 = vrot.lane.b32.xlu0 %v337, 112
      %v381 = vpop.permute.xlu0 %380
      %382 = vrot.lane.b32.xlu0 %v338, 112
      %v383 = vpop.permute.xlu0 %382
      %vm384 = vcmp.lt.s32.totalorder %v320, 112
      %v385 = vsel %vm384, %v381, %v383
      %v386 = vsel %vm384, %v383, %v381
      %387 = vrot.lane.b32.xlu0 %v306, 112
      %v388 = vpop.permute.xlu0 %387
      %389 = vrot.lane.b32.xlu0 %v307, 112
      %v390 = vpop.permute.xlu0 %389
      %v391 = vsel %vm384, %v388, %v390
      %v392 = vsel %vm384, %v390, %v388
      %393 = vrot.lane.b32.xlu0 %v359, 112
      %v394 = vpop.permute.xlu0 %393
      %395 = vrot.lane.b32.xlu0 %v360, 112
      %v396 = vpop.permute.xlu0 %395
      %v397 = vsel %vm384, %v394, %v396
      %v398 = vsel %vm384, %v396, %v394
      %v401 = vrot.slane %v373, 2
      %v402 = vrot.slane %v372, 2
      %v407 = vrot.slane %v379, 4
      %v408 = vrot.slane %v378, 4
      %v413 = vrot.slane %v337, 6
      %v414 = vrot.slane %v338, 6
      %v419 = vrot.slane %v359, 2
      %v420 = vrot.slane %v360, 2
      %v425 = vrot.slane %v385, 4
      %v426 = vrot.slane %v386, 4
      %v431 = vrot.slane %v391, 6
      %v432 = vrot.slane %v392, 6
      %vm435 = vcmask 1045504
      %v436 = vsel %vm435, %v367, %v401
      %v437 = vsel %vm435, %v366, %v402
      %vm438 = vcmask 1043456
      %v439 = vsel %vm438, %v401, %v407
      %v440 = vsel %vm438, %v402, %v408
      %vm441 = vcmask 1041408
      %v442 = vsel %vm441, %v407, %v413
      %v443 = vsel %vm441, %v408, %v414
      %v444 = vsel %vm435, %v306, %v419
      %v445 = vsel %vm435, %v307, %v420
      %v446 = vsel %vm438, %v419, %v425
      %v447 = vsel %vm438, %v420, %v426
      %v448 = vsel %vm441, %v425, %v431
      %v449 = vsel %vm441, %v426, %v432
      %v450 = vld [vmem:[%s3] sm:$0xff]
      %v451 = vld [vmem:[%s3 + $0x8] sm:$0xf]
      %453 = vset.pattern.permute.xlu0 0
      %454 = vperm.xlu0 %453, %v309
      %v455 = vpop.permute.xlu0 %454
      %458 = vset.pattern.permute.xlu0 0
      %459 = vperm.xlu0 %458, %v310
      %v460 = vpop.permute.xlu0 %459
      %vm462 = vcmask 441344
      %v464 = vsel %vm462, %v450, 0
      %v467 = vsel %vm462, %v451, 0
      %v470 = vsel %vm435, %v397, 0
      %v473 = vsel %vm435, %v398, 0
      %475 = vmatpush.msra.mxu0 0.0
      %476 = vmatpush.msra.mxu0 0.0
      %477 = vmatpush.msra.mxu0 0.0
      %478 = vmatpush.msra.mxu0 0.0
      %479 = vmatpush.msra.mxu0 0.0
      %480 = vmatpush.msra.mxu0 0.0
      %481 = vmatpush.msra.mxu0 0.0
      %482 = vmatpush.msra.mxu0 0.0
      %483 = vmatpush.msra.mxu0 0.0
      %484 = vmatpush.msra.mxu0 %v470
      %485 = vmatpush.msra.mxu0 %v448
      %486 = vmatpush.msra.mxu0 %v446
      %487 = vmatpush.msra.mxu0 %v444
      %488 = vmatpush.msra.mxu0 %v442
      %489 = vmatpush.msra.mxu0 %v439
      %490 = vmatpush.msra.mxu0 %v436
      %491 = vmatmul.f32.gmra.mxu0 %v464
      %v492 = vpop.f32.mrf.mxu0
      %v493 = vadd.f32 %v455, %v492
      %494 = vmatmul.f32.gmra.mxu0 %v467
      %v495 = vpop.f32.mrf.mxu0
      %v496 = vadd.f32 %v460, %v495
      %497 = vdwg.mxu0
      %498 = vmatpush.msra.mxu0 0.0
      %499 = vmatpush.msra.mxu0 0.0
      %500 = vmatpush.msra.mxu0 0.0
      %501 = vmatpush.msra.mxu0 0.0
      %502 = vmatpush.msra.mxu0 0.0
      %503 = vmatpush.msra.mxu0 0.0
      %504 = vmatpush.msra.mxu0 0.0
      %505 = vmatpush.msra.mxu0 0.0
      %506 = vmatpush.msra.mxu0 0.0
      %507 = vmatpush.msra.mxu0 %v473
      %508 = vmatpush.msra.mxu0 %v449
      %509 = vmatpush.msra.mxu0 %v447
      %510 = vmatpush.msra.mxu0 %v445
      %511 = vmatpush.msra.mxu0 %v443
      %512 = vmatpush.msra.mxu0 %v440
      %513 = vmatpush.msra.mxu0 %v437
      %514 = vmatmul.f32.gmra.mxu0 %v464
      %v515 = vpop.f32.mrf.mxu0
      %v516 = vadd.f32 %v455, %v515
      %517 = vmatmul.f32.gmra.mxu0 %v467
      %v518 = vpop.f32.mrf.mxu0
      %v519 = vadd.f32 %v460, %v518
      %520 = vdwg.mxu0
      %v521 = vlaneseq
      %v522 = vshrl.u32 %v521, 7
      %v523 = vadd.s32 %v522, 8
      %v524 = vsel %vm435, %v493, 0.0
      %v525 = vsel %vm435, %v516, 0.0
      %v526 = vadd.f32 %v524, %v525
      %527 = vadd.xlane.f32.xlu0 %v526
      %v528 = vpop.xlane.xlu0 %527
      %v529 = vrot.slane %v528, 4
      %v530 = vadd.f32 %v528, %v529
      %v531 = vrot.slane %v530, 2
      %v532 = vadd.f32 %v530, %v531
      %v533 = vrot.slane %v532, 1
      %v534 = vadd.f32 %v532, %v533
      %s535 = vtos %v534
      %v536 = vrcp.pop 1536.0
      %v537 = vmul.f32 1536.0, %v536
      %v538 = vsub.f32 1.0, %v537
      %v539 = vmul.f32 %v536, %v538
      %v540 = vadd.f32 %v536, %v539
      %vm541 = vweird.f32 %v536
      %v542 = vsel %vm541, %v536, %v540
      %s543 = vtos %v542
      %s544 = smul.f32 %s535, %s543
      %v549 = vrot.slane %v493, 6
      %v550 = vrot.slane %v496, 6
      %v551 = vsel %vm441, %v549, %v550
      %v552 = vrot.slane %v516, 6
      %v553 = vrot.slane %v519, 6
      %v554 = vsel %vm441, %v552, %v553
      %v557 = vsel %vm435, %v551, 0.0
      %v558 = vsel %vm435, %v554, 0.0
      %v559 = vadd.f32 %v557, %v558
      %560 = vadd.xlane.f32.xlu0 %v559
      %v561 = vpop.xlane.xlu0 %560
      %v562 = vrot.slane %v561, 4
      %v563 = vadd.f32 %v561, %v562
      %v564 = vrot.slane %v563, 2
      %v565 = vadd.f32 %v563, %v564
      %v566 = vrot.slane %v565, 1
      %v567 = vadd.f32 %v565, %v566
      %s568 = vtos %v567
      %v569 = vrcp.pop 1536.0
      %v570 = vmul.f32 1536.0, %v569
      %v571 = vsub.f32 1.0, %v570
      %v572 = vmul.f32 %v569, %v571
      %v573 = vadd.f32 %v569, %v572
      %vm574 = vweird.f32 %v569
      %v575 = vsel %vm574, %v569, %v573
      %s576 = vtos %v575
      %s577 = smul.f32 %s568, %s576
      %vm578 = vcmp.lt.s32.totalorder %v522, 6
      %vm579 = vcmp.lt.s32.totalorder %v523, 6
      %v580 = vstv %s544
      %v581 = vstv %s577
      %v582 = vsel %vm578, %v580, %v581
      %v583 = vsel %vm579, %v580, %v581
      %v584 = vsub.f32 %v493, %v582
      %v585 = vsub.f32 %v516, %v582
      %v586 = vsub.f32 %v496, %v583
      %v587 = vsub.f32 %v519, %v583
      %v588 = vmul.f32 %v584, %v584
      %v589 = vmul.f32 %v585, %v585
      %v590 = vsel %vm435, %v588, 0.0
      %v591 = vsel %vm435, %v589, 0.0
      %v592 = vadd.f32 %v590, %v591
      %593 = vadd.xlane.f32.xlu0 %v592
      %v594 = vpop.xlane.xlu0 %593
      %v595 = vrot.slane %v594, 4
      %v596 = vadd.f32 %v594, %v595
      %v597 = vrot.slane %v596, 2
      %v598 = vadd.f32 %v596, %v597
      %v599 = vrot.slane %v598, 1
      %v600 = vadd.f32 %v598, %v599
      %s601 = vtos %v600
      %v602 = vrcp.pop 1536.0
      %v603 = vmul.f32 1536.0, %v602
      %v604 = vsub.f32 1.0, %v603
      %v605 = vmul.f32 %v602, %v604
      %v606 = vadd.f32 %v602, %v605
      %vm607 = vweird.f32 %v602
      %v608 = vsel %vm607, %v602, %v606
      %s609 = vtos %v608
      %s610 = smul.f32 %s601, %s609
      %v611 = vmul.f32 %v586, %v586
      %v612 = vmul.f32 %v587, %v587
      %v617 = vrot.slane %v588, 6
      %v618 = vrot.slane %v611, 6
      %v619 = vsel %vm441, %v617, %v618
      %v620 = vrot.slane %v589, 6
      %v621 = vrot.slane %v612, 6
      %v622 = vsel %vm441, %v620, %v621
      %v625 = vsel %vm435, %v619, 0.0
      %v626 = vsel %vm435, %v622, 0.0
      %v627 = vadd.f32 %v625, %v626
      %628 = vadd.xlane.f32.xlu0 %v627
      %v629 = vpop.xlane.xlu0 %628
      %v630 = vrot.slane %v629, 4
      %v631 = vadd.f32 %v629, %v630
      %v632 = vrot.slane %v631, 2
      %v633 = vadd.f32 %v631, %v632
      %v634 = vrot.slane %v633, 1
      %v635 = vadd.f32 %v633, %v634
      %s636 = vtos %v635
      %v637 = vrcp.pop 1536.0
      %v638 = vmul.f32 1536.0, %v637
      %v639 = vsub.f32 1.0, %v638
      %v640 = vmul.f32 %v637, %v639
      %v641 = vadd.f32 %v637, %v640
      %vm642 = vweird.f32 %v637
      %v643 = vsel %vm642, %v637, %v641
      %s644 = vtos %v643
      %s645 = smul.f32 %s636, %s644
      %s646 = sadd.f32 %s610, 1e-05
      %v647 = vstv %s646
      %v648 = vrsqrt.pop %v647
      %v649 = vmul.f32 %v648, %v647
      %v650 = vmul.f32 %v649, %v648
      %v651 = vmul.f32 0.5, %v650
      %v652 = vsub.f32 1.5, %v651
      %v653 = vmul.f32 %v648, %v652
      %vm654 = vweird.f32 %v647
      %vm655 = vweird.f32 %v648
      %vm656 = vmor %vm654, %vm655
      %v657 = vsel %vm656, %v648, %v653
      %s658 = vtos %v657
      %s659 = sadd.f32 %s645, 1e-05
      %v660 = vstv %s659
      %v661 = vrsqrt.pop %v660
      %v662 = vmul.f32 %v661, %v660
      %v663 = vmul.f32 %v662, %v661
      %v664 = vmul.f32 0.5, %v663
      %v665 = vsub.f32 1.5, %v664
      %v666 = vmul.f32 %v661, %v665
      %vm667 = vweird.f32 %v660
      %vm668 = vweird.f32 %v661
      %vm669 = vmor %vm667, %vm668
      %v670 = vsel %vm669, %v661, %v666
      %s671 = vtos %v670
      %v672 = vstv %s658
      %v673 = vstv %s671
      %v674 = vsel %vm578, %v672, %v673
      %v675 = vsel %vm579, %v672, %v673
      %v676 = vmul.f32 %v584, %v674
      %v677 = vmul.f32 %v585, %v674
      %v678 = vmul.f32 %v586, %v675
      %v679 = vmul.f32 %v587, %v675
      %680 = vset.pattern.permute.xlu0 1
      %681 = vperm.xlu0 %680, %v309
      %v682 = vpop.permute.xlu0 %681
      %684 = vset.pattern.permute.xlu0 1
      %685 = vperm.xlu0 %684, %v310
      %v686 = vpop.permute.xlu0 %685
      %v688 = vmul.f32 %v676, %v682
      %v689 = vmul.f32 %v677, %v682
      %v690 = vmul.f32 %v678, %v686
      %v691 = vmul.f32 %v679, %v686
      %692 = vset.pattern.permute.xlu0 2
      %693 = vperm.xlu0 %692, %v309
      %v694 = vpop.permute.xlu0 %693
      %696 = vset.pattern.permute.xlu0 2
      %697 = vperm.xlu0 %696, %v310
      %v698 = vpop.permute.xlu0 %697
      %v700 = vadd.f32 %v688, %v694
      %v701 = vadd.f32 %v689, %v694
      %v702 = vadd.f32 %v690, %v698
      %v703 = vadd.f32 %v691, %v698
      %v704 = vmax.f32 %v700, 0.0
      %v705 = vmax.f32 %v701, 0.0
      %v706 = vmax.f32 %v702, 0.0
      %v707 = vmax.f32 %v703, 0.0
      %v708 = vand.u32 2147483647, %v700
      %v709 = vand.u32 2147483647, %v701
      %v710 = vand.u32 2147483647, %v702
      %v711 = vand.u32 2147483647, %v703
      %v712 = vsub.f32 0.0, %v708
      %v713 = vsub.f32 0.0, %v709
      %v714 = vsub.f32 0.0, %v710
      %v715 = vsub.f32 0.0, %v711
      %v716 = vmul.f32 %v712, 1.442695
      %v717 = vpow.pop %v716
      %v718 = vmul.f32 %v713, 1.442695
      %v719 = vpow.pop %v718
      %v720 = vmul.f32 %v714, 1.442695
      %v721 = vpow.pop %v720
      %v722 = vmul.f32 %v715, 1.442695
      %v723 = vpow.pop %v722
      %v724 = vadd.f32 %v717, 1.0
      %v725 = vadd.f32 %v719, 1.0
      %v726 = vadd.f32 %v721, 1.0
      %v727 = vadd.f32 %v723, 1.0
      %v728 = vlog2.pop %v724
      %v729 = vmul.f32 %v728, 0.6931472
      %v730 = vlog2.pop %v725
      %v731 = vmul.f32 %v730, 0.6931472
      %v732 = vlog2.pop %v726
      %v733 = vmul.f32 %v732, 0.6931472
      %v734 = vlog2.pop %v727
      %v735 = vmul.f32 %v734, 0.6931472
      %v736 = vadd.f32 %v704, %v729
      %v737 = vadd.f32 %v705, %v731
      %v738 = vadd.f32 %v706, %v733
      %v739 = vadd.f32 %v707, %v735
      %v740 = vtanh.pop %v736
      %v741 = vtanh.pop %v737
      %v742 = vtanh.pop %v738
      %v743 = vtanh.pop %v739
      %v744 = vmul.f32 %v700, %v740
      %v745 = vmul.f32 %v701, %v741
      %v746 = vmul.f32 %v702, %v742
      %v747 = vmul.f32 %v703, %v743
      %v748 = vld [vmem:[%s4] sm:$0xff]
      %v749 = vld [vmem:[%s4 + $0x8] sm:$0xf]
      %750 = vrot.lane.b32.xlu0 %v744, 2
      %v751 = vpop.permute.xlu0 %750
      %752 = vrot.lane.b32.xlu0 %v746, 2
      %v753 = vpop.permute.xlu0 %752
      %754 = vrot.lane.b32.xlu0 %v745, 2
      %v755 = vpop.permute.xlu0 %754
      %756 = vrot.lane.b32.xlu0 %v747, 2
      %v757 = vpop.permute.xlu0 %756
      %vm758 = vcmp.lt.s32.totalorder %v320, 2
      %v759 = vsel %vm758, %v751, %v755
      %v760 = vsel %vm758, %v753, %v757
      %v761 = vsel %vm758, %v755, %v751
      %v762 = vsel %vm758, %v757, %v753
      %763 = vrot.lane.b32.xlu0 %v744, 114
      %v764 = vpop.permute.xlu0 %763
      %765 = vrot.lane.b32.xlu0 %v746, 114
      %v766 = vpop.permute.xlu0 %765
      %767 = vrot.lane.b32.xlu0 %v745, 114
      %v768 = vpop.permute.xlu0 %767
      %769 = vrot.lane.b32.xlu0 %v747, 114
      %v770 = vpop.permute.xlu0 %769
      %vm771 = vcmp.lt.s32.totalorder %v320, 114
      %v772 = vsel %vm771, %v764, %v768
      %v773 = vsel %vm771, %v766, %v770
      %v774 = vsel %vm771, %v768, %v764
      %v775 = vsel %vm771, %v770, %v766
      %vm776 = vcmp.ge.s32.totalorder %v308, 2
      %v777 = vsel %vm776, 1, 0
      %v778 = vperm.slane %v777, 0
      %v779 = vperm.slane %v777, 1
      %vm780 = vcmp.eq.s32.totalorder %v778, 1
      %vm781 = vcmp.eq.s32.totalorder %v779, 1
      %v782 = vsel %vm780, %v761, %v772
      %v783 = vsel %vm781, %v759, %v774
      %v784 = vsel %vm780, %v762, %v773
      %v785 = vsel %vm781, %v760, %v775
      %786 = vrot.lane.b32.xlu0 %v744, 1
      %v787 = vpop.permute.xlu0 %786
      %788 = vrot.lane.b32.xlu0 %v746, 1
      %v789 = vpop.permute.xlu0 %788
      %790 = vrot.lane.b32.xlu0 %v745, 1
      %v791 = vpop.permute.xlu0 %790
      %792 = vrot.lane.b32.xlu0 %v747, 1
      %v793 = vpop.permute.xlu0 %792
      %v794 = vsel %vm321, %v787, %v791
      %v795 = vsel %vm321, %v789, %v793
      %v796 = vsel %vm321, %v791, %v787
      %v797 = vsel %vm321, %v793, %v789
      %798 = vrot.lane.b32.xlu0 %v744, 113
      %v799 = vpop.permute.xlu0 %798
      %800 = vrot.lane.b32.xlu0 %v746, 113
      %v801 = vpop.permute.xlu0 %800
      %802 = vrot.lane.b32.xlu0 %v745, 113
      %v803 = vpop.permute.xlu0 %802
      %804 = vrot.lane.b32.xlu0 %v747, 113
      %v805 = vpop.permute.xlu0 %804
      %v806 = vsel %vm328, %v799, %v803
      %v807 = vsel %vm328, %v801, %v805
      %v808 = vsel %vm328, %v803, %v799
      %v809 = vsel %vm328, %v805, %v801
      %v810 = vsel %vm335, %v796, %v806
      %v811 = vsel %vm336, %v794, %v808
      %v812 = vsel %vm335, %v797, %v807
      %v813 = vsel %vm336, %v795, %v809
      %814 = vrot.lane.b32.xlu0 %v744, 127
      %v815 = vpop.permute.xlu0 %814
      %816 = vrot.lane.b32.xlu0 %v746, 127
      %v817 = vpop.permute.xlu0 %816
      %818 = vrot.lane.b32.xlu0 %v745, 127
      %v819 = vpop.permute.xlu0 %818
      %820 = vrot.lane.b32.xlu0 %v747, 127
      %v821 = vpop.permute.xlu0 %820
      %v822 = vsel %vm343, %v815, %v819
      %v823 = vsel %vm343, %v817, %v821
      %v824 = vsel %vm343, %v819, %v815
      %v825 = vsel %vm343, %v821, %v817
      %826 = vrot.lane.b32.xlu0 %v744, 15
      %v827 = vpop.permute.xlu0 %826
      %828 = vrot.lane.b32.xlu0 %v746, 15
      %v829 = vpop.permute.xlu0 %828
      %830 = vrot.lane.b32.xlu0 %v745, 15
      %v831 = vpop.permute.xlu0 %830
      %832 = vrot.lane.b32.xlu0 %v747, 15
      %v833 = vpop.permute.xlu0 %832
      %v834 = vsel %vm350, %v827, %v831
      %v835 = vsel %vm350, %v829, %v833
      %v836 = vsel %vm350, %v831, %v827
      %v837 = vsel %vm350, %v833, %v829
      %v838 = vsel %vm357, %v822, %v836
      %v839 = vsel %vm358, %v824, %v834
      %v840 = vsel %vm357, %v823, %v837
      %v841 = vsel %vm358, %v825, %v835
      %842 = vrot.lane.b32.xlu0 %v744, 126
      %v843 = vpop.permute.xlu0 %842
      %844 = vrot.lane.b32.xlu0 %v746, 126
      %v845 = vpop.permute.xlu0 %844
      %846 = vrot.lane.b32.xlu0 %v745, 126
      %v847 = vpop.permute.xlu0 %846
      %848 = vrot.lane.b32.xlu0 %v747, 126
      %v849 = vpop.permute.xlu0 %848
      %vm850 = vcmp.lt.s32.totalorder %v320, 126
      %v851 = vsel %vm850, %v843, %v847
      %v852 = vsel %vm850, %v845, %v849
      %v853 = vsel %vm850, %v847, %v843
      %v854 = vsel %vm850, %v849, %v845
      %855 = vrot.lane.b32.xlu0 %v744, 14
      %v856 = vpop.permute.xlu0 %855
      %857 = vrot.lane.b32.xlu0 %v746, 14
      %v858 = vpop.permute.xlu0 %857
      %859 = vrot.lane.b32.xlu0 %v745, 14
      %v860 = vpop.permute.xlu0 %859
      %861 = vrot.lane.b32.xlu0 %v747, 14
      %v862 = vpop.permute.xlu0 %861
      %vm863 = vcmp.lt.s32.totalorder %v320, 14
      %v864 = vsel %vm863, %v856, %v860
      %v865 = vsel %vm863, %v858, %v862
      %v866 = vsel %vm863, %v860, %v856
      %v867 = vsel %vm863, %v862, %v858
      %vm868 = vcmp.lt.s32.totalorder %v308, 14
      %v869 = vsel %vm868, 1, 0
      %v870 = vperm.slane %v869, 0
      %v871 = vperm.slane %v869, 1
      %vm872 = vcmp.eq.s32.totalorder %v870, 1
      %vm873 = vcmp.eq.s32.totalorder %v871, 1
      %v874 = vsel %vm872, %v851, %v866
      %v875 = vsel %vm873, %v853, %v864
      %v876 = vsel %vm872, %v852, %v867
      %v877 = vsel %vm873, %v854, %v865
      %878 = vrot.lane.b32.xlu0 %v782, 32
      %v879 = vpop.permute.xlu0 %878
      %880 = vrot.lane.b32.xlu0 %v784, 32
      %v881 = vpop.permute.xlu0 %880
      %882 = vrot.lane.b32.xlu0 %v783, 32
      %v883 = vpop.permute.xlu0 %882
      %884 = vrot.lane.b32.xlu0 %v785, 32
      %v885 = vpop.permute.xlu0 %884
      %vm886 = vcmp.lt.s32.totalorder %v320, 32
      %v887 = vsel %vm886, %v879, %v883
      %v888 = vsel %vm886, %v881, %v885
      %v889 = vsel %vm886, %v883, %v879
      %v890 = vsel %vm886, %v885, %v881
      %892 = vset.pattern.permute.xlu0 0
      %893 = vperm.xlu0 %892, %v748
      %v894 = vpop.permute.xlu0 %893
      %897 = vset.pattern.permute.xlu0 0
      %898 = vperm.xlu0 %897, %v749
      %v899 = vpop.permute.xlu0 %898
      %v901 = vmul.f32 %v894, %v889
      %v902 = vmul.f32 %v894, %v887
      %v903 = vmul.f32 %v899, %v890
      %v904 = vmul.f32 %v899, %v888
      %905 = vrot.lane.b32.xlu0 %v810, 32
      %v906 = vpop.permute.xlu0 %905
      %907 = vrot.lane.b32.xlu0 %v812, 32
      %v908 = vpop.permute.xlu0 %907
      %909 = vrot.lane.b32.xlu0 %v811, 32
      %v910 = vpop.permute.xlu0 %909
      %911 = vrot.lane.b32.xlu0 %v813, 32
      %v912 = vpop.permute.xlu0 %911
      %v913 = vsel %vm886, %v906, %v910
      %v914 = vsel %vm886, %v908, %v912
      %v915 = vsel %vm886, %v910, %v906
      %v916 = vsel %vm886, %v912, %v908
      %917 = vset.pattern.permute.xlu0 1
      %918 = vperm.xlu0 %917, %v748
      %v919 = vpop.permute.xlu0 %918
      %921 = vset.pattern.permute.xlu0 1
      %922 = vperm.xlu0 %921, %v749
      %v923 = vpop.permute.xlu0 %922
      %v925 = vmul.f32 %v919, %v915
      %v926 = vmul.f32 %v919, %v913
      %v927 = vmul.f32 %v923, %v916
      %v928 = vmul.f32 %v923, %v914
      %v929 = vadd.f32 %v901, %v925
      %v930 = vadd.f32 %v902, %v926
      %v931 = vadd.f32 %v903, %v927
      %v932 = vadd.f32 %v904, %v928
      %933 = vrot.lane.b32.xlu0 %v744, 32
      %v934 = vpop.permute.xlu0 %933
      %935 = vrot.lane.b32.xlu0 %v746, 32
      %v936 = vpop.permute.xlu0 %935
      %937 = vrot.lane.b32.xlu0 %v745, 32
      %v938 = vpop.permute.xlu0 %937
      %939 = vrot.lane.b32.xlu0 %v747, 32
      %v940 = vpop.permute.xlu0 %939
      %v941 = vsel %vm886, %v934, %v938
      %v942 = vsel %vm886, %v936, %v940
      %v943 = vsel %vm886, %v938, %v934
      %v944 = vsel %vm886, %v940, %v936
      %945 = vset.pattern.permute.xlu0 2
      %946 = vperm.xlu0 %945, %v748
      %v947 = vpop.permute.xlu0 %946
      %949 = vset.pattern.permute.xlu0 2
      %950 = vperm.xlu0 %949, %v749
      %v951 = vpop.permute.xlu0 %950
      %v953 = vmul.f32 %v947, %v943
      %v954 = vmul.f32 %v947, %v941
      %v955 = vmul.f32 %v951, %v944
      %v956 = vmul.f32 %v951, %v942
      %v957 = vadd.f32 %v929, %v953
      %v958 = vadd.f32 %v930, %v954
      %v959 = vadd.f32 %v931, %v955
      %v960 = vadd.f32 %v932, %v956
      %961 = vrot.lane.b32.xlu0 %v838, 32
      %v962 = vpop.permute.xlu0 %961
      %963 = vrot.lane.b32.xlu0 %v840, 32
      %v964 = vpop.permute.xlu0 %963
      %965 = vrot.lane.b32.xlu0 %v839, 32
      %v966 = vpop.permute.xlu0 %965
      %967 = vrot.lane.b32.xlu0 %v841, 32
      %v968 = vpop.permute.xlu0 %967
      %v969 = vsel %vm886, %v962, %v966
      %v970 = vsel %vm886, %v964, %v968
      %v971 = vsel %vm886, %v966, %v962
      %v972 = vsel %vm886, %v968, %v964
      %973 = vset.pattern.permute.xlu0 3
      %974 = vperm.xlu0 %973, %v748
      %v975 = vpop.permute.xlu0 %974
      %977 = vset.pattern.permute.xlu0 3
      %978 = vperm.xlu0 %977, %v749
      %v979 = vpop.permute.xlu0 %978
      %v981 = vmul.f32 %v975, %v971
      %v982 = vmul.f32 %v975, %v969
      %v983 = vmul.f32 %v979, %v972
      %v984 = vmul.f32 %v979, %v970
      %v985 = vadd.f32 %v957, %v981
      %v986 = vadd.f32 %v958, %v982
      %v987 = vadd.f32 %v959, %v983
      %v988 = vadd.f32 %v960, %v984
      %989 = vrot.lane.b32.xlu0 %v874, 32
      %v990 = vpop.permute.xlu0 %989
      %991 = vrot.lane.b32.xlu0 %v876, 32
      %v992 = vpop.permute.xlu0 %991
      %993 = vrot.lane.b32.xlu0 %v875, 32
      %v994 = vpop.permute.xlu0 %993
      %995 = vrot.lane.b32.xlu0 %v877, 32
      %v996 = vpop.permute.xlu0 %995
      %v997 = vsel %vm886, %v990, %v994
      %v998 = vsel %vm886, %v992, %v996
      %v999 = vsel %vm886, %v994, %v990
      %v1000 = vsel %vm886, %v996, %v992
      %1001 = vset.pattern.permute.xlu0 4
      %1002 = vperm.xlu0 %1001, %v748
      %v1003 = vpop.permute.xlu0 %1002
      %1005 = vset.pattern.permute.xlu0 4
      %1006 = vperm.xlu0 %1005, %v749
      %v1007 = vpop.permute.xlu0 %1006
      %v1009 = vmul.f32 %v1003, %v999
      %v1010 = vmul.f32 %v1003, %v997
      %v1011 = vmul.f32 %v1007, %v1000
      %v1012 = vmul.f32 %v1007, %v998
      %v1013 = vadd.f32 %v985, %v1009
      %v1014 = vadd.f32 %v986, %v1010
      %v1015 = vadd.f32 %v987, %v1011
      %v1016 = vadd.f32 %v988, %v1012
      %1017 = vrot.lane.b32.xlu0 %v782, 16
      %v1018 = vpop.permute.xlu0 %1017
      %1019 = vrot.lane.b32.xlu0 %v784, 16
      %v1020 = vpop.permute.xlu0 %1019
      %1021 = vrot.lane.b32.xlu0 %v783, 16
      %v1022 = vpop.permute.xlu0 %1021
      %1023 = vrot.lane.b32.xlu0 %v785, 16
      %v1024 = vpop.permute.xlu0 %1023
      %v1025 = vsel %vm365, %v1018, %v1022
      %v1026 = vsel %vm365, %v1020, %v1024
      %v1027 = vsel %vm365, %v1022, %v1018
      %v1028 = vsel %vm365, %v1024, %v1020
      %1029 = vset.pattern.permute.xlu0 5
      %1030 = vperm.xlu0 %1029, %v748
      %v1031 = vpop.permute.xlu0 %1030
      %1033 = vset.pattern.permute.xlu0 5
      %1034 = vperm.xlu0 %1033, %v749
      %v1035 = vpop.permute.xlu0 %1034
      %v1037 = vmul.f32 %v1031, %v1027
      %v1038 = vmul.f32 %v1031, %v1025
      %v1039 = vmul.f32 %v1035, %v1028
      %v1040 = vmul.f32 %v1035, %v1026
      %v1041 = vadd.f32 %v1013, %v1037
      %v1042 = vadd.f32 %v1014, %v1038
      %v1043 = vadd.f32 %v1015, %v1039
      %v1044 = vadd.f32 %v1016, %v1040
      %1045 = vrot.lane.b32.xlu0 %v810, 16
      %v1046 = vpop.permute.xlu0 %1045
      %1047 = vrot.lane.b32.xlu0 %v812, 16
      %v1048 = vpop.permute.xlu0 %1047
      %1049 = vrot.lane.b32.xlu0 %v811, 16
      %v1050 = vpop.permute.xlu0 %1049
      %1051 = vrot.lane.b32.xlu0 %v813, 16
      %v1052 = vpop.permute.xlu0 %1051
      %v1053 = vsel %vm365, %v1046, %v1050
      %v1054 = vsel %vm365, %v1048, %v1052
      %v1055 = vsel %vm365, %v1050, %v1046
      %v1056 = vsel %vm365, %v1052, %v1048
      %1057 = vset.pattern.permute.xlu0 6
      %1058 = vperm.xlu0 %1057, %v748
      %v1059 = vpop.permute.xlu0 %1058
      %1061 = vset.pattern.permute.xlu0 6
      %1062 = vperm.xlu0 %1061, %v749
      %v1063 = vpop.permute.xlu0 %1062
      %v1065 = vmul.f32 %v1059, %v1055
      %v1066 = vmul.f32 %v1059, %v1053
      %v1067 = vmul.f32 %v1063, %v1056
      %v1068 = vmul.f32 %v1063, %v1054
      %v1069 = vadd.f32 %v1041, %v1065
      %v1070 = vadd.f32 %v1042, %v1066
      %v1071 = vadd.f32 %v1043, %v1067
      %v1072 = vadd.f32 %v1044, %v1068
      %1073 = vrot.lane.b32.xlu0 %v744, 16
      %v1074 = vpop.permute.xlu0 %1073
      %1075 = vrot.lane.b32.xlu0 %v746, 16
      %v1076 = vpop.permute.xlu0 %1075
      %1077 = vrot.lane.b32.xlu0 %v745, 16
      %v1078 = vpop.permute.xlu0 %1077
      %1079 = vrot.lane.b32.xlu0 %v747, 16
      %v1080 = vpop.permute.xlu0 %1079
      %v1081 = vsel %vm365, %v1074, %v1078
      %v1082 = vsel %vm365, %v1076, %v1080
      %v1083 = vsel %vm365, %v1078, %v1074
      %v1084 = vsel %vm365, %v1080, %v1076
      %1085 = vset.pattern.permute.xlu0 7
      %1086 = vperm.xlu0 %1085, %v748
      %v1087 = vpop.permute.xlu0 %1086
      %1089 = vset.pattern.permute.xlu0 7
      %1090 = vperm.xlu0 %1089, %v749
      %v1091 = vpop.permute.xlu0 %1090
      %v1093 = vmul.f32 %v1087, %v1083
      %v1094 = vmul.f32 %v1087, %v1081
      %v1095 = vmul.f32 %v1091, %v1084
      %v1096 = vmul.f32 %v1091, %v1082
      %v1097 = vadd.f32 %v1069, %v1093
      %v1098 = vadd.f32 %v1070, %v1094
      %v1099 = vadd.f32 %v1071, %v1095
      %v1100 = vadd.f32 %v1072, %v1096
      %1101 = vrot.lane.b32.xlu0 %v838, 16
      %v1102 = vpop.permute.xlu0 %1101
      %1103 = vrot.lane.b32.xlu0 %v840, 16
      %v1104 = vpop.permute.xlu0 %1103
      %1105 = vrot.lane.b32.xlu0 %v839, 16
      %v1106 = vpop.permute.xlu0 %1105
      %1107 = vrot.lane.b32.xlu0 %v841, 16
      %v1108 = vpop.permute.xlu0 %1107
      %v1109 = vsel %vm365, %v1102, %v1106
      %v1110 = vsel %vm365, %v1104, %v1108
      %v1111 = vsel %vm365, %v1106, %v1102
      %v1112 = vsel %vm365, %v1108, %v1104
      %1113 = vset.pattern.permute.xlu0 8
      %1114 = vperm.xlu0 %1113, %v748
      %v1115 = vpop.permute.xlu0 %1114
      %1117 = vset.pattern.permute.xlu0 8
      %1118 = vperm.xlu0 %1117, %v749
      %v1119 = vpop.permute.xlu0 %1118
      %v1121 = vmul.f32 %v1115, %v1111
      %v1122 = vmul.f32 %v1115, %v1109
      %v1123 = vmul.f32 %v1119, %v1112
      %v1124 = vmul.f32 %v1119, %v1110
      %v1125 = vadd.f32 %v1097, %v1121
      %v1126 = vadd.f32 %v1098, %v1122
      %v1127 = vadd.f32 %v1099, %v1123
      %v1128 = vadd.f32 %v1100, %v1124
      %1129 = vrot.lane.b32.xlu0 %v874, 16
      %v1130 = vpop.permute.xlu0 %1129
      %1131 = vrot.lane.b32.xlu0 %v876, 16
      %v1132 = vpop.permute.xlu0 %1131
      %1133 = vrot.lane.b32.xlu0 %v875, 16
      %v1134 = vpop.permute.xlu0 %1133
      %1135 = vrot.lane.b32.xlu0 %v877, 16
      %v1136 = vpop.permute.xlu0 %1135
      %v1137 = vsel %vm365, %v1130, %v1134
      %v1138 = vsel %vm365, %v1132, %v1136
      %v1139 = vsel %vm365, %v1134, %v1130
      %v1140 = vsel %vm365, %v1136, %v1132
      %1141 = vset.pattern.permute.xlu0 9
      %1142 = vperm.xlu0 %1141, %v748
      %v1143 = vpop.permute.xlu0 %1142
      %1145 = vset.pattern.permute.xlu0 9
      %1146 = vperm.xlu0 %1145, %v749
      %v1147 = vpop.permute.xlu0 %1146
      %v1149 = vmul.f32 %v1143, %v1139
      %v1150 = vmul.f32 %v1143, %v1137
      %v1151 = vmul.f32 %v1147, %v1140
      %v1152 = vmul.f32 %v1147, %v1138
      %v1153 = vadd.f32 %v1125, %v1149
      %v1154 = vadd.f32 %v1126, %v1150
      %v1155 = vadd.f32 %v1127, %v1151
      %v1156 = vadd.f32 %v1128, %v1152
      %1157 = vset.pattern.permute.xlu0 10
      %1158 = vperm.xlu0 %1157, %v748
      %v1159 = vpop.permute.xlu0 %1158
      %1161 = vset.pattern.permute.xlu0 10
      %1162 = vperm.xlu0 %1161, %v749
      %v1163 = vpop.permute.xlu0 %1162
      %v1165 = vmul.f32 %v1159, %v782
      %v1166 = vmul.f32 %v1159, %v783
      %v1167 = vmul.f32 %v1163, %v784
      %v1168 = vmul.f32 %v1163, %v785
      %v1169 = vadd.f32 %v1153, %v1165
      %v1170 = vadd.f32 %v1154, %v1166
      %v1171 = vadd.f32 %v1155, %v1167
      %v1172 = vadd.f32 %v1156, %v1168
      %1173 = vset.pattern.permute.xlu0 11
      %1174 = vperm.xlu0 %1173, %v748
      %v1175 = vpop.permute.xlu0 %1174
      %1177 = vset.pattern.permute.xlu0 11
      %1178 = vperm.xlu0 %1177, %v749
      %v1179 = vpop.permute.xlu0 %1178
      %v1181 = vmul.f32 %v1175, %v810
      %v1182 = vmul.f32 %v1175, %v811
      %v1183 = vmul.f32 %v1179, %v812
      %v1184 = vmul.f32 %v1179, %v813
      %v1185 = vadd.f32 %v1169, %v1181
      %v1186 = vadd.f32 %v1170, %v1182
      %v1187 = vadd.f32 %v1171, %v1183
      %v1188 = vadd.f32 %v1172, %v1184
      %1189 = vset.pattern.permute.xlu0 12
      %1190 = vperm.xlu0 %1189, %v748
      %v1191 = vpop.permute.xlu0 %1190
      %1193 = vset.pattern.permute.xlu0 12
      %1194 = vperm.xlu0 %1193, %v749
      %v1195 = vpop.permute.xlu0 %1194
      %v1197 = vmul.f32 %v1191, %v744
      %v1198 = vmul.f32 %v1191, %v745
      %v1199 = vmul.f32 %v1195, %v746
      %v1200 = vmul.f32 %v1195, %v747
      %v1201 = vadd.f32 %v1185, %v1197
      %v1202 = vadd.f32 %v1186, %v1198
      %v1203 = vadd.f32 %v1187, %v1199
      %v1204 = vadd.f32 %v1188, %v1200
      %1205 = vset.pattern.permute.xlu0 13
      %1206 = vperm.xlu0 %1205, %v748
      %v1207 = vpop.permute.xlu0 %1206
      %1209 = vset.pattern.permute.xlu0 13
      %1210 = vperm.xlu0 %1209, %v749
      %v1211 = vpop.permute.xlu0 %1210
      %v1213 = vmul.f32 %v1207, %v838
      %v1214 = vmul.f32 %v1207, %v839
      %v1215 = vmul.f32 %v1211, %v840
      %v1216 = vmul.f32 %v1211, %v841
      %v1217 = vadd.f32 %v1201, %v1213
      %v1218 = vadd.f32 %v1202, %v1214
      %v1219 = vadd.f32 %v1203, %v1215
      %v1220 = vadd.f32 %v1204, %v1216
      %1221 = vset.pattern.permute.xlu0 14
      %1222 = vperm.xlu0 %1221, %v748
      %v1223 = vpop.permute.xlu0 %1222
      %1225 = vset.pattern.permute.xlu0 14
      %1226 = vperm.xlu0 %1225, %v749
      %v1227 = vpop.permute.xlu0 %1226
      %v1229 = vmul.f32 %v1223, %v874
      %v1230 = vmul.f32 %v1223, %v875
      %v1231 = vmul.f32 %v1227, %v876
      %v1232 = vmul.f32 %v1227, %v877
      %v1233 = vadd.f32 %v1217, %v1229
      %v1234 = vadd.f32 %v1218, %v1230
      %v1235 = vadd.f32 %v1219, %v1231
      %v1236 = vadd.f32 %v1220, %v1232
      %1237 = vrot.lane.b32.xlu0 %v782, 112
      %v1238 = vpop.permute.xlu0 %1237
      %1239 = vrot.lane.b32.xlu0 %v784, 112
      %v1240 = vpop.permute.xlu0 %1239
      %1241 = vrot.lane.b32.xlu0 %v783, 112
      %v1242 = vpop.permute.xlu0 %1241
      %1243 = vrot.lane.b32.xlu0 %v785, 112
      %v1244 = vpop.permute.xlu0 %1243
      %v1245 = vsel %vm384, %v1238, %v1242
      %v1246 = vsel %vm384, %v1240, %v1244
      %v1247 = vsel %vm384, %v1242, %v1238
      %v1248 = vsel %vm384, %v1244, %v1240
      %1249 = vset.pattern.permute.xlu0 15
      %1250 = vperm.xlu0 %1249, %v748
      %v1251 = vpop.permute.xlu0 %1250
      %1253 = vset.pattern.permute.xlu0 15
      %1254 = vperm.xlu0 %1253, %v749
      %v1255 = vpop.permute.xlu0 %1254
      %v1257 = vmul.f32 %v1251, %v1245
      %v1258 = vmul.f32 %v1251, %v1247
      %v1259 = vmul.f32 %v1255, %v1246
      %v1260 = vmul.f32 %v1255, %v1248
      %v1261 = vadd.f32 %v1233, %v1257
      %v1262 = vadd.f32 %v1234, %v1258
      %v1263 = vadd.f32 %v1235, %v1259
      %v1264 = vadd.f32 %v1236, %v1260
      %1265 = vrot.lane.b32.xlu0 %v810, 112
      %v1266 = vpop.permute.xlu0 %1265
      %1267 = vrot.lane.b32.xlu0 %v812, 112
      %v1268 = vpop.permute.xlu0 %1267
      %1269 = vrot.lane.b32.xlu0 %v811, 112
      %v1270 = vpop.permute.xlu0 %1269
      %1271 = vrot.lane.b32.xlu0 %v813, 112
      %v1272 = vpop.permute.xlu0 %1271
      %v1273 = vsel %vm384, %v1266, %v1270
      %v1274 = vsel %vm384, %v1268, %v1272
      %v1275 = vsel %vm384, %v1270, %v1266
      %v1276 = vsel %vm384, %v1272, %v1268
      %1277 = vset.pattern.permute.xlu0 16
      %1278 = vperm.xlu0 %1277, %v748
      %v1279 = vpop.permute.xlu0 %1278
      %1281 = vset.pattern.permute.xlu0 16
      %1282 = vperm.xlu0 %1281, %v749
      %v1283 = vpop.permute.xlu0 %1282
      %v1285 = vmul.f32 %v1279, %v1273
      %v1286 = vmul.f32 %v1279, %v1275
      %v1287 = vmul.f32 %v1283, %v1274
      %v1288 = vmul.f32 %v1283, %v1276
      %v1289 = vadd.f32 %v1261, %v1285
      %v1290 = vadd.f32 %v1262, %v1286
      %v1291 = vadd.f32 %v1263, %v1287
      %v1292 = vadd.f32 %v1264, %v1288
      %1293 = vrot.lane.b32.xlu0 %v744, 112
      %v1294 = vpop.permute.xlu0 %1293
      %1295 = vrot.lane.b32.xlu0 %v746, 112
      %v1296 = vpop.permute.xlu0 %1295
      %1297 = vrot.lane.b32.xlu0 %v745, 112
      %v1298 = vpop.permute.xlu0 %1297
      %1299 = vrot.lane.b32.xlu0 %v747, 112
      %v1300 = vpop.permute.xlu0 %1299
      %v1301 = vsel %vm384, %v1294, %v1298
      %v1302 = vsel %vm384, %v1296, %v1300
      %v1303 = vsel %vm384, %v1298, %v1294
      %v1304 = vsel %vm384, %v1300, %v1296
      %1305 = vset.pattern.permute.xlu0 17
      %1306 = vperm.xlu0 %1305, %v748
      %v1307 = vpop.permute.xlu0 %1306
      %1309 = vset.pattern.permute.xlu0 17
      %1310 = vperm.xlu0 %1309, %v749
      %v1311 = vpop.permute.xlu0 %1310
      %v1313 = vmul.f32 %v1307, %v1301
      %v1314 = vmul.f32 %v1307, %v1303
      %v1315 = vmul.f32 %v1311, %v1302
      %v1316 = vmul.f32 %v1311, %v1304
      %v1317 = vadd.f32 %v1289, %v1313
      %v1318 = vadd.f32 %v1290, %v1314
      %v1319 = vadd.f32 %v1291, %v1315
      %v1320 = vadd.f32 %v1292, %v1316
      %1321 = vrot.lane.b32.xlu0 %v838, 112
      %v1322 = vpop.permute.xlu0 %1321
      %1323 = vrot.lane.b32.xlu0 %v840, 112
      %v1324 = vpop.permute.xlu0 %1323
      %1325 = vrot.lane.b32.xlu0 %v839, 112
      %v1326 = vpop.permute.xlu0 %1325
      %1327 = vrot.lane.b32.xlu0 %v841, 112
      %v1328 = vpop.permute.xlu0 %1327
      %v1329 = vsel %vm384, %v1322, %v1326
      %v1330 = vsel %vm384, %v1324, %v1328
      %v1331 = vsel %vm384, %v1326, %v1322
      %v1332 = vsel %vm384, %v1328, %v1324
      %1333 = vset.pattern.permute.xlu0 18
      %1334 = vperm.xlu0 %1333, %v748
      %v1335 = vpop.permute.xlu0 %1334
      %1337 = vset.pattern.permute.xlu0 18
      %1338 = vperm.xlu0 %1337, %v749
      %v1339 = vpop.permute.xlu0 %1338
      %v1341 = vmul.f32 %v1335, %v1329
      %v1342 = vmul.f32 %v1335, %v1331
      %v1343 = vmul.f32 %v1339, %v1330
      %v1344 = vmul.f32 %v1339, %v1332
      %v1345 = vadd.f32 %v1317, %v1341
      %v1346 = vadd.f32 %v1318, %v1342
      %v1347 = vadd.f32 %v1319, %v1343
      %v1348 = vadd.f32 %v1320, %v1344
      %1349 = vrot.lane.b32.xlu0 %v874, 112
      %v1350 = vpop.permute.xlu0 %1349
      %1351 = vrot.lane.b32.xlu0 %v876, 112
      %v1352 = vpop.permute.xlu0 %1351
      %1353 = vrot.lane.b32.xlu0 %v875, 112
      %v1354 = vpop.permute.xlu0 %1353
      %1355 = vrot.lane.b32.xlu0 %v877, 112
      %v1356 = vpop.permute.xlu0 %1355
      %v1357 = vsel %vm384, %v1350, %v1354
      %v1358 = vsel %vm384, %v1352, %v1356
      %v1359 = vsel %vm384, %v1354, %v1350
      %v1360 = vsel %vm384, %v1356, %v1352
      %1361 = vset.pattern.permute.xlu0 19
      %1362 = vperm.xlu0 %1361, %v748
      %v1363 = vpop.permute.xlu0 %1362
      %1365 = vset.pattern.permute.xlu0 19
      %1366 = vperm.xlu0 %1365, %v749
      %v1367 = vpop.permute.xlu0 %1366
      %v1369 = vmul.f32 %v1363, %v1357
      %v1370 = vmul.f32 %v1363, %v1359
      %v1371 = vmul.f32 %v1367, %v1358
      %v1372 = vmul.f32 %v1367, %v1360
      %v1373 = vadd.f32 %v1345, %v1369
      %v1374 = vadd.f32 %v1346, %v1370
      %v1375 = vadd.f32 %v1347, %v1371
      %v1376 = vadd.f32 %v1348, %v1372
      %1377 = vrot.lane.b32.xlu0 %v782, 96
      %v1378 = vpop.permute.xlu0 %1377
      %1379 = vrot.lane.b32.xlu0 %v784, 96
      %v1380 = vpop.permute.xlu0 %1379
      %1381 = vrot.lane.b32.xlu0 %v783, 96
      %v1382 = vpop.permute.xlu0 %1381
      %1383 = vrot.lane.b32.xlu0 %v785, 96
      %v1384 = vpop.permute.xlu0 %1383
      %vm1385 = vcmp.lt.s32.totalorder %v320, 96
      %v1386 = vsel %vm1385, %v1378, %v1382
      %v1387 = vsel %vm1385, %v1380, %v1384
      %v1388 = vsel %vm1385, %v1382, %v1378
      %v1389 = vsel %vm1385, %v1384, %v1380
      %1390 = vset.pattern.permute.xlu0 20
      %1391 = vperm.xlu0 %1390, %v748
      %v1392 = vpop.permute.xlu0 %1391
      %1394 = vset.pattern.permute.xlu0 20
      %1395 = vperm.xlu0 %1394, %v749
      %v1396 = vpop.permute.xlu0 %1395
      %v1398 = vmul.f32 %v1392, %v1386
      %v1399 = vmul.f32 %v1392, %v1388
      %v1400 = vmul.f32 %v1396, %v1387
      %v1401 = vmul.f32 %v1396, %v1389
      %v1402 = vadd.f32 %v1373, %v1398
      %v1403 = vadd.f32 %v1374, %v1399
      %v1404 = vadd.f32 %v1375, %v1400
      %v1405 = vadd.f32 %v1376, %v1401
      %1406 = vrot.lane.b32.xlu0 %v810, 96
      %v1407 = vpop.permute.xlu0 %1406
      %1408 = vrot.lane.b32.xlu0 %v812, 96
      %v1409 = vpop.permute.xlu0 %1408
      %1410 = vrot.lane.b32.xlu0 %v811, 96
      %v1411 = vpop.permute.xlu0 %1410
      %1412 = vrot.lane.b32.xlu0 %v813, 96
      %v1413 = vpop.permute.xlu0 %1412
      %v1414 = vsel %vm1385, %v1407, %v1411
      %v1415 = vsel %vm1385, %v1409, %v1413
      %v1416 = vsel %vm1385, %v1411, %v1407
      %v1417 = vsel %vm1385, %v1413, %v1409
      %1418 = vset.pattern.permute.xlu0 21
      %1419 = vperm.xlu0 %1418, %v748
      %v1420 = vpop.permute.xlu0 %1419
      %1422 = vset.pattern.permute.xlu0 21
      %1423 = vperm.xlu0 %1422, %v749
      %v1424 = vpop.permute.xlu0 %1423
      %v1426 = vmul.f32 %v1420, %v1414
      %v1427 = vmul.f32 %v1420, %v1416
      %v1428 = vmul.f32 %v1424, %v1415
      %v1429 = vmul.f32 %v1424, %v1417
      %v1430 = vadd.f32 %v1402, %v1426
      %v1431 = vadd.f32 %v1403, %v1427
      %v1432 = vadd.f32 %v1404, %v1428
      %v1433 = vadd.f32 %v1405, %v1429
      %1434 = vrot.lane.b32.xlu0 %v744, 96
      %v1435 = vpop.permute.xlu0 %1434
      %1436 = vrot.lane.b32.xlu0 %v746, 96
      %v1437 = vpop.permute.xlu0 %1436
      %1438 = vrot.lane.b32.xlu0 %v745, 96
      %v1439 = vpop.permute.xlu0 %1438
      %1440 = vrot.lane.b32.xlu0 %v747, 96
      %v1441 = vpop.permute.xlu0 %1440
      %v1442 = vsel %vm1385, %v1435, %v1439
      %v1443 = vsel %vm1385, %v1437, %v1441
      %v1444 = vsel %vm1385, %v1439, %v1435
      %v1445 = vsel %vm1385, %v1441, %v1437
      %1446 = vset.pattern.permute.xlu0 22
      %1447 = vperm.xlu0 %1446, %v748
      %v1448 = vpop.permute.xlu0 %1447
      %1450 = vset.pattern.permute.xlu0 22
      %1451 = vperm.xlu0 %1450, %v749
      %v1452 = vpop.permute.xlu0 %1451
      %v1454 = vmul.f32 %v1448, %v1442
      %v1455 = vmul.f32 %v1448, %v1444
      %v1456 = vmul.f32 %v1452, %v1443
      %v1457 = vmul.f32 %v1452, %v1445
      %v1458 = vadd.f32 %v1430, %v1454
      %v1459 = vadd.f32 %v1431, %v1455
      %v1460 = vadd.f32 %v1432, %v1456
      %v1461 = vadd.f32 %v1433, %v1457
      %1462 = vrot.lane.b32.xlu0 %v838, 96
      %v1463 = vpop.permute.xlu0 %1462
      %1464 = vrot.lane.b32.xlu0 %v840, 96
      %v1465 = vpop.permute.xlu0 %1464
      %1466 = vrot.lane.b32.xlu0 %v839, 96
      %v1467 = vpop.permute.xlu0 %1466
      %1468 = vrot.lane.b32.xlu0 %v841, 96
      %v1469 = vpop.permute.xlu0 %1468
      %v1470 = vsel %vm1385, %v1463, %v1467
      %v1471 = vsel %vm1385, %v1465, %v1469
      %v1472 = vsel %vm1385, %v1467, %v1463
      %v1473 = vsel %vm1385, %v1469, %v1465
      %1474 = vset.pattern.permute.xlu0 23
      %1475 = vperm.xlu0 %1474, %v748
      %v1476 = vpop.permute.xlu0 %1475
      %1478 = vset.pattern.permute.xlu0 23
      %1479 = vperm.xlu0 %1478, %v749
      %v1480 = vpop.permute.xlu0 %1479
      %v1482 = vmul.f32 %v1476, %v1470
      %v1483 = vmul.f32 %v1476, %v1472
      %v1484 = vmul.f32 %v1480, %v1471
      %v1485 = vmul.f32 %v1480, %v1473
      %v1486 = vadd.f32 %v1458, %v1482
      %v1487 = vadd.f32 %v1459, %v1483
      %v1488 = vadd.f32 %v1460, %v1484
      %v1489 = vadd.f32 %v1461, %v1485
      %1490 = vrot.lane.b32.xlu0 %v874, 96
      %v1491 = vpop.permute.xlu0 %1490
      %1492 = vrot.lane.b32.xlu0 %v876, 96
      %v1493 = vpop.permute.xlu0 %1492
      %1494 = vrot.lane.b32.xlu0 %v875, 96
      %v1495 = vpop.permute.xlu0 %1494
      %1496 = vrot.lane.b32.xlu0 %v877, 96
      %v1497 = vpop.permute.xlu0 %1496
      %v1498 = vsel %vm1385, %v1491, %v1495
      %v1499 = vsel %vm1385, %v1493, %v1497
      %v1500 = vsel %vm1385, %v1495, %v1491
      %v1501 = vsel %vm1385, %v1497, %v1493
      %1502 = vset.pattern.permute.xlu0 24
      %1503 = vperm.xlu0 %1502, %v748
      %v1504 = vpop.permute.xlu0 %1503
      %1506 = vset.pattern.permute.xlu0 24
      %1507 = vperm.xlu0 %1506, %v749
      %v1508 = vpop.permute.xlu0 %1507
      %v1510 = vmul.f32 %v1504, %v1498
      %v1511 = vmul.f32 %v1504, %v1500
      %v1512 = vmul.f32 %v1508, %v1499
      %v1513 = vmul.f32 %v1508, %v1501
      %v1514 = vadd.f32 %v1486, %v1510
      %v1515 = vadd.f32 %v1487, %v1511
      %v1516 = vadd.f32 %v1488, %v1512
      %v1517 = vadd.f32 %v1489, %v1513
      %1518 = vset.pattern.permute.xlu0 3
      %1519 = vperm.xlu0 %1518, %v309
      %v1520 = vpop.permute.xlu0 %1519
      %1522 = vset.pattern.permute.xlu0 3
      %1523 = vperm.xlu0 %1522, %v310
      %v1524 = vpop.permute.xlu0 %1523
      %v1526 = vadd.f32 %v1514, %v1520
      %v1527 = vadd.f32 %v1515, %v1520
      %v1528 = vadd.f32 %v1516, %v1524
      %v1529 = vadd.f32 %v1517, %v1524
      %v1530 = vsel %vm435, %v1526, 0.0
      %v1531 = vsel %vm435, %v1527, 0.0
      %v1532 = vadd.f32 %v1530, %v1531
      %1533 = vadd.xlane.f32.xlu0 %v1532
      %v1534 = vpop.xlane.xlu0 %1533
      %v1535 = vrot.slane %v1534, 4
      %v1536 = vadd.f32 %v1534, %v1535
      %v1537 = vrot.slane %v1536, 2
      %v1538 = vadd.f32 %v1536, %v1537
      %v1539 = vrot.slane %v1538, 1
      %v1540 = vadd.f32 %v1538, %v1539
      %s1541 = vtos %v1540
      %v1542 = vrcp.pop 1536.0
      %v1543 = vmul.f32 1536.0, %v1542
      %v1544 = vsub.f32 1.0, %v1543
      %v1545 = vmul.f32 %v1542, %v1544
      %v1546 = vadd.f32 %v1542, %v1545
      %vm1547 = vweird.f32 %v1542
      %v1548 = vsel %vm1547, %v1542, %v1546
      %s1549 = vtos %v1548
      %s1550 = smul.f32 %s1541, %s1549
      %v1555 = vrot.slane %v1526, 6
      %v1556 = vrot.slane %v1528, 6
      %v1557 = vsel %vm441, %v1555, %v1556
      %v1558 = vrot.slane %v1527, 6
      %v1559 = vrot.slane %v1529, 6
      %v1560 = vsel %vm441, %v1558, %v1559
      %v1563 = vsel %vm435, %v1557, 0.0
      %v1564 = vsel %vm435, %v1560, 0.0
      %v1565 = vadd.f32 %v1563, %v1564
      %1566 = vadd.xlane.f32.xlu0 %v1565
      %v1567 = vpop.xlane.xlu0 %1566
      %v1568 = vrot.slane %v1567, 4
      %v1569 = vadd.f32 %v1567, %v1568
      %v1570 = vrot.slane %v1569, 2
      %v1571 = vadd.f32 %v1569, %v1570
      %v1572 = vrot.slane %v1571, 1
      %v1573 = vadd.f32 %v1571, %v1572
      %s1574 = vtos %v1573
      %v1575 = vrcp.pop 1536.0
      %v1576 = vmul.f32 1536.0, %v1575
      %v1577 = vsub.f32 1.0, %v1576
      %v1578 = vmul.f32 %v1575, %v1577
      %v1579 = vadd.f32 %v1575, %v1578
      %vm1580 = vweird.f32 %v1575
      %v1581 = vsel %vm1580, %v1575, %v1579
      %s1582 = vtos %v1581
      %s1583 = smul.f32 %s1574, %s1582
      %v1584 = vstv %s1550
      %v1585 = vstv %s1583
      %v1586 = vsel %vm578, %v1584, %v1585
      %v1587 = vsel %vm579, %v1584, %v1585
      %v1588 = vsub.f32 %v1526, %v1586
      %v1589 = vsub.f32 %v1527, %v1586
      %v1590 = vsub.f32 %v1528, %v1587
      %v1591 = vsub.f32 %v1529, %v1587
      %v1592 = vmul.f32 %v1588, %v1588
      %v1593 = vmul.f32 %v1589, %v1589
      %v1594 = vsel %vm435, %v1592, 0.0
      %v1595 = vsel %vm435, %v1593, 0.0
      %v1596 = vadd.f32 %v1594, %v1595
      %1597 = vadd.xlane.f32.xlu0 %v1596
      %v1598 = vpop.xlane.xlu0 %1597
      %v1599 = vrot.slane %v1598, 4
      %v1600 = vadd.f32 %v1598, %v1599
      %v1601 = vrot.slane %v1600, 2
      %v1602 = vadd.f32 %v1600, %v1601
      %v1603 = vrot.slane %v1602, 1
      %v1604 = vadd.f32 %v1602, %v1603
      %s1605 = vtos %v1604
      %v1606 = vrcp.pop 1536.0
      %v1607 = vmul.f32 1536.0, %v1606
      %v1608 = vsub.f32 1.0, %v1607
      %v1609 = vmul.f32 %v1606, %v1608
      %v1610 = vadd.f32 %v1606, %v1609
      %vm1611 = vweird.f32 %v1606
      %v1612 = vsel %vm1611, %v1606, %v1610
      %s1613 = vtos %v1612
      %s1614 = smul.f32 %s1605, %s1613
      %v1615 = vmul.f32 %v1590, %v1590
      %v1616 = vmul.f32 %v1591, %v1591
      %v1621 = vrot.slane %v1592, 6
      %v1622 = vrot.slane %v1615, 6
      %v1623 = vsel %vm441, %v1621, %v1622
      %v1624 = vrot.slane %v1593, 6
      %v1625 = vrot.slane %v1616, 6
      %v1626 = vsel %vm441, %v1624, %v1625
      %v1629 = vsel %vm435, %v1623, 0.0
      %v1630 = vsel %vm435, %v1626, 0.0
      %v1631 = vadd.f32 %v1629, %v1630
      %1632 = vadd.xlane.f32.xlu0 %v1631
      %v1633 = vpop.xlane.xlu0 %1632
      %v1634 = vrot.slane %v1633, 4
      %v1635 = vadd.f32 %v1633, %v1634
      %v1636 = vrot.slane %v1635, 2
      %v1637 = vadd.f32 %v1635, %v1636
      %v1638 = vrot.slane %v1637, 1
      %v1639 = vadd.f32 %v1637, %v1638
      %s1640 = vtos %v1639
      %v1641 = vrcp.pop 1536.0
      %v1642 = vmul.f32 1536.0, %v1641
      %v1643 = vsub.f32 1.0, %v1642
      %v1644 = vmul.f32 %v1641, %v1643
      %v1645 = vadd.f32 %v1641, %v1644
      %vm1646 = vweird.f32 %v1641
      %v1647 = vsel %vm1646, %v1641, %v1645
      %s1648 = vtos %v1647
      %s1649 = smul.f32 %s1640, %s1648
      %s1650 = sadd.f32 %s1614, 1e-05
      %v1651 = vstv %s1650
      %v1652 = vrsqrt.pop %v1651
      %v1653 = vmul.f32 %v1652, %v1651
      %v1654 = vmul.f32 %v1653, %v1652
      %v1655 = vmul.f32 0.5, %v1654
      %v1656 = vsub.f32 1.5, %v1655
      %v1657 = vmul.f32 %v1652, %v1656
      %vm1658 = vweird.f32 %v1651
      %vm1659 = vweird.f32 %v1652
      %vm1660 = vmor %vm1658, %vm1659
      %v1661 = vsel %vm1660, %v1652, %v1657
      %s1662 = vtos %v1661
      %s1663 = sadd.f32 %s1649, 1e-05
      %v1664 = vstv %s1663
      %v1665 = vrsqrt.pop %v1664
      %v1666 = vmul.f32 %v1665, %v1664
      %v1667 = vmul.f32 %v1666, %v1665
      %v1668 = vmul.f32 0.5, %v1667
      %v1669 = vsub.f32 1.5, %v1668
      %v1670 = vmul.f32 %v1665, %v1669
      %vm1671 = vweird.f32 %v1664
      %vm1672 = vweird.f32 %v1665
      %vm1673 = vmor %vm1671, %vm1672
      %v1674 = vsel %vm1673, %v1665, %v1670
      %s1675 = vtos %v1674
      %v1676 = vstv %s1662
      %v1677 = vstv %s1675
      %v1678 = vsel %vm578, %v1676, %v1677
      %v1679 = vsel %vm579, %v1676, %v1677
      %v1680 = vmul.f32 %v1588, %v1678
      %v1681 = vmul.f32 %v1589, %v1678
      %v1682 = vmul.f32 %v1590, %v1679
      %v1683 = vmul.f32 %v1591, %v1679
      %1684 = vset.pattern.permute.xlu0 4
      %1685 = vperm.xlu0 %1684, %v309
      %v1686 = vpop.permute.xlu0 %1685
      %1688 = vset.pattern.permute.xlu0 4
      %1689 = vperm.xlu0 %1688, %v310
      %v1690 = vpop.permute.xlu0 %1689
      %v1692 = vmul.f32 %v1680, %v1686
      %v1693 = vmul.f32 %v1681, %v1686
      %v1694 = vmul.f32 %v1682, %v1690
      %v1695 = vmul.f32 %v1683, %v1690
      %1696 = vset.pattern.permute.xlu0 5
      %1697 = vperm.xlu0 %1696, %v309
      %v1698 = vpop.permute.xlu0 %1697
      %1700 = vset.pattern.permute.xlu0 5
      %1701 = vperm.xlu0 %1700, %v310
      %v1702 = vpop.permute.xlu0 %1701
      %v1704 = vadd.f32 %v1692, %v1698
      %v1705 = vadd.f32 %v1693, %v1698
      %v1706 = vadd.f32 %v1694, %v1702
      %v1707 = vadd.f32 %v1695, %v1702
      %v1708 = vld [vmem:[%s5] sm:$0xff]
      %v1709 = vld [vmem:[%s5 + $0x8] sm:$0xff]
      %v1710 = vld [vmem:[%s5 + $0x10] sm:$0xff]
      %v1711 = vld [vmem:[%s5 + $0x18] sm:$0xff]
      %v1712 = vld [vmem:[%s5 + $0x20] sm:$0xff]
      %v1713 = vld [vmem:[%s5 + $0x28] sm:$0xff]
      %1714 = vset.pattern.permute.xlu0 6
      %1715 = vperm.xlu0 %1714, %v309
      %v1716 = vpop.permute.xlu0 %1715
      %1718 = vset.pattern.permute.xlu0 6
      %1719 = vperm.xlu0 %1718, %v310
      %v1720 = vpop.permute.xlu0 %1719
      %1723 = vset.pattern.permute.xlu0 6
      %1724 = vperm.xlu0 %1723, %v311
      %v1725 = vpop.permute.xlu0 %1724
      %1728 = vset.pattern.permute.xlu0 6
      %1729 = vperm.xlu0 %1728, %v312
      %v1730 = vpop.permute.xlu0 %1729
      %1733 = vset.pattern.permute.xlu0 6
      %1734 = vperm.xlu0 %1733, %v313
      %v1735 = vpop.permute.xlu0 %1734
      %1738 = vset.pattern.permute.xlu0 6
      %1739 = vperm.xlu0 %1738, %v314
      %v1740 = vpop.permute.xlu0 %1739
      %vm1742 = vcmask 97280
      %v1744 = vsel %vm1742, %v1708, 0
      %v1747 = vsel %vm1742, %v1709, 0
      %v1750 = vsel %vm1742, %v1710, 0
      %v1753 = vsel %vm1742, %v1711, 0
      %v1756 = vsel %vm1742, %v1712, 0
      %v1759 = vsel %vm1742, %v1713, 0
      %v1762 = vsel %vm438, %v1706, 0
      %v1765 = vsel %vm438, %v1707, 0
      %1767 = vmatpush.msra.mxu0 0.0
      %1768 = vmatpush.msra.mxu0 0.0
      %1769 = vmatpush.msra.mxu0 0.0
      %1770 = vmatpush.msra.mxu0 0.0
      %1771 = vmatpush.msra.mxu0 0.0
      %1772 = vmatpush.msra.mxu0 0.0
      %1773 = vmatpush.msra.mxu0 0.0
      %1774 = vmatpush.msra.mxu0 0.0
      %1775 = vmatpush.msra.mxu0 0.0
      %1776 = vmatpush.msra.mxu0 0.0
      %1777 = vmatpush.msra.mxu0 0.0
      %1778 = vmatpush.msra.mxu0 0.0
      %1779 = vmatpush.msra.mxu0 0.0
      %1780 = vmatpush.msra.mxu0 0.0
      %1781 = vmatpush.msra.mxu0 %v1762
      %1782 = vmatpush.msra.mxu0 %v1704
      %1783 = vmatmul.f32.gmra.mxu0 %v1744
      %v1784 = vpop.f32.mrf.mxu0
      %v1785 = vadd.f32 %v1716, %v1784
      %1786 = vmatmul.f32.gmra.mxu0 %v1747
      %v1787 = vpop.f32.mrf.mxu0
      %v1788 = vadd.f32 %v1720, %v1787
      %1789 = vmatmul.f32.gmra.mxu0 %v1750
      %v1790 = vpop.f32.mrf.mxu0
      %v1791 = vadd.f32 %v1725, %v1790
      %1792 = vmatmul.f32.gmra.mxu0 %v1753
      %v1793 = vpop.f32.mrf.mxu0
      %v1794 = vadd.f32 %v1730, %v1793
      %1795 = vmatmul.f32.gmra.mxu0 %v1756
      %v1796 = vpop.f32.mrf.mxu0
      %v1797 = vadd.f32 %v1735, %v1796
      %1798 = vmatmul.f32.gmra.mxu0 %v1759
      %v1799 = vpop.f32.mrf.mxu0
      %v1800 = vadd.f32 %v1740, %v1799
      %1801 = vdwg.mxu0
      %1802 = vmatpush.msra.mxu0 0.0
      %1803 = vmatpush.msra.mxu0 0.0
      %1804 = vmatpush.msra.mxu0 0.0
      %1805 = vmatpush.msra.mxu0 0.0
      %1806 = vmatpush.msra.mxu0 0.0
      %1807 = vmatpush.msra.mxu0 0.0
      %1808 = vmatpush.msra.mxu0 0.0
      %1809 = vmatpush.msra.mxu0 0.0
      %1810 = vmatpush.msra.mxu0 0.0
      %1811 = vmatpush.msra.mxu0 0.0
      %1812 = vmatpush.msra.mxu0 0.0
      %1813 = vmatpush.msra.mxu0 0.0
      %1814 = vmatpush.msra.mxu0 0.0
      %1815 = vmatpush.msra.mxu0 0.0
      %1816 = vmatpush.msra.mxu0 %v1765
      %1817 = vmatpush.msra.mxu0 %v1705
      %1818 = vmatmul.f32.gmra.mxu0 %v1744
      %v1819 = vpop.f32.mrf.mxu0
      %v1820 = vadd.f32 %v1716, %v1819
      %1821 = vmatmul.f32.gmra.mxu0 %v1747
      %v1822 = vpop.f32.mrf.mxu0
      %v1823 = vadd.f32 %v1720, %v1822
      %1824 = vmatmul.f32.gmra.mxu0 %v1750
      %v1825 = vpop.f32.mrf.mxu0
      %v1826 = vadd.f32 %v1725, %v1825
      %1827 = vmatmul.f32.gmra.mxu0 %v1753
      %v1828 = vpop.f32.mrf.mxu0
      %v1829 = vadd.f32 %v1730, %v1828
      %1830 = vmatmul.f32.gmra.mxu0 %v1756
      %v1831 = vpop.f32.mrf.mxu0
      %v1832 = vadd.f32 %v1735, %v1831
      %1833 = vmatmul.f32.gmra.mxu0 %v1759
      %v1834 = vpop.f32.mrf.mxu0
      %v1835 = vadd.f32 %v1740, %v1834
      %1836 = vdwg.mxu0
      %v1837 = vmax.f32 %v1785, 0.0
      %v1838 = vmax.f32 %v1820, 0.0
      %v1839 = vmax.f32 %v1788, 0.0
      %v1840 = vmax.f32 %v1823, 0.0
      %v1841 = vmax.f32 %v1791, 0.0
      %v1842 = vmax.f32 %v1826, 0.0
      %v1843 = vmax.f32 %v1794, 0.0
      %v1844 = vmax.f32 %v1829, 0.0
      %v1845 = vmax.f32 %v1797, 0.0
      %v1846 = vmax.f32 %v1832, 0.0
      %v1847 = vmax.f32 %v1800, 0.0
      %v1848 = vmax.f32 %v1835, 0.0
      %v1849 = vand.u32 2147483647, %v1785
      %v1850 = vand.u32 2147483647, %v1820
      %v1851 = vand.u32 2147483647, %v1788
      %v1852 = vand.u32 2147483647, %v1823
      %v1853 = vand.u32 2147483647, %v1791
      %v1854 = vand.u32 2147483647, %v1826
      %v1855 = vand.u32 2147483647, %v1794
      %v1856 = vand.u32 2147483647, %v1829
      %v1857 = vand.u32 2147483647, %v1797
      %v1858 = vand.u32 2147483647, %v1832
      %v1859 = vand.u32 2147483647, %v1800
      %v1860 = vand.u32 2147483647, %v1835
      %v1861 = vsub.f32 0.0, %v1849
      %v1862 = vsub.f32 0.0, %v1850
      %v1863 = vsub.f32 0.0, %v1851
      %v1864 = vsub.f32 0.0, %v1852
      %v1865 = vsub.f32 0.0, %v1853
      %v1866 = vsub.f32 0.0, %v1854
      %v1867 = vsub.f32 0.0, %v1855
      %v1868 = vsub.f32 0.0, %v1856
      %v1869 = vsub.f32 0.0, %v1857
      %v1870 = vsub.f32 0.0, %v1858
      %v1871 = vsub.f32 0.0, %v1859
      %v1872 = vsub.f32 0.0, %v1860
      %v1873 = vmul.f32 %v1861, 1.442695
      %v1874 = vpow.pop %v1873
      %v1875 = vmul.f32 %v1862, 1.442695
      %v1876 = vpow.pop %v1875
      %v1877 = vmul.f32 %v1863, 1.442695
      %v1878 = vpow.pop %v1877
      %v1879 = vmul.f32 %v1864, 1.442695
      %v1880 = vpow.pop %v1879
      %v1881 = vmul.f32 %v1865, 1.442695
      %v1882 = vpow.pop %v1881
      %v1883 = vmul.f32 %v1866, 1.442695
      %v1884 = vpow.pop %v1883
      %v1885 = vmul.f32 %v1867, 1.442695
      %v1886 = vpow.pop %v1885
      %v1887 = vmul.f32 %v1868, 1.442695
      %v1888 = vpow.pop %v1887
      %v1889 = vmul.f32 %v1869, 1.442695
      %v1890 = vpow.pop %v1889
      %v1891 = vmul.f32 %v1870, 1.442695
      %v1892 = vpow.pop %v1891
      %v1893 = vmul.f32 %v1871, 1.442695
      %v1894 = vpow.pop %v1893
      %v1895 = vmul.f32 %v1872, 1.442695
      %v1896 = vpow.pop %v1895
      %v1897 = vadd.f32 %v1874, 1.0
      %v1898 = vadd.f32 %v1876, 1.0
      %v1899 = vadd.f32 %v1878, 1.0
      %v1900 = vadd.f32 %v1880, 1.0
      %v1901 = vadd.f32 %v1882, 1.0
      %v1902 = vadd.f32 %v1884, 1.0
      %v1903 = vadd.f32 %v1886, 1.0
      %v1904 = vadd.f32 %v1888, 1.0
      %v1905 = vadd.f32 %v1890, 1.0
      %v1906 = vadd.f32 %v1892, 1.0
      %v1907 = vadd.f32 %v1894, 1.0
      %v1908 = vadd.f32 %v1896, 1.0
      %v1909 = vlog2.pop %v1897
      %v1910 = vmul.f32 %v1909, 0.6931472
      %v1911 = vlog2.pop %v1898
      %v1912 = vmul.f32 %v1911, 0.6931472
      %v1913 = vlog2.pop %v1899
      %v1914 = vmul.f32 %v1913, 0.6931472
      %v1915 = vlog2.pop %v1900
      %v1916 = vmul.f32 %v1915, 0.6931472
      %v1917 = vlog2.pop %v1901
      %v1918 = vmul.f32 %v1917, 0.6931472
      %v1919 = vlog2.pop %v1902
      %v1920 = vmul.f32 %v1919, 0.6931472
      %v1921 = vlog2.pop %v1903
      %v1922 = vmul.f32 %v1921, 0.6931472
      %v1923 = vlog2.pop %v1904
      %v1924 = vmul.f32 %v1923, 0.6931472
      %v1925 = vlog2.pop %v1905
      %v1926 = vmul.f32 %v1925, 0.6931472
      %v1927 = vlog2.pop %v1906
      %v1928 = vmul.f32 %v1927, 0.6931472
      %v1929 = vlog2.pop %v1907
      %v1930 = vmul.f32 %v1929, 0.6931472
      %v1931 = vlog2.pop %v1908
      %v1932 = vmul.f32 %v1931, 0.6931472
      %v1933 = vadd.f32 %v1837, %v1910
      %v1934 = vadd.f32 %v1838, %v1912
      %v1935 = vadd.f32 %v1839, %v1914
      %v1936 = vadd.f32 %v1840, %v1916
      %v1937 = vadd.f32 %v1841, %v1918
      %v1938 = vadd.f32 %v1842, %v1920
      %v1939 = vadd.f32 %v1843, %v1922
      %v1940 = vadd.f32 %v1844, %v1924
      %v1941 = vadd.f32 %v1845, %v1926
      %v1942 = vadd.f32 %v1846, %v1928
      %v1943 = vadd.f32 %v1847, %v1930
      %v1944 = vadd.f32 %v1848, %v1932
      %v1945 = vtanh.pop %v1933
      %v1946 = vtanh.pop %v1934
      %v1947 = vtanh.pop %v1935
      %v1948 = vtanh.pop %v1936
      %v1949 = vtanh.pop %v1937
      %v1950 = vtanh.pop %v1938
      %v1951 = vtanh.pop %v1939
      %v1952 = vtanh.pop %v1940
      %v1953 = vtanh.pop %v1941
      %v1954 = vtanh.pop %v1942
      %v1955 = vtanh.pop %v1943
      %v1956 = vtanh.pop %v1944
      %v1957 = vmul.f32 %v1785, %v1945
      %v1958 = vmul.f32 %v1820, %v1946
      %v1959 = vmul.f32 %v1788, %v1947
      %v1960 = vmul.f32 %v1823, %v1948
      %v1961 = vmul.f32 %v1791, %v1949
      %v1962 = vmul.f32 %v1826, %v1950
      %v1963 = vmul.f32 %v1794, %v1951
      %v1964 = vmul.f32 %v1829, %v1952
      %v1965 = vmul.f32 %v1797, %v1953
      %v1966 = vmul.f32 %v1832, %v1954
      %v1967 = vmul.f32 %v1800, %v1955
      %v1968 = vmul.f32 %v1835, %v1956
      %v1969 = vld [vmem:[%s6] sm:$0xff]
      %v1970 = vld [vmem:[%s6 + $0x8] sm:$0xf]
      %1971 = vset.pattern.permute.xlu0 7
      %1972 = vperm.xlu0 %1971, %v309
      %v1973 = vpop.permute.xlu0 %1972
      %1975 = vset.pattern.permute.xlu0 7
      %1976 = vperm.xlu0 %1975, %v310
      %v1977 = vpop.permute.xlu0 %1976
      %vm1979 = vcmask 392192
      %v1981 = vsel %vm1979, %v1969, 0
      %v1984 = vsel %vm1979, %v1970, 0
      %1986 = vmatpush.msra.mxu0 0.0
      %1987 = vmatpush.msra.mxu0 0.0
      %1988 = vmatpush.msra.mxu0 0.0
      %1989 = vmatpush.msra.mxu0 0.0
      %1990 = vmatpush.msra.mxu0 0.0
      %1991 = vmatpush.msra.mxu0 0.0
      %1992 = vmatpush.msra.mxu0 0.0
      %1993 = vmatpush.msra.mxu0 0.0
      %1994 = vmatpush.msra.mxu0 0.0
      %1995 = vmatpush.msra.mxu0 0.0
      %1996 = vmatpush.msra.mxu0 %v1967
      %1997 = vmatpush.msra.mxu0 %v1965
      %1998 = vmatpush.msra.mxu0 %v1963
      %1999 = vmatpush.msra.mxu0 %v1961
      %2000 = vmatpush.msra.mxu0 %v1959
      %2001 = vmatpush.msra.mxu0 %v1957
      %2002 = vmatmul.f32.gmra.mxu0 %v1981
      %v2003 = vpop.f32.mrf.mxu0
      %v2004 = vadd.f32 %v1973, %v2003
      %2005 = vmatmul.f32.gmra.mxu0 %v1984
      %v2006 = vpop.f32.mrf.mxu0
      %v2007 = vadd.f32 %v1977, %v2006
      %2008 = vdwg.mxu0
      %2009 = vmatpush.msra.mxu0 0.0
      %2010 = vmatpush.msra.mxu0 0.0
      %2011 = vmatpush.msra.mxu0 0.0
      %2012 = vmatpush.msra.mxu0 0.0
      %2013 = vmatpush.msra.mxu0 0.0
      %2014 = vmatpush.msra.mxu0 0.0
      %2015 = vmatpush.msra.mxu0 0.0
      %2016 = vmatpush.msra.mxu0 0.0
      %2017 = vmatpush.msra.mxu0 0.0
      %2018 = vmatpush.msra.mxu0 0.0
      %2019 = vmatpush.msra.mxu0 %v1968
      %2020 = vmatpush.msra.mxu0 %v1966
      %2021 = vmatpush.msra.mxu0 %v1964
      %2022 = vmatpush.msra.mxu0 %v1962
      %2023 = vmatpush.msra.mxu0 %v1960
      %2024 = vmatpush.msra.mxu0 %v1958
      %2025 = vmatmul.f32.gmra.mxu0 %v1981
      %v2026 = vpop.f32.mrf.mxu0
      %v2027 = vadd.f32 %v1973, %v2026
      %2028 = vmatmul.f32.gmra.mxu0 %v1984
      %v2029 = vpop.f32.mrf.mxu0
      %v2030 = vadd.f32 %v1977, %v2029
      %2031 = vdwg.mxu0
      %2032 = vset.pattern.permute.xlu0 8
      %2033 = vperm.xlu0 %2032, %v309
      %v2034 = vpop.permute.xlu0 %2033
      %2036 = vset.pattern.permute.xlu0 8
      %2037 = vperm.xlu0 %2036, %v310
      %v2038 = vpop.permute.xlu0 %2037
      %v2040 = vmul.f32 %v2034, %v2004
      %v2041 = vmul.f32 %v2034, %v2027
      %v2042 = vmul.f32 %v2038, %v2007
      %v2043 = vmul.f32 %v2038, %v2030
      %v2044 = vadd.f32 %v744, %v2040
      %v2045 = vadd.f32 %v745, %v2041
      %v2046 = vadd.f32 %v746, %v2042
      %v2047 = vadd.f32 %v747, %v2043
      %s2048 = scalar_lea.vmem %s4, 16
      %v2049 = vld [vmem:[%s2048] sm:$0xff]
      %v2050 = vld [vmem:[%s2048 + $0x8] sm:$0xf]
      %2051 = vrot.lane.b32.xlu0 %v2044, 2
      %v2052 = vpop.permute.xlu0 %2051
      %2053 = vrot.lane.b32.xlu0 %v2046, 2
      %v2054 = vpop.permute.xlu0 %2053
      %2055 = vrot.lane.b32.xlu0 %v2045, 2
      %v2056 = vpop.permute.xlu0 %2055
      %2057 = vrot.lane.b32.xlu0 %v2047, 2
      %v2058 = vpop.permute.xlu0 %2057
      %v2059 = vsel %vm758, %v2052, %v2056
      %v2060 = vsel %vm758, %v2054, %v2058
      %v2061 = vsel %vm758, %v2056, %v2052
      %v2062 = vsel %vm758, %v2058, %v2054
      %2063 = vrot.lane.b32.xlu0 %v2044, 114
      %v2064 = vpop.permute.xlu0 %2063
      %2065 = vrot.lane.b32.xlu0 %v2046, 114
      %v2066 = vpop.permute.xlu0 %2065
      %2067 = vrot.lane.b32.xlu0 %v2045, 114
      %v2068 = vpop.permute.xlu0 %2067
      %2069 = vrot.lane.b32.xlu0 %v2047, 114
      %v2070 = vpop.permute.xlu0 %2069
      %v2071 = vsel %vm771, %v2064, %v2068
      %v2072 = vsel %vm771, %v2066, %v2070
      %v2073 = vsel %vm771, %v2068, %v2064
      %v2074 = vsel %vm771, %v2070, %v2066
      %v2075 = vsel %vm780, %v2061, %v2071
      %v2076 = vsel %vm781, %v2059, %v2073
      %v2077 = vsel %vm780, %v2062, %v2072
      %v2078 = vsel %vm781, %v2060, %v2074
      %2079 = vrot.lane.b32.xlu0 %v2044, 1
      %v2080 = vpop.permute.xlu0 %2079
      %2081 = vrot.lane.b32.xlu0 %v2046, 1
      %v2082 = vpop.permute.xlu0 %2081
      %2083 = vrot.lane.b32.xlu0 %v2045, 1
      %v2084 = vpop.permute.xlu0 %2083
      %2085 = vrot.lane.b32.xlu0 %v2047, 1
      %v2086 = vpop.permute.xlu0 %2085
      %v2087 = vsel %vm321, %v2080, %v2084
      %v2088 = vsel %vm321, %v2082, %v2086
      %v2089 = vsel %vm321, %v2084, %v2080
      %v2090 = vsel %vm321, %v2086, %v2082
      %2091 = vrot.lane.b32.xlu0 %v2044, 113
      %v2092 = vpop.permute.xlu0 %2091
      %2093 = vrot.lane.b32.xlu0 %v2046, 113
      %v2094 = vpop.permute.xlu0 %2093
      %2095 = vrot.lane.b32.xlu0 %v2045, 113
      %v2096 = vpop.permute.xlu0 %2095
      %2097 = vrot.lane.b32.xlu0 %v2047, 113
      %v2098 = vpop.permute.xlu0 %2097
      %v2099 = vsel %vm328, %v2092, %v2096
      %v2100 = vsel %vm328, %v2094, %v2098
      %v2101 = vsel %vm328, %v2096, %v2092
      %v2102 = vsel %vm328, %v2098, %v2094
      %v2103 = vsel %vm335, %v2089, %v2099
      %v2104 = vsel %vm336, %v2087, %v2101
      %v2105 = vsel %vm335, %v2090, %v2100
      %v2106 = vsel %vm336, %v2088, %v2102
      %2107 = vrot.lane.b32.xlu0 %v2044, 127
      %v2108 = vpop.permute.xlu0 %2107
      %2109 = vrot.lane.b32.xlu0 %v2046, 127
      %v2110 = vpop.permute.xlu0 %2109
      %2111 = vrot.lane.b32.xlu0 %v2045, 127
      %v2112 = vpop.permute.xlu0 %2111
      %2113 = vrot.lane.b32.xlu0 %v2047, 127
      %v2114 = vpop.permute.xlu0 %2113
      %v2115 = vsel %vm343, %v2108, %v2112
      %v2116 = vsel %vm343, %v2110, %v2114
      %v2117 = vsel %vm343, %v2112, %v2108
      %v2118 = vsel %vm343, %v2114, %v2110
      %2119 = vrot.lane.b32.xlu0 %v2044, 15
      %v2120 = vpop.permute.xlu0 %2119
      %2121 = vrot.lane.b32.xlu0 %v2046, 15
      %v2122 = vpop.permute.xlu0 %2121
      %2123 = vrot.lane.b32.xlu0 %v2045, 15
      %v2124 = vpop.permute.xlu0 %2123
      %2125 = vrot.lane.b32.xlu0 %v2047, 15
      %v2126 = vpop.permute.xlu0 %2125
      %v2127 = vsel %vm350, %v2120, %v2124
      %v2128 = vsel %vm350, %v2122, %v2126
      %v2129 = vsel %vm350, %v2124, %v2120
      %v2130 = vsel %vm350, %v2126, %v2122
      %v2131 = vsel %vm357, %v2115, %v2129
      %v2132 = vsel %vm358, %v2117, %v2127
      %v2133 = vsel %vm357, %v2116, %v2130
      %v2134 = vsel %vm358, %v2118, %v2128
      %2135 = vrot.lane.b32.xlu0 %v2044, 126
      %v2136 = vpop.permute.xlu0 %2135
      %2137 = vrot.lane.b32.xlu0 %v2046, 126
      %v2138 = vpop.permute.xlu0 %2137
      %2139 = vrot.lane.b32.xlu0 %v2045, 126
      %v2140 = vpop.permute.xlu0 %2139
      %2141 = vrot.lane.b32.xlu0 %v2047, 126
      %v2142 = vpop.permute.xlu0 %2141
      %v2143 = vsel %vm850, %v2136, %v2140
      %v2144 = vsel %vm850, %v2138, %v2142
      %v2145 = vsel %vm850, %v2140, %v2136
      %v2146 = vsel %vm850, %v2142, %v2138
      %2147 = vrot.lane.b32.xlu0 %v2044, 14
      %v2148 = vpop.permute.xlu0 %2147
      %2149 = vrot.lane.b32.xlu0 %v2046, 14
      %v2150 = vpop.permute.xlu0 %2149
      %2151 = vrot.lane.b32.xlu0 %v2045, 14
      %v2152 = vpop.permute.xlu0 %2151
      %2153 = vrot.lane.b32.xlu0 %v2047, 14
      %v2154 = vpop.permute.xlu0 %2153
      %v2155 = vsel %vm863, %v2148, %v2152
      %v2156 = vsel %vm863, %v2150, %v2154
      %v2157 = vsel %vm863, %v2152, %v2148
      %v2158 = vsel %vm863, %v2154, %v2150
      %v2159 = vsel %vm872, %v2143, %v2157
      %v2160 = vsel %vm873, %v2145, %v2155
      %v2161 = vsel %vm872, %v2144, %v2158
      %v2162 = vsel %vm873, %v2146, %v2156
      %2163 = vrot.lane.b32.xlu0 %v2075, 32
      %v2164 = vpop.permute.xlu0 %2163
      %2165 = vrot.lane.b32.xlu0 %v2077, 32
      %v2166 = vpop.permute.xlu0 %2165
      %2167 = vrot.lane.b32.xlu0 %v2076, 32
      %v2168 = vpop.permute.xlu0 %2167
      %2169 = vrot.lane.b32.xlu0 %v2078, 32
      %v2170 = vpop.permute.xlu0 %2169
      %v2171 = vsel %vm886, %v2164, %v2168
      %v2172 = vsel %vm886, %v2166, %v2170
      %v2173 = vsel %vm886, %v2168, %v2164
      %v2174 = vsel %vm886, %v2170, %v2166
      %2176 = vset.pattern.permute.xlu0 0
      %2177 = vperm.xlu0 %2176, %v2049
      %v2178 = vpop.permute.xlu0 %2177
      %2181 = vset.pattern.permute.xlu0 0
      %2182 = vperm.xlu0 %2181, %v2050
      %v2183 = vpop.permute.xlu0 %2182
      %v2185 = vmul.f32 %v2178, %v2173
      %v2186 = vmul.f32 %v2178, %v2171
      %v2187 = vmul.f32 %v2183, %v2174
      %v2188 = vmul.f32 %v2183, %v2172
      %2189 = vrot.lane.b32.xlu0 %v2103, 32
      %v2190 = vpop.permute.xlu0 %2189
      %2191 = vrot.lane.b32.xlu0 %v2105, 32
      %v2192 = vpop.permute.xlu0 %2191
      %2193 = vrot.lane.b32.xlu0 %v2104, 32
      %v2194 = vpop.permute.xlu0 %2193
      %2195 = vrot.lane.b32.xlu0 %v2106, 32
      %v2196 = vpop.permute.xlu0 %2195
      %v2197 = vsel %vm886, %v2190, %v2194
      %v2198 = vsel %vm886, %v2192, %v2196
      %v2199 = vsel %vm886, %v2194, %v2190
      %v2200 = vsel %vm886, %v2196, %v2192
      %2201 = vset.pattern.permute.xlu0 1
      %2202 = vperm.xlu0 %2201, %v2049
      %v2203 = vpop.permute.xlu0 %2202
      %2205 = vset.pattern.permute.xlu0 1
      %2206 = vperm.xlu0 %2205, %v2050
      %v2207 = vpop.permute.xlu0 %2206
      %v2209 = vmul.f32 %v2203, %v2199
      %v2210 = vmul.f32 %v2203, %v2197
      %v2211 = vmul.f32 %v2207, %v2200
      %v2212 = vmul.f32 %v2207, %v2198
      %v2213 = vadd.f32 %v2185, %v2209
      %v2214 = vadd.f32 %v2186, %v2210
      %v2215 = vadd.f32 %v2187, %v2211
      %v2216 = vadd.f32 %v2188, %v2212
      %2217 = vrot.lane.b32.xlu0 %v2044, 32
      %v2218 = vpop.permute.xlu0 %2217
      %2219 = vrot.lane.b32.xlu0 %v2046, 32
      %v2220 = vpop.permute.xlu0 %2219
      %2221 = vrot.lane.b32.xlu0 %v2045, 32
      %v2222 = vpop.permute.xlu0 %2221
      %2223 = vrot.lane.b32.xlu0 %v2047, 32
      %v2224 = vpop.permute.xlu0 %2223
      %v2225 = vsel %vm886, %v2218, %v2222
      %v2226 = vsel %vm886, %v2220, %v2224
      %v2227 = vsel %vm886, %v2222, %v2218
      %v2228 = vsel %vm886, %v2224, %v2220
      %2229 = vset.pattern.permute.xlu0 2
      %2230 = vperm.xlu0 %2229, %v2049
      %v2231 = vpop.permute.xlu0 %2230
      %2233 = vset.pattern.permute.xlu0 2
      %2234 = vperm.xlu0 %2233, %v2050
      %v2235 = vpop.permute.xlu0 %2234
      %v2237 = vmul.f32 %v2231, %v2227
      %v2238 = vmul.f32 %v2231, %v2225
      %v2239 = vmul.f32 %v2235, %v2228
      %v2240 = vmul.f32 %v2235, %v2226
      %v2241 = vadd.f32 %v2213, %v2237
      %v2242 = vadd.f32 %v2214, %v2238
      %v2243 = vadd.f32 %v2215, %v2239
      %v2244 = vadd.f32 %v2216, %v2240
      %2245 = vrot.lane.b32.xlu0 %v2131, 32
      %v2246 = vpop.permute.xlu0 %2245
      %2247 = vrot.lane.b32.xlu0 %v2133, 32
      %v2248 = vpop.permute.xlu0 %2247
      %2249 = vrot.lane.b32.xlu0 %v2132, 32
      %v2250 = vpop.permute.xlu0 %2249
      %2251 = vrot.lane.b32.xlu0 %v2134, 32
      %v2252 = vpop.permute.xlu0 %2251
      %v2253 = vsel %vm886, %v2246, %v2250
      %v2254 = vsel %vm886, %v2248, %v2252
      %v2255 = vsel %vm886, %v2250, %v2246
      %v2256 = vsel %vm886, %v2252, %v2248
      %2257 = vset.pattern.permute.xlu0 3
      %2258 = vperm.xlu0 %2257, %v2049
      %v2259 = vpop.permute.xlu0 %2258
      %2261 = vset.pattern.permute.xlu0 3
      %2262 = vperm.xlu0 %2261, %v2050
      %v2263 = vpop.permute.xlu0 %2262
      %v2265 = vmul.f32 %v2259, %v2255
      %v2266 = vmul.f32 %v2259, %v2253
      %v2267 = vmul.f32 %v2263, %v2256
      %v2268 = vmul.f32 %v2263, %v2254
      %v2269 = vadd.f32 %v2241, %v2265
      %v2270 = vadd.f32 %v2242, %v2266
      %v2271 = vadd.f32 %v2243, %v2267
      %v2272 = vadd.f32 %v2244, %v2268
      %2273 = vrot.lane.b32.xlu0 %v2159, 32
      %v2274 = vpop.permute.xlu0 %2273
      %2275 = vrot.lane.b32.xlu0 %v2161, 32
      %v2276 = vpop.permute.xlu0 %2275
      %2277 = vrot.lane.b32.xlu0 %v2160, 32
      %v2278 = vpop.permute.xlu0 %2277
      %2279 = vrot.lane.b32.xlu0 %v2162, 32
      %v2280 = vpop.permute.xlu0 %2279
      %v2281 = vsel %vm886, %v2274, %v2278
      %v2282 = vsel %vm886, %v2276, %v2280
      %v2283 = vsel %vm886, %v2278, %v2274
      %v2284 = vsel %vm886, %v2280, %v2276
      %2285 = vset.pattern.permute.xlu0 4
      %2286 = vperm.xlu0 %2285, %v2049
      %v2287 = vpop.permute.xlu0 %2286
      %2289 = vset.pattern.permute.xlu0 4
      %2290 = vperm.xlu0 %2289, %v2050
      %v2291 = vpop.permute.xlu0 %2290
      %v2293 = vmul.f32 %v2287, %v2283
      %v2294 = vmul.f32 %v2287, %v2281
      %v2295 = vmul.f32 %v2291, %v2284
      %v2296 = vmul.f32 %v2291, %v2282
      %v2297 = vadd.f32 %v2269, %v2293
      %v2298 = vadd.f32 %v2270, %v2294
      %v2299 = vadd.f32 %v2271, %v2295
      %v2300 = vadd.f32 %v2272, %v2296
      %2301 = vrot.lane.b32.xlu0 %v2075, 16
      %v2302 = vpop.permute.xlu0 %2301
      %2303 = vrot.lane.b32.xlu0 %v2077, 16
      %v2304 = vpop.permute.xlu0 %2303
      %2305 = vrot.lane.b32.xlu0 %v2076, 16
      %v2306 = vpop.permute.xlu0 %2305
      %2307 = vrot.lane.b32.xlu0 %v2078, 16
      %v2308 = vpop.permute.xlu0 %2307
      %v2309 = vsel %vm365, %v2302, %v2306
      %v2310 = vsel %vm365, %v2304, %v2308
      %v2311 = vsel %vm365, %v2306, %v2302
      %v2312 = vsel %vm365, %v2308, %v2304
      %2313 = vset.pattern.permute.xlu0 5
      %2314 = vperm.xlu0 %2313, %v2049
      %v2315 = vpop.permute.xlu0 %2314
      %2317 = vset.pattern.permute.xlu0 5
      %2318 = vperm.xlu0 %2317, %v2050
      %v2319 = vpop.permute.xlu0 %2318
      %v2321 = vmul.f32 %v2315, %v2311
      %v2322 = vmul.f32 %v2315, %v2309
      %v2323 = vmul.f32 %v2319, %v2312
      %v2324 = vmul.f32 %v2319, %v2310
      %v2325 = vadd.f32 %v2297, %v2321
      %v2326 = vadd.f32 %v2298, %v2322
      %v2327 = vadd.f32 %v2299, %v2323
      %v2328 = vadd.f32 %v2300, %v2324
      %2329 = vrot.lane.b32.xlu0 %v2103, 16
      %v2330 = vpop.permute.xlu0 %2329
      %2331 = vrot.lane.b32.xlu0 %v2105, 16
      %v2332 = vpop.permute.xlu0 %2331
      %2333 = vrot.lane.b32.xlu0 %v2104, 16
      %v2334 = vpop.permute.xlu0 %2333
      %2335 = vrot.lane.b32.xlu0 %v2106, 16
      %v2336 = vpop.permute.xlu0 %2335
      %v2337 = vsel %vm365, %v2330, %v2334
      %v2338 = vsel %vm365, %v2332, %v2336
      %v2339 = vsel %vm365, %v2334, %v2330
      %v2340 = vsel %vm365, %v2336, %v2332
      %2341 = vset.pattern.permute.xlu0 6
      %2342 = vperm.xlu0 %2341, %v2049
      %v2343 = vpop.permute.xlu0 %2342
      %2345 = vset.pattern.permute.xlu0 6
      %2346 = vperm.xlu0 %2345, %v2050
      %v2347 = vpop.permute.xlu0 %2346
      %v2349 = vmul.f32 %v2343, %v2339
      %v2350 = vmul.f32 %v2343, %v2337
      %v2351 = vmul.f32 %v2347, %v2340
      %v2352 = vmul.f32 %v2347, %v2338
      %v2353 = vadd.f32 %v2325, %v2349
      %v2354 = vadd.f32 %v2326, %v2350
      %v2355 = vadd.f32 %v2327, %v2351
      %v2356 = vadd.f32 %v2328, %v2352
      %2357 = vrot.lane.b32.xlu0 %v2044, 16
      %v2358 = vpop.permute.xlu0 %2357
      %2359 = vrot.lane.b32.xlu0 %v2046, 16
      %v2360 = vpop.permute.xlu0 %2359
      %2361 = vrot.lane.b32.xlu0 %v2045, 16
      %v2362 = vpop.permute.xlu0 %2361
      %2363 = vrot.lane.b32.xlu0 %v2047, 16
      %v2364 = vpop.permute.xlu0 %2363
      %v2365 = vsel %vm365, %v2358, %v2362
      %v2366 = vsel %vm365, %v2360, %v2364
      %v2367 = vsel %vm365, %v2362, %v2358
      %v2368 = vsel %vm365, %v2364, %v2360
      %2369 = vset.pattern.permute.xlu0 7
      %2370 = vperm.xlu0 %2369, %v2049
      %v2371 = vpop.permute.xlu0 %2370
      %2373 = vset.pattern.permute.xlu0 7
      %2374 = vperm.xlu0 %2373, %v2050
      %v2375 = vpop.permute.xlu0 %2374
      %v2377 = vmul.f32 %v2371, %v2367
      %v2378 = vmul.f32 %v2371, %v2365
      %v2379 = vmul.f32 %v2375, %v2368
      %v2380 = vmul.f32 %v2375, %v2366
      %v2381 = vadd.f32 %v2353, %v2377
      %v2382 = vadd.f32 %v2354, %v2378
      %v2383 = vadd.f32 %v2355, %v2379
      %v2384 = vadd.f32 %v2356, %v2380
      %2385 = vrot.lane.b32.xlu0 %v2131, 16
      %v2386 = vpop.permute.xlu0 %2385
      %2387 = vrot.lane.b32.xlu0 %v2133, 16
      %v2388 = vpop.permute.xlu0 %2387
      %2389 = vrot.lane.b32.xlu0 %v2132, 16
      %v2390 = vpop.permute.xlu0 %2389
      %2391 = vrot.lane.b32.xlu0 %v2134, 16
      %v2392 = vpop.permute.xlu0 %2391
      %v2393 = vsel %vm365, %v2386, %v2390
      %v2394 = vsel %vm365, %v2388, %v2392
      %v2395 = vsel %vm365, %v2390, %v2386
      %v2396 = vsel %vm365, %v2392, %v2388
      %2397 = vset.pattern.permute.xlu0 8
      %2398 = vperm.xlu0 %2397, %v2049
      %v2399 = vpop.permute.xlu0 %2398
      %2401 = vset.pattern.permute.xlu0 8
      %2402 = vperm.xlu0 %2401, %v2050
      %v2403 = vpop.permute.xlu0 %2402
      %v2405 = vmul.f32 %v2399, %v2395
      %v2406 = vmul.f32 %v2399, %v2393
      %v2407 = vmul.f32 %v2403, %v2396
      %v2408 = vmul.f32 %v2403, %v2394
      %v2409 = vadd.f32 %v2381, %v2405
      %v2410 = vadd.f32 %v2382, %v2406
      %v2411 = vadd.f32 %v2383, %v2407
      %v2412 = vadd.f32 %v2384, %v2408
      %2413 = vrot.lane.b32.xlu0 %v2159, 16
      %v2414 = vpop.permute.xlu0 %2413
      %2415 = vrot.lane.b32.xlu0 %v2161, 16
      %v2416 = vpop.permute.xlu0 %2415
      %2417 = vrot.lane.b32.xlu0 %v2160, 16
      %v2418 = vpop.permute.xlu0 %2417
      %2419 = vrot.lane.b32.xlu0 %v2162, 16
      %v2420 = vpop.permute.xlu0 %2419
      %v2421 = vsel %vm365, %v2414, %v2418
      %v2422 = vsel %vm365, %v2416, %v2420
      %v2423 = vsel %vm365, %v2418, %v2414
      %v2424 = vsel %vm365, %v2420, %v2416
      %2425 = vset.pattern.permute.xlu0 9
      %2426 = vperm.xlu0 %2425, %v2049
      %v2427 = vpop.permute.xlu0 %2426
      %2429 = vset.pattern.permute.xlu0 9
      %2430 = vperm.xlu0 %2429, %v2050
      %v2431 = vpop.permute.xlu0 %2430
      %v2433 = vmul.f32 %v2427, %v2423
      %v2434 = vmul.f32 %v2427, %v2421
      %v2435 = vmul.f32 %v2431, %v2424
      %v2436 = vmul.f32 %v2431, %v2422
      %v2437 = vadd.f32 %v2409, %v2433
      %v2438 = vadd.f32 %v2410, %v2434
      %v2439 = vadd.f32 %v2411, %v2435
      %v2440 = vadd.f32 %v2412, %v2436
      %2441 = vset.pattern.permute.xlu0 10
      %2442 = vperm.xlu0 %2441, %v2049
      %v2443 = vpop.permute.xlu0 %2442
      %2445 = vset.pattern.permute.xlu0 10
      %2446 = vperm.xlu0 %2445, %v2050
      %v2447 = vpop.permute.xlu0 %2446
      %v2449 = vmul.f32 %v2443, %v2075
      %v2450 = vmul.f32 %v2443, %v2076
      %v2451 = vmul.f32 %v2447, %v2077
      %v2452 = vmul.f32 %v2447, %v2078
      %v2453 = vadd.f32 %v2437, %v2449
      %v2454 = vadd.f32 %v2438, %v2450
      %v2455 = vadd.f32 %v2439, %v2451
      %v2456 = vadd.f32 %v2440, %v2452
      %2457 = vset.pattern.permute.xlu0 11
      %2458 = vperm.xlu0 %2457, %v2049
      %v2459 = vpop.permute.xlu0 %2458
      %2461 = vset.pattern.permute.xlu0 11
      %2462 = vperm.xlu0 %2461, %v2050
      %v2463 = vpop.permute.xlu0 %2462
      %v2465 = vmul.f32 %v2459, %v2103
      %v2466 = vmul.f32 %v2459, %v2104
      %v2467 = vmul.f32 %v2463, %v2105
      %v2468 = vmul.f32 %v2463, %v2106
      %v2469 = vadd.f32 %v2453, %v2465
      %v2470 = vadd.f32 %v2454, %v2466
      %v2471 = vadd.f32 %v2455, %v2467
      %v2472 = vadd.f32 %v2456, %v2468
      %2473 = vset.pattern.permute.xlu0 12
      %2474 = vperm.xlu0 %2473, %v2049
      %v2475 = vpop.permute.xlu0 %2474
      %2477 = vset.pattern.permute.xlu0 12
      %2478 = vperm.xlu0 %2477, %v2050
      %v2479 = vpop.permute.xlu0 %2478
      %v2481 = vmul.f32 %v2475, %v2044
      %v2482 = vmul.f32 %v2475, %v2045
      %v2483 = vmul.f32 %v2479, %v2046
      %v2484 = vmul.f32 %v2479, %v2047
      %v2485 = vadd.f32 %v2469, %v2481
      %v2486 = vadd.f32 %v2470, %v2482
      %v2487 = vadd.f32 %v2471, %v2483
      %v2488 = vadd.f32 %v2472, %v2484
      %2489 = vset.pattern.permute.xlu0 13
      %2490 = vperm.xlu0 %2489, %v2049
      %v2491 = vpop.permute.xlu0 %2490
      %2493 = vset.pattern.permute.xlu0 13
      %2494 = vperm.xlu0 %2493, %v2050
      %v2495 = vpop.permute.xlu0 %2494
      %v2497 = vmul.f32 %v2491, %v2131
      %v2498 = vmul.f32 %v2491, %v2132
      %v2499 = vmul.f32 %v2495, %v2133
      %v2500 = vmul.f32 %v2495, %v2134
      %v2501 = vadd.f32 %v2485, %v2497
      %v2502 = vadd.f32 %v2486, %v2498
      %v2503 = vadd.f32 %v2487, %v2499
      %v2504 = vadd.f32 %v2488, %v2500
      %2505 = vset.pattern.permute.xlu0 14
      %2506 = vperm.xlu0 %2505, %v2049
      %v2507 = vpop.permute.xlu0 %2506
      %2509 = vset.pattern.permute.xlu0 14
      %2510 = vperm.xlu0 %2509, %v2050
      %v2511 = vpop.permute.xlu0 %2510
      %v2513 = vmul.f32 %v2507, %v2159
      %v2514 = vmul.f32 %v2507, %v2160
      %v2515 = vmul.f32 %v2511, %v2161
      %v2516 = vmul.f32 %v2511, %v2162
      %v2517 = vadd.f32 %v2501, %v2513
      %v2518 = vadd.f32 %v2502, %v2514
      %v2519 = vadd.f32 %v2503, %v2515
      %v2520 = vadd.f32 %v2504, %v2516
      %2521 = vrot.lane.b32.xlu0 %v2075, 112
      %v2522 = vpop.permute.xlu0 %2521
      %2523 = vrot.lane.b32.xlu0 %v2077, 112
      %v2524 = vpop.permute.xlu0 %2523
      %2525 = vrot.lane.b32.xlu0 %v2076, 112
      %v2526 = vpop.permute.xlu0 %2525
      %2527 = vrot.lane.b32.xlu0 %v2078, 112
      %v2528 = vpop.permute.xlu0 %2527
      %v2529 = vsel %vm384, %v2522, %v2526
      %v2530 = vsel %vm384, %v2524, %v2528
      %v2531 = vsel %vm384, %v2526, %v2522
      %v2532 = vsel %vm384, %v2528, %v2524
      %2533 = vset.pattern.permute.xlu0 15
      %2534 = vperm.xlu0 %2533, %v2049
      %v2535 = vpop.permute.xlu0 %2534
      %2537 = vset.pattern.permute.xlu0 15
      %2538 = vperm.xlu0 %2537, %v2050
      %v2539 = vpop.permute.xlu0 %2538
      %v2541 = vmul.f32 %v2535, %v2529
      %v2542 = vmul.f32 %v2535, %v2531
      %v2543 = vmul.f32 %v2539, %v2530
      %v2544 = vmul.f32 %v2539, %v2532
      %v2545 = vadd.f32 %v2517, %v2541
      %v2546 = vadd.f32 %v2518, %v2542
      %v2547 = vadd.f32 %v2519, %v2543
      %v2548 = vadd.f32 %v2520, %v2544
      %2549 = vrot.lane.b32.xlu0 %v2103, 112
      %v2550 = vpop.permute.xlu0 %2549
      %2551 = vrot.lane.b32.xlu0 %v2105, 112
      %v2552 = vpop.permute.xlu0 %2551
      %2553 = vrot.lane.b32.xlu0 %v2104, 112
      %v2554 = vpop.permute.xlu0 %2553
      %2555 = vrot.lane.b32.xlu0 %v2106, 112
      %v2556 = vpop.permute.xlu0 %2555
      %v2557 = vsel %vm384, %v2550, %v2554
      %v2558 = vsel %vm384, %v2552, %v2556
      %v2559 = vsel %vm384, %v2554, %v2550
      %v2560 = vsel %vm384, %v2556, %v2552
      %2561 = vset.pattern.permute.xlu0 16
      %2562 = vperm.xlu0 %2561, %v2049
      %v2563 = vpop.permute.xlu0 %2562
      %2565 = vset.pattern.permute.xlu0 16
      %2566 = vperm.xlu0 %2565, %v2050
      %v2567 = vpop.permute.xlu0 %2566
      %v2569 = vmul.f32 %v2563, %v2557
      %v2570 = vmul.f32 %v2563, %v2559
      %v2571 = vmul.f32 %v2567, %v2558
      %v2572 = vmul.f32 %v2567, %v2560
      %v2573 = vadd.f32 %v2545, %v2569
      %v2574 = vadd.f32 %v2546, %v2570
      %v2575 = vadd.f32 %v2547, %v2571
      %v2576 = vadd.f32 %v2548, %v2572
      %2577 = vrot.lane.b32.xlu0 %v2044, 112
      %v2578 = vpop.permute.xlu0 %2577
      %2579 = vrot.lane.b32.xlu0 %v2046, 112
      %v2580 = vpop.permute.xlu0 %2579
      %2581 = vrot.lane.b32.xlu0 %v2045, 112
      %v2582 = vpop.permute.xlu0 %2581
      %2583 = vrot.lane.b32.xlu0 %v2047, 112
      %v2584 = vpop.permute.xlu0 %2583
      %v2585 = vsel %vm384, %v2578, %v2582
      %v2586 = vsel %vm384, %v2580, %v2584
      %v2587 = vsel %vm384, %v2582, %v2578
      %v2588 = vsel %vm384, %v2584, %v2580
      %2589 = vset.pattern.permute.xlu0 17
      %2590 = vperm.xlu0 %2589, %v2049
      %v2591 = vpop.permute.xlu0 %2590
      %2593 = vset.pattern.permute.xlu0 17
      %2594 = vperm.xlu0 %2593, %v2050
      %v2595 = vpop.permute.xlu0 %2594
      %v2597 = vmul.f32 %v2591, %v2585
      %v2598 = vmul.f32 %v2591, %v2587
      %v2599 = vmul.f32 %v2595, %v2586
      %v2600 = vmul.f32 %v2595, %v2588
      %v2601 = vadd.f32 %v2573, %v2597
      %v2602 = vadd.f32 %v2574, %v2598
      %v2603 = vadd.f32 %v2575, %v2599
      %v2604 = vadd.f32 %v2576, %v2600
      %2605 = vrot.lane.b32.xlu0 %v2131, 112
      %v2606 = vpop.permute.xlu0 %2605
      %2607 = vrot.lane.b32.xlu0 %v2133, 112
      %v2608 = vpop.permute.xlu0 %2607
      %2609 = vrot.lane.b32.xlu0 %v2132, 112
      %v2610 = vpop.permute.xlu0 %2609
      %2611 = vrot.lane.b32.xlu0 %v2134, 112
      %v2612 = vpop.permute.xlu0 %2611
      %v2613 = vsel %vm384, %v2606, %v2610
      %v2614 = vsel %vm384, %v2608, %v2612
      %v2615 = vsel %vm384, %v2610, %v2606
      %v2616 = vsel %vm384, %v2612, %v2608
      %2617 = vset.pattern.permute.xlu0 18
      %2618 = vperm.xlu0 %2617, %v2049
      %v2619 = vpop.permute.xlu0 %2618
      %2621 = vset.pattern.permute.xlu0 18
      %2622 = vperm.xlu0 %2621, %v2050
      %v2623 = vpop.permute.xlu0 %2622
      %v2625 = vmul.f32 %v2619, %v2613
      %v2626 = vmul.f32 %v2619, %v2615
      %v2627 = vmul.f32 %v2623, %v2614
      %v2628 = vmul.f32 %v2623, %v2616
      %v2629 = vadd.f32 %v2601, %v2625
      %v2630 = vadd.f32 %v2602, %v2626
      %v2631 = vadd.f32 %v2603, %v2627
      %v2632 = vadd.f32 %v2604, %v2628
      %2633 = vrot.lane.b32.xlu0 %v2159, 112
      %v2634 = vpop.permute.xlu0 %2633
      %2635 = vrot.lane.b32.xlu0 %v2161, 112
      %v2636 = vpop.permute.xlu0 %2635
      %2637 = vrot.lane.b32.xlu0 %v2160, 112
      %v2638 = vpop.permute.xlu0 %2637
      %2639 = vrot.lane.b32.xlu0 %v2162, 112
      %v2640 = vpop.permute.xlu0 %2639
      %v2641 = vsel %vm384, %v2634, %v2638
      %v2642 = vsel %vm384, %v2636, %v2640
      %v2643 = vsel %vm384, %v2638, %v2634
      %v2644 = vsel %vm384, %v2640, %v2636
      %2645 = vset.pattern.permute.xlu0 19
      %2646 = vperm.xlu0 %2645, %v2049
      %v2647 = vpop.permute.xlu0 %2646
      %2649 = vset.pattern.permute.xlu0 19
      %2650 = vperm.xlu0 %2649, %v2050
      %v2651 = vpop.permute.xlu0 %2650
      %v2653 = vmul.f32 %v2647, %v2641
      %v2654 = vmul.f32 %v2647, %v2643
      %v2655 = vmul.f32 %v2651, %v2642
      %v2656 = vmul.f32 %v2651, %v2644
      %v2657 = vadd.f32 %v2629, %v2653
      %v2658 = vadd.f32 %v2630, %v2654
      %v2659 = vadd.f32 %v2631, %v2655
      %v2660 = vadd.f32 %v2632, %v2656
      %2661 = vrot.lane.b32.xlu0 %v2075, 96
      %v2662 = vpop.permute.xlu0 %2661
      %2663 = vrot.lane.b32.xlu0 %v2077, 96
      %v2664 = vpop.permute.xlu0 %2663
      %2665 = vrot.lane.b32.xlu0 %v2076, 96
      %v2666 = vpop.permute.xlu0 %2665
      %2667 = vrot.lane.b32.xlu0 %v2078, 96
      %v2668 = vpop.permute.xlu0 %2667
      %v2669 = vsel %vm1385, %v2662, %v2666
      %v2670 = vsel %vm1385, %v2664, %v2668
      %v2671 = vsel %vm1385, %v2666, %v2662
      %v2672 = vsel %vm1385, %v2668, %v2664
      %2673 = vset.pattern.permute.xlu0 20
      %2674 = vperm.xlu0 %2673, %v2049
      %v2675 = vpop.permute.xlu0 %2674
      %2677 = vset.pattern.permute.xlu0 20
      %2678 = vperm.xlu0 %2677, %v2050
      %v2679 = vpop.permute.xlu0 %2678
      %v2681 = vmul.f32 %v2675, %v2669
      %v2682 = vmul.f32 %v2675, %v2671
      %v2683 = vmul.f32 %v2679, %v2670
      %v2684 = vmul.f32 %v2679, %v2672
      %v2685 = vadd.f32 %v2657, %v2681
      %v2686 = vadd.f32 %v2658, %v2682
      %v2687 = vadd.f32 %v2659, %v2683
      %v2688 = vadd.f32 %v2660, %v2684
      %2689 = vrot.lane.b32.xlu0 %v2103, 96
      %v2690 = vpop.permute.xlu0 %2689
      %2691 = vrot.lane.b32.xlu0 %v2105, 96
      %v2692 = vpop.permute.xlu0 %2691
      %2693 = vrot.lane.b32.xlu0 %v2104, 96
      %v2694 = vpop.permute.xlu0 %2693
      %2695 = vrot.lane.b32.xlu0 %v2106, 96
      %v2696 = vpop.permute.xlu0 %2695
      %v2697 = vsel %vm1385, %v2690, %v2694
      %v2698 = vsel %vm1385, %v2692, %v2696
      %v2699 = vsel %vm1385, %v2694, %v2690
      %v2700 = vsel %vm1385, %v2696, %v2692
      %2701 = vset.pattern.permute.xlu0 21
      %2702 = vperm.xlu0 %2701, %v2049
      %v2703 = vpop.permute.xlu0 %2702
      %2705 = vset.pattern.permute.xlu0 21
      %2706 = vperm.xlu0 %2705, %v2050
      %v2707 = vpop.permute.xlu0 %2706
      %v2709 = vmul.f32 %v2703, %v2697
      %v2710 = vmul.f32 %v2703, %v2699
      %v2711 = vmul.f32 %v2707, %v2698
      %v2712 = vmul.f32 %v2707, %v2700
      %v2713 = vadd.f32 %v2685, %v2709
      %v2714 = vadd.f32 %v2686, %v2710
      %v2715 = vadd.f32 %v2687, %v2711
      %v2716 = vadd.f32 %v2688, %v2712
      %2717 = vrot.lane.b32.xlu0 %v2044, 96
      %v2718 = vpop.permute.xlu0 %2717
      %2719 = vrot.lane.b32.xlu0 %v2046, 96
      %v2720 = vpop.permute.xlu0 %2719
      %2721 = vrot.lane.b32.xlu0 %v2045, 96
      %v2722 = vpop.permute.xlu0 %2721
      %2723 = vrot.lane.b32.xlu0 %v2047, 96
      %v2724 = vpop.permute.xlu0 %2723
      %v2725 = vsel %vm1385, %v2718, %v2722
      %v2726 = vsel %vm1385, %v2720, %v2724
      %v2727 = vsel %vm1385, %v2722, %v2718
      %v2728 = vsel %vm1385, %v2724, %v2720
      %2729 = vset.pattern.permute.xlu0 22
      %2730 = vperm.xlu0 %2729, %v2049
      %v2731 = vpop.permute.xlu0 %2730
      %2733 = vset.pattern.permute.xlu0 22
      %2734 = vperm.xlu0 %2733, %v2050
      %v2735 = vpop.permute.xlu0 %2734
      %v2737 = vmul.f32 %v2731, %v2725
      %v2738 = vmul.f32 %v2731, %v2727
      %v2739 = vmul.f32 %v2735, %v2726
      %v2740 = vmul.f32 %v2735, %v2728
      %v2741 = vadd.f32 %v2713, %v2737
      %v2742 = vadd.f32 %v2714, %v2738
      %v2743 = vadd.f32 %v2715, %v2739
      %v2744 = vadd.f32 %v2716, %v2740
      %2745 = vrot.lane.b32.xlu0 %v2131, 96
      %v2746 = vpop.permute.xlu0 %2745
      %2747 = vrot.lane.b32.xlu0 %v2133, 96
      %v2748 = vpop.permute.xlu0 %2747
      %2749 = vrot.lane.b32.xlu0 %v2132, 96
      %v2750 = vpop.permute.xlu0 %2749
      %2751 = vrot.lane.b32.xlu0 %v2134, 96
      %v2752 = vpop.permute.xlu0 %2751
      %v2753 = vsel %vm1385, %v2746, %v2750
      %v2754 = vsel %vm1385, %v2748, %v2752
      %v2755 = vsel %vm1385, %v2750, %v2746
      %v2756 = vsel %vm1385, %v2752, %v2748
      %2757 = vset.pattern.permute.xlu0 23
      %2758 = vperm.xlu0 %2757, %v2049
      %v2759 = vpop.permute.xlu0 %2758
      %2761 = vset.pattern.permute.xlu0 23
      %2762 = vperm.xlu0 %2761, %v2050
      %v2763 = vpop.permute.xlu0 %2762
      %v2765 = vmul.f32 %v2759, %v2753
      %v2766 = vmul.f32 %v2759, %v2755
      %v2767 = vmul.f32 %v2763, %v2754
      %v2768 = vmul.f32 %v2763, %v2756
      %v2769 = vadd.f32 %v2741, %v2765
      %v2770 = vadd.f32 %v2742, %v2766
      %v2771 = vadd.f32 %v2743, %v2767
      %v2772 = vadd.f32 %v2744, %v2768
      %2773 = vrot.lane.b32.xlu0 %v2159, 96
      %v2774 = vpop.permute.xlu0 %2773
      %2775 = vrot.lane.b32.xlu0 %v2161, 96
      %v2776 = vpop.permute.xlu0 %2775
      %2777 = vrot.lane.b32.xlu0 %v2160, 96
      %v2778 = vpop.permute.xlu0 %2777
      %2779 = vrot.lane.b32.xlu0 %v2162, 96
      %v2780 = vpop.permute.xlu0 %2779
      %v2781 = vsel %vm1385, %v2774, %v2778
      %v2782 = vsel %vm1385, %v2776, %v2780
      %v2783 = vsel %vm1385, %v2778, %v2774
      %v2784 = vsel %vm1385, %v2780, %v2776
      %2785 = vset.pattern.permute.xlu0 24
      %2786 = vperm.xlu0 %2785, %v2049
      %v2787 = vpop.permute.xlu0 %2786
      %2789 = vset.pattern.permute.xlu0 24
      %2790 = vperm.xlu0 %2789, %v2050
      %v2791 = vpop.permute.xlu0 %2790
      %v2793 = vmul.f32 %v2787, %v2781
      %v2794 = vmul.f32 %v2787, %v2783
      %v2795 = vmul.f32 %v2791, %v2782
      %v2796 = vmul.f32 %v2791, %v2784
      %v2797 = vadd.f32 %v2769, %v2793
      %v2798 = vadd.f32 %v2770, %v2794
      %v2799 = vadd.f32 %v2771, %v2795
      %v2800 = vadd.f32 %v2772, %v2796
      %2801 = vset.pattern.permute.xlu0 9
      %2802 = vperm.xlu0 %2801, %v309
      %v2803 = vpop.permute.xlu0 %2802
      %2805 = vset.pattern.permute.xlu0 9
      %2806 = vperm.xlu0 %2805, %v310
      %v2807 = vpop.permute.xlu0 %2806
      %v2809 = vadd.f32 %v2797, %v2803
      %v2810 = vadd.f32 %v2798, %v2803
      %v2811 = vadd.f32 %v2799, %v2807
      %v2812 = vadd.f32 %v2800, %v2807
      %v2813 = vsel %vm435, %v2809, 0.0
      %v2814 = vsel %vm435, %v2810, 0.0
      %v2815 = vadd.f32 %v2813, %v2814
      %2816 = vadd.xlane.f32.xlu0 %v2815
      %v2817 = vpop.xlane.xlu0 %2816
      %v2818 = vrot.slane %v2817, 4
      %v2819 = vadd.f32 %v2817, %v2818
      %v2820 = vrot.slane %v2819, 2
      %v2821 = vadd.f32 %v2819, %v2820
      %v2822 = vrot.slane %v2821, 1
      %v2823 = vadd.f32 %v2821, %v2822
      %s2824 = vtos %v2823
      %v2825 = vrcp.pop 1536.0
      %v2826 = vmul.f32 1536.0, %v2825
      %v2827 = vsub.f32 1.0, %v2826
      %v2828 = vmul.f32 %v2825, %v2827
      %v2829 = vadd.f32 %v2825, %v2828
      %vm2830 = vweird.f32 %v2825
      %v2831 = vsel %vm2830, %v2825, %v2829
      %s2832 = vtos %v2831
      %s2833 = smul.f32 %s2824, %s2832
      %v2838 = vrot.slane %v2809, 6
      %v2839 = vrot.slane %v2811, 6
      %v2840 = vsel %vm441, %v2838, %v2839
      %v2841 = vrot.slane %v2810, 6
      %v2842 = vrot.slane %v2812, 6
      %v2843 = vsel %vm441, %v2841, %v2842
      %v2846 = vsel %vm435, %v2840, 0.0
      %v2847 = vsel %vm435, %v2843, 0.0
      %v2848 = vadd.f32 %v2846, %v2847
      %2849 = vadd.xlane.f32.xlu0 %v2848
      %v2850 = vpop.xlane.xlu0 %2849
      %v2851 = vrot.slane %v2850, 4
      %v2852 = vadd.f32 %v2850, %v2851
      %v2853 = vrot.slane %v2852, 2
      %v2854 = vadd.f32 %v2852, %v2853
      %v2855 = vrot.slane %v2854, 1
      %v2856 = vadd.f32 %v2854, %v2855
      %s2857 = vtos %v2856
      %v2858 = vrcp.pop 1536.0
      %v2859 = vmul.f32 1536.0, %v2858
      %v2860 = vsub.f32 1.0, %v2859
      %v2861 = vmul.f32 %v2858, %v2860
      %v2862 = vadd.f32 %v2858, %v2861
      %vm2863 = vweird.f32 %v2858
      %v2864 = vsel %vm2863, %v2858, %v2862
      %s2865 = vtos %v2864
      %s2866 = smul.f32 %s2857, %s2865
      %v2867 = vstv %s2833
      %v2868 = vstv %s2866
      %v2869 = vsel %vm578, %v2867, %v2868
      %v2870 = vsel %vm579, %v2867, %v2868
      %v2871 = vsub.f32 %v2809, %v2869
      %v2872 = vsub.f32 %v2810, %v2869
      %v2873 = vsub.f32 %v2811, %v2870
      %v2874 = vsub.f32 %v2812, %v2870
      %v2875 = vmul.f32 %v2871, %v2871
      %v2876 = vmul.f32 %v2872, %v2872
      %v2877 = vsel %vm435, %v2875, 0.0
      %v2878 = vsel %vm435, %v2876, 0.0
      %v2879 = vadd.f32 %v2877, %v2878
      %2880 = vadd.xlane.f32.xlu0 %v2879
      %v2881 = vpop.xlane.xlu0 %2880
      %v2882 = vrot.slane %v2881, 4
      %v2883 = vadd.f32 %v2881, %v2882
      %v2884 = vrot.slane %v2883, 2
      %v2885 = vadd.f32 %v2883, %v2884
      %v2886 = vrot.slane %v2885, 1
      %v2887 = vadd.f32 %v2885, %v2886
      %s2888 = vtos %v2887
      %v2889 = vrcp.pop 1536.0
      %v2890 = vmul.f32 1536.0, %v2889
      %v2891 = vsub.f32 1.0, %v2890
      %v2892 = vmul.f32 %v2889, %v2891
      %v2893 = vadd.f32 %v2889, %v2892
      %vm2894 = vweird.f32 %v2889
      %v2895 = vsel %vm2894, %v2889, %v2893
      %s2896 = vtos %v2895
      %s2897 = smul.f32 %s2888, %s2896
      %v2898 = vmul.f32 %v2873, %v2873
      %v2899 = vmul.f32 %v2874, %v2874
      %v2904 = vrot.slane %v2875, 6
      %v2905 = vrot.slane %v2898, 6
      %v2906 = vsel %vm441, %v2904, %v2905
      %v2907 = vrot.slane %v2876, 6
      %v2908 = vrot.slane %v2899, 6
      %v2909 = vsel %vm441, %v2907, %v2908
      %v2912 = vsel %vm435, %v2906, 0.0
      %v2913 = vsel %vm435, %v2909, 0.0
      %v2914 = vadd.f32 %v2912, %v2913
      %2915 = vadd.xlane.f32.xlu0 %v2914
      %v2916 = vpop.xlane.xlu0 %2915
      %v2917 = vrot.slane %v2916, 4
      %v2918 = vadd.f32 %v2916, %v2917
      %v2919 = vrot.slane %v2918, 2
      %v2920 = vadd.f32 %v2918, %v2919
      %v2921 = vrot.slane %v2920, 1
      %v2922 = vadd.f32 %v2920, %v2921
      %s2923 = vtos %v2922
      %v2924 = vrcp.pop 1536.0
      %v2925 = vmul.f32 1536.0, %v2924
      %v2926 = vsub.f32 1.0, %v2925
      %v2927 = vmul.f32 %v2924, %v2926
      %v2928 = vadd.f32 %v2924, %v2927
      %vm2929 = vweird.f32 %v2924
      %v2930 = vsel %vm2929, %v2924, %v2928
      %s2931 = vtos %v2930
      %s2932 = smul.f32 %s2923, %s2931
      %s2933 = sadd.f32 %s2897, 1e-05
      %v2934 = vstv %s2933
      %v2935 = vrsqrt.pop %v2934
      %v2936 = vmul.f32 %v2935, %v2934
      %v2937 = vmul.f32 %v2936, %v2935
      %v2938 = vmul.f32 0.5, %v2937
      %v2939 = vsub.f32 1.5, %v2938
      %v2940 = vmul.f32 %v2935, %v2939
      %vm2941 = vweird.f32 %v2934
      %vm2942 = vweird.f32 %v2935
      %vm2943 = vmor %vm2941, %vm2942
      %v2944 = vsel %vm2943, %v2935, %v2940
      %s2945 = vtos %v2944
      %s2946 = sadd.f32 %s2932, 1e-05
      %v2947 = vstv %s2946
      %v2948 = vrsqrt.pop %v2947
      %v2949 = vmul.f32 %v2948, %v2947
      %v2950 = vmul.f32 %v2949, %v2948
      %v2951 = vmul.f32 0.5, %v2950
      %v2952 = vsub.f32 1.5, %v2951
      %v2953 = vmul.f32 %v2948, %v2952
      %vm2954 = vweird.f32 %v2947
      %vm2955 = vweird.f32 %v2948
      %vm2956 = vmor %vm2954, %vm2955
      %v2957 = vsel %vm2956, %v2948, %v2953
      %s2958 = vtos %v2957
      %v2959 = vstv %s2945
      %v2960 = vstv %s2958
      %v2961 = vsel %vm578, %v2959, %v2960
      %v2962 = vsel %vm579, %v2959, %v2960
      %v2963 = vmul.f32 %v2871, %v2961
      %v2964 = vmul.f32 %v2872, %v2961
      %v2965 = vmul.f32 %v2873, %v2962
      %v2966 = vmul.f32 %v2874, %v2962
      %2967 = vset.pattern.permute.xlu0 10
      %2968 = vperm.xlu0 %2967, %v309
      %v2969 = vpop.permute.xlu0 %2968
      %2971 = vset.pattern.permute.xlu0 10
      %2972 = vperm.xlu0 %2971, %v310
      %v2973 = vpop.permute.xlu0 %2972
      %v2975 = vmul.f32 %v2963, %v2969
      %v2976 = vmul.f32 %v2964, %v2969
      %v2977 = vmul.f32 %v2965, %v2973
      %v2978 = vmul.f32 %v2966, %v2973
      %2979 = vset.pattern.permute.xlu0 11
      %2980 = vperm.xlu0 %2979, %v309
      %v2981 = vpop.permute.xlu0 %2980
      %2983 = vset.pattern.permute.xlu0 11
      %2984 = vperm.xlu0 %2983, %v310
      %v2985 = vpop.permute.xlu0 %2984
      %v2987 = vadd.f32 %v2975, %v2981
      %v2988 = vadd.f32 %v2976, %v2981
      %v2989 = vadd.f32 %v2977, %v2985
      %v2990 = vadd.f32 %v2978, %v2985
      %s2991 = scalar_lea.vmem %s5, 48
      %v2992 = vld [vmem:[%s2991] sm:$0xff]
      %v2993 = vld [vmem:[%s2991 + $0x8] sm:$0xff]
      %v2994 = vld [vmem:[%s2991 + $0x10] sm:$0xff]
      %v2995 = vld [vmem:[%s2991 + $0x18] sm:$0xff]
      %v2996 = vld [vmem:[%s2991 + $0x20] sm:$0xff]
      %v2997 = vld [vmem:[%s2991 + $0x28] sm:$0xff]
      %2998 = vset.pattern.permute.xlu0 12
      %2999 = vperm.xlu0 %2998, %v309
      %v3000 = vpop.permute.xlu0 %2999
      %3002 = vset.pattern.permute.xlu0 12
      %3003 = vperm.xlu0 %3002, %v310
      %v3004 = vpop.permute.xlu0 %3003
      %3006 = vset.pattern.permute.xlu0 12
      %3007 = vperm.xlu0 %3006, %v311
      %v3008 = vpop.permute.xlu0 %3007
      %3010 = vset.pattern.permute.xlu0 12
      %3011 = vperm.xlu0 %3010, %v312
      %v3012 = vpop.permute.xlu0 %3011
      %3014 = vset.pattern.permute.xlu0 12
      %3015 = vperm.xlu0 %3014, %v313
      %v3016 = vpop.permute.xlu0 %3015
      %3018 = vset.pattern.permute.xlu0 12
      %3019 = vperm.xlu0 %3018, %v314
      %v3020 = vpop.permute.xlu0 %3019
      %v3023 = vsel %vm1742, %v2992, 0
      %v3026 = vsel %vm1742, %v2993, 0
      %v3029 = vsel %vm1742, %v2994, 0
      %v3032 = vsel %vm1742, %v2995, 0
      %v3035 = vsel %vm1742, %v2996, 0
      %v3038 = vsel %vm1742, %v2997, 0
      %v3041 = vsel %vm438, %v2989, 0
      %v3044 = vsel %vm438, %v2990, 0
      %3046 = vmatpush.msra.mxu0 0.0
      %3047 = vmatpush.msra.mxu0 0.0
      %3048 = vmatpush.msra.mxu0 0.0
      %3049 = vmatpush.msra.mxu0 0.0
      %3050 = vmatpush.msra.mxu0 0.0
      %3051 = vmatpush.msra.mxu0 0.0
      %3052 = vmatpush.msra.mxu0 0.0
      %3053 = vmatpush.msra.mxu0 0.0
      %3054 = vmatpush.msra.mxu0 0.0
      %3055 = vmatpush.msra.mxu0 0.0
      %3056 = vmatpush.msra.mxu0 0.0
      %3057 = vmatpush.msra.mxu0 0.0
      %3058 = vmatpush.msra.mxu0 0.0
      %3059 = vmatpush.msra.mxu0 0.0
      %3060 = vmatpush.msra.mxu0 %v3041
      %3061 = vmatpush.msra.mxu0 %v2987
      %3062 = vmatmul.f32.gmra.mxu0 %v3023
      %v3063 = vpop.f32.mrf.mxu0
      %v3064 = vadd.f32 %v3000, %v3063
      %3065 = vmatmul.f32.gmra.mxu0 %v3026
      %v3066 = vpop.f32.mrf.mxu0
      %v3067 = vadd.f32 %v3004, %v3066
      %3068 = vmatmul.f32.gmra.mxu0 %v3029
      %v3069 = vpop.f32.mrf.mxu0
      %v3070 = vadd.f32 %v3008, %v3069
      %3071 = vmatmul.f32.gmra.mxu0 %v3032
      %v3072 = vpop.f32.mrf.mxu0
      %v3073 = vadd.f32 %v3012, %v3072
      %3074 = vmatmul.f32.gmra.mxu0 %v3035
      %v3075 = vpop.f32.mrf.mxu0
      %v3076 = vadd.f32 %v3016, %v3075
      %3077 = vmatmul.f32.gmra.mxu0 %v3038
      %v3078 = vpop.f32.mrf.mxu0
      %v3079 = vadd.f32 %v3020, %v3078
      %3080 = vdwg.mxu0
      %3081 = vmatpush.msra.mxu0 0.0
      %3082 = vmatpush.msra.mxu0 0.0
      %3083 = vmatpush.msra.mxu0 0.0
      %3084 = vmatpush.msra.mxu0 0.0
      %3085 = vmatpush.msra.mxu0 0.0
      %3086 = vmatpush.msra.mxu0 0.0
      %3087 = vmatpush.msra.mxu0 0.0
      %3088 = vmatpush.msra.mxu0 0.0
      %3089 = vmatpush.msra.mxu0 0.0
      %3090 = vmatpush.msra.mxu0 0.0
      %3091 = vmatpush.msra.mxu0 0.0
      %3092 = vmatpush.msra.mxu0 0.0
      %3093 = vmatpush.msra.mxu0 0.0
      %3094 = vmatpush.msra.mxu0 0.0
      %3095 = vmatpush.msra.mxu0 %v3044
      %3096 = vmatpush.msra.mxu0 %v2988
      %3097 = vmatmul.f32.gmra.mxu0 %v3023
      %v3098 = vpop.f32.mrf.mxu0
      %v3099 = vadd.f32 %v3000, %v3098
      %3100 = vmatmul.f32.gmra.mxu0 %v3026
      %v3101 = vpop.f32.mrf.mxu0
      %v3102 = vadd.f32 %v3004, %v3101
      %3103 = vmatmul.f32.gmra.mxu0 %v3029
      %v3104 = vpop.f32.mrf.mxu0
      %v3105 = vadd.f32 %v3008, %v3104
      %3106 = vmatmul.f32.gmra.mxu0 %v3032
      %v3107 = vpop.f32.mrf.mxu0
      %v3108 = vadd.f32 %v3012, %v3107
      %3109 = vmatmul.f32.gmra.mxu0 %v3035
      %v3110 = vpop.f32.mrf.mxu0
      %v3111 = vadd.f32 %v3016, %v3110
      %3112 = vmatmul.f32.gmra.mxu0 %v3038
      %v3113 = vpop.f32.mrf.mxu0
      %v3114 = vadd.f32 %v3020, %v3113
      %3115 = vdwg.mxu0
      %v3116 = vmax.f32 %v3064, 0.0
      %v3117 = vmax.f32 %v3099, 0.0
      %v3118 = vmax.f32 %v3067, 0.0
      %v3119 = vmax.f32 %v3102, 0.0
      %v3120 = vmax.f32 %v3070, 0.0
      %v3121 = vmax.f32 %v3105, 0.0
      %v3122 = vmax.f32 %v3073, 0.0
      %v3123 = vmax.f32 %v3108, 0.0
      %v3124 = vmax.f32 %v3076, 0.0
      %v3125 = vmax.f32 %v3111, 0.0
      %v3126 = vmax.f32 %v3079, 0.0
      %v3127 = vmax.f32 %v3114, 0.0
      %v3128 = vand.u32 2147483647, %v3064
      %v3129 = vand.u32 2147483647, %v3099
      %v3130 = vand.u32 2147483647, %v3067
      %v3131 = vand.u32 2147483647, %v3102
      %v3132 = vand.u32 2147483647, %v3070
      %v3133 = vand.u32 2147483647, %v3105
      %v3134 = vand.u32 2147483647, %v3073
      %v3135 = vand.u32 2147483647, %v3108
      %v3136 = vand.u32 2147483647, %v3076
      %v3137 = vand.u32 2147483647, %v3111
      %v3138 = vand.u32 2147483647, %v3079
      %v3139 = vand.u32 2147483647, %v3114
      %v3140 = vsub.f32 0.0, %v3128
      %v3141 = vsub.f32 0.0, %v3129
      %v3142 = vsub.f32 0.0, %v3130
      %v3143 = vsub.f32 0.0, %v3131
      %v3144 = vsub.f32 0.0, %v3132
      %v3145 = vsub.f32 0.0, %v3133
      %v3146 = vsub.f32 0.0, %v3134
      %v3147 = vsub.f32 0.0, %v3135
      %v3148 = vsub.f32 0.0, %v3136
      %v3149 = vsub.f32 0.0, %v3137
      %v3150 = vsub.f32 0.0, %v3138
      %v3151 = vsub.f32 0.0, %v3139
      %v3152 = vmul.f32 %v3140, 1.442695
      %v3153 = vpow.pop %v3152
      %v3154 = vmul.f32 %v3141, 1.442695
      %v3155 = vpow.pop %v3154
      %v3156 = vmul.f32 %v3142, 1.442695
      %v3157 = vpow.pop %v3156
      %v3158 = vmul.f32 %v3143, 1.442695
      %v3159 = vpow.pop %v3158
      %v3160 = vmul.f32 %v3144, 1.442695
      %v3161 = vpow.pop %v3160
      %v3162 = vmul.f32 %v3145, 1.442695
      %v3163 = vpow.pop %v3162
      %v3164 = vmul.f32 %v3146, 1.442695
      %v3165 = vpow.pop %v3164
      %v3166 = vmul.f32 %v3147, 1.442695
      %v3167 = vpow.pop %v3166
      %v3168 = vmul.f32 %v3148, 1.442695
      %v3169 = vpow.pop %v3168
      %v3170 = vmul.f32 %v3149, 1.442695
      %v3171 = vpow.pop %v3170
      %v3172 = vmul.f32 %v3150, 1.442695
      %v3173 = vpow.pop %v3172
      %v3174 = vmul.f32 %v3151, 1.442695
      %v3175 = vpow.pop %v3174
      %v3176 = vadd.f32 %v3153, 1.0
      %v3177 = vadd.f32 %v3155, 1.0
      %v3178 = vadd.f32 %v3157, 1.0
      %v3179 = vadd.f32 %v3159, 1.0
      %v3180 = vadd.f32 %v3161, 1.0
      %v3181 = vadd.f32 %v3163, 1.0
      %v3182 = vadd.f32 %v3165, 1.0
      %v3183 = vadd.f32 %v3167, 1.0
      %v3184 = vadd.f32 %v3169, 1.0
      %v3185 = vadd.f32 %v3171, 1.0
      %v3186 = vadd.f32 %v3173, 1.0
      %v3187 = vadd.f32 %v3175, 1.0
      %v3188 = vlog2.pop %v3176
      %v3189 = vmul.f32 %v3188, 0.6931472
      %v3190 = vlog2.pop %v3177
      %v3191 = vmul.f32 %v3190, 0.6931472
      %v3192 = vlog2.pop %v3178
      %v3193 = vmul.f32 %v3192, 0.6931472
      %v3194 = vlog2.pop %v3179
      %v3195 = vmul.f32 %v3194, 0.6931472
      %v3196 = vlog2.pop %v3180
      %v3197 = vmul.f32 %v3196, 0.6931472
      %v3198 = vlog2.pop %v3181
      %v3199 = vmul.f32 %v3198, 0.6931472
      %v3200 = vlog2.pop %v3182
      %v3201 = vmul.f32 %v3200, 0.6931472
      %v3202 = vlog2.pop %v3183
      %v3203 = vmul.f32 %v3202, 0.6931472
      %v3204 = vlog2.pop %v3184
      %v3205 = vmul.f32 %v3204, 0.6931472
      %v3206 = vlog2.pop %v3185
      %v3207 = vmul.f32 %v3206, 0.6931472
      %v3208 = vlog2.pop %v3186
      %v3209 = vmul.f32 %v3208, 0.6931472
      %v3210 = vlog2.pop %v3187
      %v3211 = vmul.f32 %v3210, 0.6931472
      %v3212 = vadd.f32 %v3116, %v3189
      %v3213 = vadd.f32 %v3117, %v3191
      %v3214 = vadd.f32 %v3118, %v3193
      %v3215 = vadd.f32 %v3119, %v3195
      %v3216 = vadd.f32 %v3120, %v3197
      %v3217 = vadd.f32 %v3121, %v3199
      %v3218 = vadd.f32 %v3122, %v3201
      %v3219 = vadd.f32 %v3123, %v3203
      %v3220 = vadd.f32 %v3124, %v3205
      %v3221 = vadd.f32 %v3125, %v3207
      %v3222 = vadd.f32 %v3126, %v3209
      %v3223 = vadd.f32 %v3127, %v3211
      %v3224 = vtanh.pop %v3212
      %v3225 = vtanh.pop %v3213
      %v3226 = vtanh.pop %v3214
      %v3227 = vtanh.pop %v3215
      %v3228 = vtanh.pop %v3216
      %v3229 = vtanh.pop %v3217
      %v3230 = vtanh.pop %v3218
      %v3231 = vtanh.pop %v3219
      %v3232 = vtanh.pop %v3220
      %v3233 = vtanh.pop %v3221
      %v3234 = vtanh.pop %v3222
      %v3235 = vtanh.pop %v3223
      %v3236 = vmul.f32 %v3064, %v3224
      %v3237 = vmul.f32 %v3099, %v3225
      %v3238 = vmul.f32 %v3067, %v3226
      %v3239 = vmul.f32 %v3102, %v3227
      %v3240 = vmul.f32 %v3070, %v3228
      %v3241 = vmul.f32 %v3105, %v3229
      %v3242 = vmul.f32 %v3073, %v3230
      %v3243 = vmul.f32 %v3108, %v3231
      %v3244 = vmul.f32 %v3076, %v3232
      %v3245 = vmul.f32 %v3111, %v3233
      %v3246 = vmul.f32 %v3079, %v3234
      %v3247 = vmul.f32 %v3114, %v3235
      %s3248 = scalar_lea.vmem %s6, 16
      %v3249 = vld [vmem:[%s3248] sm:$0xff]
      %v3250 = vld [vmem:[%s3248 + $0x8] sm:$0xf]
      %3251 = vset.pattern.permute.xlu0 13
      %3252 = vperm.xlu0 %3251, %v309
      %v3253 = vpop.permute.xlu0 %3252
      %3255 = vset.pattern.permute.xlu0 13
      %3256 = vperm.xlu0 %3255, %v310
      %v3257 = vpop.permute.xlu0 %3256
      %v3260 = vsel %vm1979, %v3249, 0
      %v3263 = vsel %vm1979, %v3250, 0
      %3265 = vmatpush.msra.mxu0 0.0
      %3266 = vmatpush.msra.mxu0 0.0
      %3267 = vmatpush.msra.mxu0 0.0
      %3268 = vmatpush.msra.mxu0 0.0
      %3269 = vmatpush.msra.mxu0 0.0
      %3270 = vmatpush.msra.mxu0 0.0
      %3271 = vmatpush.msra.mxu0 0.0
      %3272 = vmatpush.msra.mxu0 0.0
      %3273 = vmatpush.msra.mxu0 0.0
      %3274 = vmatpush.msra.mxu0 0.0
      %3275 = vmatpush.msra.mxu0 %v3246
      %3276 = vmatpush.msra.mxu0 %v3244
      %3277 = vmatpush.msra.mxu0 %v3242
      %3278 = vmatpush.msra.mxu0 %v3240
      %3279 = vmatpush.msra.mxu0 %v3238
      %3280 = vmatpush.msra.mxu0 %v3236
      %3281 = vmatmul.f32.gmra.mxu0 %v3260
      %v3282 = vpop.f32.mrf.mxu0
      %v3283 = vadd.f32 %v3253, %v3282
      %3284 = vmatmul.f32.gmra.mxu0 %v3263
      %v3285 = vpop.f32.mrf.mxu0
      %v3286 = vadd.f32 %v3257, %v3285
      %3287 = vdwg.mxu0
      %3288 = vmatpush.msra.mxu0 0.0
      %3289 = vmatpush.msra.mxu0 0.0
      %3290 = vmatpush.msra.mxu0 0.0
      %3291 = vmatpush.msra.mxu0 0.0
      %3292 = vmatpush.msra.mxu0 0.0
      %3293 = vmatpush.msra.mxu0 0.0
      %3294 = vmatpush.msra.mxu0 0.0
      %3295 = vmatpush.msra.mxu0 0.0
      %3296 = vmatpush.msra.mxu0 0.0
      %3297 = vmatpush.msra.mxu0 0.0
      %3298 = vmatpush.msra.mxu0 %v3247
      %3299 = vmatpush.msra.mxu0 %v3245
      %3300 = vmatpush.msra.mxu0 %v3243
      %3301 = vmatpush.msra.mxu0 %v3241
      %3302 = vmatpush.msra.mxu0 %v3239
      %3303 = vmatpush.msra.mxu0 %v3237
      %3304 = vmatmul.f32.gmra.mxu0 %v3260
      %v3305 = vpop.f32.mrf.mxu0
      %v3306 = vadd.f32 %v3253, %v3305
      %3307 = vmatmul.f32.gmra.mxu0 %v3263
      %v3308 = vpop.f32.mrf.mxu0
      %v3309 = vadd.f32 %v3257, %v3308
      %3310 = vdwg.mxu0
      %3311 = vset.pattern.permute.xlu0 14
      %3312 = vperm.xlu0 %3311, %v309
      %v3313 = vpop.permute.xlu0 %3312
      %3315 = vset.pattern.permute.xlu0 14
      %3316 = vperm.xlu0 %3315, %v310
      %v3317 = vpop.permute.xlu0 %3316
      %v3319 = vmul.f32 %v3313, %v3283
      %v3320 = vmul.f32 %v3313, %v3306
      %v3321 = vmul.f32 %v3317, %v3286
      %v3322 = vmul.f32 %v3317, %v3309
      %v3323 = vadd.f32 %v2044, %v3319
      %v3324 = vadd.f32 %v2045, %v3320
      %v3325 = vadd.f32 %v2046, %v3321
      %v3326 = vadd.f32 %v2047, %v3322
      %v3327 = vadd.f32 %v3323, %v3324
      %3328 = vadd.xlane.f32.xlu0 %v3327
      %v3329 = vpop.xlane.xlu0 %3328
      %v3330 = vsel %vm438, %v3325, 0.0
      %v3331 = vsel %vm438, %v3326, 0.0
      %v3332 = vadd.f32 %v3330, %v3331
      %3333 = vadd.xlane.f32.xlu0 %v3332
      %v3334 = vpop.xlane.xlu0 %3333
      %v3335 = vrcp.pop 256.0
      %v3336 = vmul.f32 256.0, %v3335
      %v3337 = vsub.f32 1.0, %v3336
      %v3338 = vmul.f32 %v3335, %v3337
      %v3339 = vadd.f32 %v3335, %v3338
      %vm3340 = vweird.f32 %v3335
      %v3341 = vsel %vm3340, %v3335, %v3339
      %v3342 = vmul.f32 %v3329, %v3341
      %v3343 = vmul.f32 %v3334, %v3341
      %vm3346 = vcmask 1040384
      %v3347 = vrot.slane %v3342, 7
      %v3348 = vrot.slane %v3343, 7
      %v3349 = vsel %vm3346, %v3347, %v3348
      %v3351 = vsel %vm3346, 0.0, %v3347
      %vm3352 = vcmask 1046528
      %v3353 = vrot.slane %v3342, 1
      %v3354 = vrot.slane %v3343, 1
      %v3355 = vsel %vm3352, %v3353, %v3354
      %vm3357 = vcmask 1042432
      %v3358 = vsel %vm3357, %v3354, 0.0
      %v3359 = vperm.slane %v309, 0
      %3361 = vrot.lane.b32.xlu0 %v3351, 16
      %v3362 = vpop.permute.xlu0 %3361
      %3363 = vrot.lane.b32.xlu0 %v3349, 16
      %v3364 = vpop.permute.xlu0 %3363
      %v3367 = vmul.f32 %v3359, %v3362
      %v3368 = vmul.f32 %v3359, %v3364
      %v3369 = vperm.slane %v309, 1
      %v3370 = vmul.f32 %v3369, %v3342
      %v3371 = vmul.f32 %v3369, %v3343
      %v3372 = vadd.f32 %v3367, %v3370
      %v3373 = vadd.f32 %v3368, %v3371
      %v3374 = vperm.slane %v309, 2
      %3376 = vrot.lane.b32.xlu0 %v3355, 16
      %v3377 = vpop.permute.xlu0 %3376
      %3378 = vrot.lane.b32.xlu0 %v3358, 16
      %v3379 = vpop.permute.xlu0 %3378
      %v3382 = vmul.f32 %v3374, %v3377
      %v3383 = vmul.f32 %v3374, %v3379
      %v3384 = vadd.f32 %v3372, %v3382
      %v3385 = vadd.f32 %v3373, %v3383
      %v3386 = vxor.u32 %v3384, 2147483648
      %v3387 = vxor.u32 %v3385, 2147483648
      %v3388 = vmul.f32 %v3386, 1.442695
      %v3389 = vpow.pop %v3388
      %v3390 = vmul.f32 %v3387, 1.442695
      %v3391 = vpow.pop %v3390
      %v3392 = vadd.f32 %v3389, 1.0
      %v3393 = vadd.f32 %v3391, 1.0
      %v3394 = vrcp.pop %v3392
      %v3395 = vmul.f32 %v3392, %v3394
      %v3396 = vsub.f32 1.0, %v3395
      %v3397 = vmul.f32 %v3394, %v3396
      %v3398 = vadd.f32 %v3394, %v3397
      %vm3399 = vweird.f32 %v3392
      %vm3400 = vweird.f32 %v3394
      %vm3401 = vmor %vm3399, %vm3400
      %v3402 = vsel %vm3401, %v3394, %v3398
      %v3403 = vand.u32 2147483647, %v3392
      %vm3404 = vcmp.eq.f32.partialorder %v3403, 8.507059e+37
      %v3405 = vand.u32 %v3392, 2147483648
      %v3406 = vor.u32 1.1754944e-38, %v3405
      %v3407 = vsel %vm3404, %v3406, %v3402
      %v3408 = vmul.f32 1.0, %v3407
      %v3409 = vrcp.pop %v3393
      %v3410 = vmul.f32 %v3393, %v3409
      %v3411 = vsub.f32 1.0, %v3410
      %v3412 = vmul.f32 %v3409, %v3411
      %v3413 = vadd.f32 %v3409, %v3412
      %vm3414 = vweird.f32 %v3393
      %vm3415 = vweird.f32 %v3409
      %vm3416 = vmor %vm3414, %vm3415
      %v3417 = vsel %vm3416, %v3409, %v3413
      %v3418 = vand.u32 2147483647, %v3393
      %vm3419 = vcmp.eq.f32.partialorder %v3418, 8.507059e+37
      %v3420 = vand.u32 %v3393, 2147483648
      %v3421 = vor.u32 1.1754944e-38, %v3420
      %v3422 = vsel %vm3419, %v3421, %v3417
      %v3423 = vmul.f32 1.0, %v3422
      %3425 = vset.pattern.permute.xlu0 16
      %3426 = vperm.xlu0 %3425, %v3408
      %v3427 = vpop.permute.xlu0 %3426
      %3430 = vset.pattern.permute.xlu0 16
      %3431 = vperm.xlu0 %3430, %v3423
      %v3432 = vpop.permute.xlu0 %3431
      %v3434 = vmul.f32 %v3323, %v3427
      %v3435 = vmul.f32 %v3324, %v3427
      %v3436 = vmul.f32 %v3325, %v3432
      %v3437 = vmul.f32 %v3326, %v3432
      %v3438 = vld [vmem:[%s7] sm:$0xff]
      %v3439 = vld [vmem:[%s7 + $0x8] sm:$0xf]
      %3440 = vset.pattern.permute.xlu0 15
      %3441 = vperm.xlu0 %3440, %v309
      %v3442 = vpop.permute.xlu0 %3441
      %3444 = vset.pattern.permute.xlu0 15
      %3445 = vperm.xlu0 %3444, %v310
      %v3446 = vpop.permute.xlu0 %3445
      %v3449 = vsel %vm1742, %v3438, 0
      %v3452 = vsel %vm1742, %v3439, 0
      %v3455 = vsel %vm438, %v3436, 0
      %v3458 = vsel %vm438, %v3437, 0
      %3460 = vmatpush.msra.mxu0 0.0
      %3461 = vmatpush.msra.mxu0 0.0
      %3462 = vmatpush.msra.mxu0 0.0
      %3463 = vmatpush.msra.mxu0 0.0
      %3464 = vmatpush.msra.mxu0 0.0
      %3465 = vmatpush.msra.mxu0 0.0
      %3466 = vmatpush.msra.mxu0 0.0
      %3467 = vmatpush.msra.mxu0 0.0
      %3468 = vmatpush.msra.mxu0 0.0
      %3469 = vmatpush.msra.mxu0 0.0
      %3470 = vmatpush.msra.mxu0 0.0
      %3471 = vmatpush.msra.mxu0 0.0
      %3472 = vmatpush.msra.mxu0 0.0
      %3473 = vmatpush.msra.mxu0 0.0
      %3474 = vmatpush.msra.mxu0 %v3455
      %3475 = vmatpush.msra.mxu0 %v3434
      %3476 = vmatmul.f32.gmra.mxu0 %v3449
      %v3477 = vpop.f32.mrf.mxu0
      %v3478 = vadd.f32 %v3442, %v3477
      %3479 = vmatmul.f32.gmra.mxu0 %v3452
      %v3480 = vpop.f32.mrf.mxu0
      %v3481 = vadd.f32 %v3446, %v3480
      %3482 = vdwg.mxu0
      %3483 = vmatpush.msra.mxu0 0.0
      %3484 = vmatpush.msra.mxu0 0.0
      %3485 = vmatpush.msra.mxu0 0.0
      %3486 = vmatpush.msra.mxu0 0.0
      %3487 = vmatpush.msra.mxu0 0.0
      %3488 = vmatpush.msra.mxu0 0.0
      %3489 = vmatpush.msra.mxu0 0.0
      %3490 = vmatpush.msra.mxu0 0.0
      %3491 = vmatpush.msra.mxu0 0.0
      %3492 = vmatpush.msra.mxu0 0.0
      %3493 = vmatpush.msra.mxu0 0.0
      %3494 = vmatpush.msra.mxu0 0.0
      %3495 = vmatpush.msra.mxu0 0.0
      %3496 = vmatpush.msra.mxu0 0.0
      %3497 = vmatpush.msra.mxu0 %v3458
      %3498 = vmatpush.msra.mxu0 %v3435
      %3499 = vmatmul.f32.gmra.mxu0 %v3449
      %v3500 = vpop.f32.mrf.mxu0
      %v3501 = vadd.f32 %v3442, %v3500
      %3502 = vmatmul.f32.gmra.mxu0 %v3452
      %v3503 = vpop.f32.mrf.mxu0
      %v3504 = vadd.f32 %v3446, %v3503
      %3505 = vdwg.mxu0
      %3506 = vrot.lane.b32.xlu0 %v309, 111
      %v3507 = vpop.permute.xlu0 %3506
      %s3508 = vtos %v3507
      %v3509 = vstv %s3508
      %v3511 = vmul.f32 %v3478, %v3509
      %v3512 = vmul.f32 %v3501, %v3509
      %v3513 = vmul.f32 %v3481, %v3509
      %v3514 = vmul.f32 %v3504, %v3509
      %v3515 = vand.u32 2147483647, %v3511
      %v3516 = vand.u32 2147483647, %v3512
      %v3517 = vand.u32 2147483647, %v3513
      %v3518 = vand.u32 2147483647, %v3514
      %vm3519 = vcmp.gt.f32.partialorder %v3515, 2.4142137
      %vm3520 = vcmp.gt.f32.partialorder %v3516, 2.4142137
      %vm3521 = vcmp.gt.f32.partialorder %v3517, 2.4142137
      %vm3522 = vcmp.gt.f32.partialorder %v3518, 2.4142137
      %vm3523 = vcmp.gt.f32.partialorder %v3515, 0.41421357
      %vm3524 = vcmp.gt.f32.partialorder %v3516, 0.41421357
      %vm3525 = vcmp.gt.f32.partialorder %v3517, 0.41421357
      %vm3526 = vcmp.gt.f32.partialorder %v3518, 0.41421357
      %v3527 = vmax.f32 %v3515, 1e-30
      %v3528 = vmax.f32 %v3516, 1e-30
      %v3529 = vmax.f32 %v3517, 1e-30
      %v3530 = vmax.f32 %v3518, 1e-30
      %v3531 = vrcp.pop %v3527
      %v3532 = vmul.f32 %v3527, %v3531
      %v3533 = vsub.f32 1.0, %v3532
      %v3534 = vmul.f32 %v3531, %v3533
      %v3535 = vadd.f32 %v3531, %v3534
      %vm3536 = vweird.f32 %v3527
      %vm3537 = vweird.f32 %v3531
      %vm3538 = vmor %vm3536, %vm3537
      %v3539 = vsel %vm3538, %v3531, %v3535
      %v3540 = vand.u32 2147483647, %v3527
      %vm3541 = vcmp.eq.f32.partialorder %v3540, 8.507059e+37
      %v3542 = vand.u32 %v3527, 2147483648
      %v3543 = vor.u32 1.1754944e-38, %v3542
      %v3544 = vsel %vm3541, %v3543, %v3539
      %v3545 = vmul.f32 -1.0, %v3544
      %v3546 = vrcp.pop %v3528
      %v3547 = vmul.f32 %v3528, %v3546
      %v3548 = vsub.f32 1.0, %v3547
      %v3549 = vmul.f32 %v3546, %v3548
      %v3550 = vadd.f32 %v3546, %v3549
      %vm3551 = vweird.f32 %v3528
      %vm3552 = vweird.f32 %v3546
      %vm3553 = vmor %vm3551, %vm3552
      %v3554 = vsel %vm3553, %v3546, %v3550
      %v3555 = vand.u32 2147483647, %v3528
      %vm3556 = vcmp.eq.f32.partialorder %v3555, 8.507059e+37
      %v3557 = vand.u32 %v3528, 2147483648
      %v3558 = vor.u32 1.1754944e-38, %v3557
      %v3559 = vsel %vm3556, %v3558, %v3554
      %v3560 = vmul.f32 -1.0, %v3559
      %v3561 = vrcp.pop %v3529
      %v3562 = vmul.f32 %v3529, %v3561
      %v3563 = vsub.f32 1.0, %v3562
      %v3564 = vmul.f32 %v3561, %v3563
      %v3565 = vadd.f32 %v3561, %v3564
      %vm3566 = vweird.f32 %v3529
      %vm3567 = vweird.f32 %v3561
      %vm3568 = vmor %vm3566, %vm3567
      %v3569 = vsel %vm3568, %v3561, %v3565
      %v3570 = vand.u32 2147483647, %v3529
      %vm3571 = vcmp.eq.f32.partialorder %v3570, 8.507059e+37
      %v3572 = vand.u32 %v3529, 2147483648
      %v3573 = vor.u32 1.1754944e-38, %v3572
      %v3574 = vsel %vm3571, %v3573, %v3569
      %v3575 = vmul.f32 -1.0, %v3574
      %v3576 = vrcp.pop %v3530
      %v3577 = vmul.f32 %v3530, %v3576
      %v3578 = vsub.f32 1.0, %v3577
      %v3579 = vmul.f32 %v3576, %v3578
      %v3580 = vadd.f32 %v3576, %v3579
      %vm3581 = vweird.f32 %v3530
      %vm3582 = vweird.f32 %v3576
      %vm3583 = vmor %vm3581, %vm3582
      %v3584 = vsel %vm3583, %v3576, %v3580
      %v3585 = vand.u32 2147483647, %v3530
      %vm3586 = vcmp.eq.f32.partialorder %v3585, 8.507059e+37
      %v3587 = vand.u32 %v3530, 2147483648
      %v3588 = vor.u32 1.1754944e-38, %v3587
      %v3589 = vsel %vm3586, %v3588, %v3584
      %v3590 = vmul.f32 -1.0, %v3589
      %v3591 = vsub.f32 %v3515, 1.0
      %v3592 = vsub.f32 %v3516, 1.0
      %v3593 = vsub.f32 %v3517, 1.0
      %v3594 = vsub.f32 %v3518, 1.0
      %v3595 = vadd.f32 %v3515, 1.0
      %v3596 = vadd.f32 %v3516, 1.0
      %v3597 = vadd.f32 %v3517, 1.0
      %v3598 = vadd.f32 %v3518, 1.0
      %v3599 = vrcp.pop %v3595
      %v3600 = vmul.f32 %v3595, %v3599
      %v3601 = vsub.f32 1.0, %v3600
      %v3602 = vmul.f32 %v3599, %v3601
      %v3603 = vadd.f32 %v3599, %v3602
      %vm3604 = vweird.f32 %v3595
      %vm3605 = vweird.f32 %v3599
      %vm3606 = vmor %vm3604, %vm3605
      %v3607 = vsel %vm3606, %v3599, %v3603
      %v3608 = vand.u32 2147483647, %v3595
      %vm3609 = vcmp.eq.f32.partialorder %v3608, 8.507059e+37
      %v3610 = vand.u32 %v3595, 2147483648
      %v3611 = vor.u32 1.1754944e-38, %v3610
      %v3612 = vsel %vm3609, %v3611, %v3607
      %v3613 = vmul.f32 %v3591, %v3612
      %v3614 = vrcp.pop %v3596
      %v3615 = vmul.f32 %v3596, %v3614
      %v3616 = vsub.f32 1.0, %v3615
      %v3617 = vmul.f32 %v3614, %v3616
      %v3618 = vadd.f32 %v3614, %v3617
      %vm3619 = vweird.f32 %v3596
      %vm3620 = vweird.f32 %v3614
      %vm3621 = vmor %vm3619, %vm3620
      %v3622 = vsel %vm3621, %v3614, %v3618
      %v3623 = vand.u32 2147483647, %v3596
      %vm3624 = vcmp.eq.f32.partialorder %v3623, 8.507059e+37
      %v3625 = vand.u32 %v3596, 2147483648
      %v3626 = vor.u32 1.1754944e-38, %v3625
      %v3627 = vsel %vm3624, %v3626, %v3622
      %v3628 = vmul.f32 %v3592, %v3627
      %v3629 = vrcp.pop %v3597
      %v3630 = vmul.f32 %v3597, %v3629
      %v3631 = vsub.f32 1.0, %v3630
      %v3632 = vmul.f32 %v3629, %v3631
      %v3633 = vadd.f32 %v3629, %v3632
      %vm3634 = vweird.f32 %v3597
      %vm3635 = vweird.f32 %v3629
      %vm3636 = vmor %vm3634, %vm3635
      %v3637 = vsel %vm3636, %v3629, %v3633
      %v3638 = vand.u32 2147483647, %v3597
      %vm3639 = vcmp.eq.f32.partialorder %v3638, 8.507059e+37
      %v3640 = vand.u32 %v3597, 2147483648
      %v3641 = vor.u32 1.1754944e-38, %v3640
      %v3642 = vsel %vm3639, %v3641, %v3637
      %v3643 = vmul.f32 %v3593, %v3642
      %v3644 = vrcp.pop %v3598
      %v3645 = vmul.f32 %v3598, %v3644
      %v3646 = vsub.f32 1.0, %v3645
      %v3647 = vmul.f32 %v3644, %v3646
      %v3648 = vadd.f32 %v3644, %v3647
      %vm3649 = vweird.f32 %v3598
      %vm3650 = vweird.f32 %v3644
      %vm3651 = vmor %vm3649, %vm3650
      %v3652 = vsel %vm3651, %v3644, %v3648
      %v3653 = vand.u32 2147483647, %v3598
      %vm3654 = vcmp.eq.f32.partialorder %v3653, 8.507059e+37
      %v3655 = vand.u32 %v3598, 2147483648
      %v3656 = vor.u32 1.1754944e-38, %v3655
      %v3657 = vsel %vm3654, %v3656, %v3652
      %v3658 = vmul.f32 %v3594, %v3657
      %v3659 = vsel %vm3523, %v3613, %v3515
      %v3660 = vsel %vm3524, %v3628, %v3516
      %v3661 = vsel %vm3525, %v3643, %v3517
      %v3662 = vsel %vm3526, %v3658, %v3518
      %v3663 = vsel %vm3519, %v3545, %v3659
      %v3664 = vsel %vm3520, %v3560, %v3660
      %v3665 = vsel %vm3521, %v3575, %v3661
      %v3666 = vsel %vm3522, %v3590, %v3662
      %v3667 = vsel %vm3523, 0.7853982, 0.0
      %v3668 = vsel %vm3524, 0.7853982, 0.0
      %v3669 = vsel %vm3525, 0.7853982, 0.0
      %v3670 = vsel %vm3526, 0.7853982, 0.0
      %v3671 = vsel %vm3519, 1.5707964, %v3667
      %v3672 = vsel %vm3520, 1.5707964, %v3668
      %v3673 = vsel %vm3521, 1.5707964, %v3669
      %v3674 = vsel %vm3522, 1.5707964, %v3670
      %v3675 = vmul.f32 %v3663, %v3663
      %v3676 = vmul.f32 %v3664, %v3664
      %v3677 = vmul.f32 %v3665, %v3665
      %v3678 = vmul.f32 %v3666, %v3666
      %v3679 = vmul.f32 %v3675, 0.080537446
      %v3680 = vmul.f32 %v3676, 0.080537446
      %v3681 = vmul.f32 %v3677, 0.080537446
      %v3682 = vmul.f32 %v3678, 0.080537446
      %v3683 = vsub.f32 %v3679, 0.13877685
      %v3684 = vsub.f32 %v3680, 0.13877685
      %v3685 = vsub.f32 %v3681, 0.13877685
      %v3686 = vsub.f32 %v3682, 0.13877685
      %v3687 = vmul.f32 %v3683, %v3675
      %v3688 = vmul.f32 %v3684, %v3676
      %v3689 = vmul.f32 %v3685, %v3677
      %v3690 = vmul.f32 %v3686, %v3678
      %v3691 = vadd.f32 %v3687, 0.19977711
      %v3692 = vadd.f32 %v3688, 0.19977711
      %v3693 = vadd.f32 %v3689, 0.19977711
      %v3694 = vadd.f32 %v3690, 0.19977711
      %v3695 = vmul.f32 %v3691, %v3675
      %v3696 = vmul.f32 %v3692, %v3676
      %v3697 = vmul.f32 %v3693, %v3677
      %v3698 = vmul.f32 %v3694, %v3678
      %v3699 = vsub.f32 %v3695, 0.3333295
      %v3700 = vsub.f32 %v3696, 0.3333295
      %v3701 = vsub.f32 %v3697, 0.3333295
      %v3702 = vsub.f32 %v3698, 0.3333295
      %v3703 = vmul.f32 %v3699, %v3675
      %v3704 = vmul.f32 %v3700, %v3676
      %v3705 = vmul.f32 %v3701, %v3677
      %v3706 = vmul.f32 %v3702, %v3678
      %v3707 = vmul.f32 %v3703, %v3663
      %v3708 = vmul.f32 %v3704, %v3664
      %v3709 = vmul.f32 %v3705, %v3665
      %v3710 = vmul.f32 %v3706, %v3666
      %v3711 = vadd.f32 %v3707, %v3663
      %v3712 = vadd.f32 %v3708, %v3664
      %v3713 = vadd.f32 %v3709, %v3665
      %v3714 = vadd.f32 %v3710, %v3666
      %v3715 = vadd.f32 %v3671, %v3711
      %v3716 = vadd.f32 %v3672, %v3712
      %v3717 = vadd.f32 %v3673, %v3713
      %v3718 = vadd.f32 %v3674, %v3714
      %vm3719 = vcmp.lt.f32.partialorder %v3511, 0.0
      %vm3720 = vcmp.lt.f32.partialorder %v3512, 0.0
      %vm3721 = vcmp.lt.f32.partialorder %v3513, 0.0
      %vm3722 = vcmp.lt.f32.partialorder %v3514, 0.0
      %v3723 = vsub.f32 0.0, %v3715
      %v3724 = vsub.f32 0.0, %v3716
      %v3725 = vsub.f32 0.0, %v3717
      %v3726 = vsub.f32 0.0, %v3718
      %v3727 = vsel %vm3719, %v3723, %v3715
      %v3728 = vsel %vm3720, %v3724, %v3716
      %v3729 = vsel %vm3721, %v3725, %v3717
      %v3730 = vsel %vm3722, %v3726, %v3718
      %v3731 = vmul.f32 %v3727, 0.15915494
      %v3732 = vmul.f32 %v3728, 0.15915494
      %v3733 = vmul.f32 %v3729, 0.15915494
      %v3734 = vmul.f32 %v3730, 0.15915494
      %3735 = vst [vmem:[%s305] sm:$0xff] %v3731
      %3736 = vst [vmem:[%s305 + $0x8] sm:$0xff] %v3732
      %3737 = vst [vmem:[%s305 + $0x10] sm:$0xf] %v3733
      %3738 = vst [vmem:[%s305 + $0x18] sm:$0xf] %v3734
      %p3739 = scmp.lt.s32.totalorder %s19, 1
      %s3740 = scalar_select %p3739, %s19, 1
      %s3741 = smul.addr %s3740, 4
      %s3742 = smul.addr %s3741, 8
      %s3743 = scalar_lea.vmem %s8, %s3742
      // Predicated region
      $region53: #{tpu_custom_call.1} parent=51 // pred_check
        %p3744 = pneg %p210
      $region54: #{tpu_custom_call.1} parent=51 // pred_check_branch
        %3746 = sbr.rel (%p3744) target = $region56
      $region55: #{tpu_custom_call.1} parent=51 // pred_region
        _
      $region56: #{tpu_custom_call.1} parent=51 // pred_fallthru
        _
    $region52: #{tpu_custom_call.1} parent=5 // pred_fallthru
      _
    %p3747 = scmp.le.s32.totalorder 2, %s14
    // Predicated region
    $region57: #{tpu_custom_call.1} parent=5 // pred_check
      %p3748 = pneg %p3747
    $region58: #{tpu_custom_call.1} parent=5 // pred_check_branch
      %3750 = sbr.rel (%p3748) target = $region60
    $region59: #{tpu_custom_call.1} parent=5 // pred_region
      %s3751 = ssub.s32 %s14, 2
      // Predicated region
      $region61: #{tpu_custom_call.1} parent=59 // pred_check
        %p3752 = pneg %p216
      $region62: #{tpu_custom_call.1} parent=59 // pred_check_branch
        %3754 = sbr.rel (%p3752) target = $region64
      $region63: #{tpu_custom_call.1} parent=59 // pred_region
        %p3755 = scmp.lt.s32.totalorder %s20, 1
        %s3756 = scalar_select %p3755, %s20, 1
        %s3757 = smul.addr %s3756, 4
        %s3758 = smul.addr %s3757, 8
        %s3759 = scalar_lea.vmem %s8, %s3758
      $region64: #{tpu_custom_call.1} parent=59 // pred_fallthru
        _
    $region60: #{tpu_custom_call.1} parent=5 // pred_fallthru
      _
  $region6: #{tpu_custom_call.1} parent=0 // loop_footer
    %s18 = sadd.s32 1, %s14
  $region7: #{tpu_custom_call.1} parent=0 // loop_footer_branch
    %13 = sbr.rel target = $region3
  $region8: #{tpu_custom_call.1} parent=0 // loop_exit
    _

</llo_original>
